<compile_context>
chip_gen: v7x
topology: tpu7x:2x2x1
jax: 0.10.0
libtpu: 0.0.40
codegen_flags: <defaults>
</compile_context>

<pallas_src>
import math

import jax
import jax.numpy as jnp
from jax.experimental import pallas as pl
from jax.experimental.pallas import tpu as pltpu  # noqa: F401  (TPU backend)

# ---------------- mini-BERT config (scaled-down legal-bert) ----------------
VOCAB = 1000
HIDDEN = 128
NUM_LAYERS = 2
NUM_HEADS = 2
HEAD_DIM = HIDDEN // NUM_HEADS
HEAD_BLOCK = 128                      # each head padded to one full lane tile
INTERMEDIATE = 256
MAX_POS = 64
NUM_CLS_TOKENS = 3
NUM_CLASSES = 2
LN_EPS = 1e-12

# Head-block expansion (full-lane-tile per-head slices) needs all heads to fit
# inside one 128-lane tile in the original concat layout.
assert NUM_HEADS * HEAD_DIM <= HEAD_BLOCK


# ------------------------------ in-kernel helpers ----------------------------
def _layernorm(x, g, b):
    """Row-wise LayerNorm over the hidden (lane) axis, f32."""
    mean = jnp.mean(x, axis=-1, keepdims=True)
    var = jnp.mean((x - mean) ** 2, axis=-1, keepdims=True)
    return (x - mean) * jax.lax.rsqrt(var + LN_EPS) * g + b


def _gelu(x):
    # TODO(synk): HF legal-bert uses exact erf GELU; tanh approximation differs
    # at the ~1e-3 level from the PyTorch reference.
    c = math.sqrt(2.0 / math.pi)
    return 0.5 * x * (1.0 + jnp.tanh(c * (x + 0.044715 * x * x * x)))


# ------------------------------- fused kernel --------------------------------
def _encoder_kernel(h_ref, mbias_ref, emb_g_ref, emb_b_ref,
                    wqkv_ref, bqkv_ref, wo_ref, bo_ref,
                    ln1_g_ref, ln1_b_ref, wff1_ref, bff1_ref,
                    wff2_ref, bff2_ref, ln2_g_ref, ln2_b_ref,
                    o_ref):
    """Embedding LN + all encoder layers, fully VMEM-resident, one launch."""
    B, _, S = mbias_ref.shape
    qk_width = NUM_HEADS * HEAD_BLOCK
    scale = 1.0 / math.sqrt(HEAD_DIM)
    mask_bias = mbias_ref[...]                                   # (B, 1, S) f32

    # Embedding LayerNorm (residual-free), fused into this launch.
    x = _layernorm(h_ref[...], emb_g_ref[...], emb_b_ref[...])   # (B*S, H) f32

    for l in range(NUM_LAYERS):                                  # static unroll
        # --- fused head-block-expanded QKV on the flattened slab ---
        # (B*S, H) @ (H, 3*NUM_HEADS*128) -> lane-dense (B*S, 768).
        qkv = jnp.dot(x.astype(jnp.bfloat16), wqkv_ref[l],
                      preferred_element_type=jnp.float32) + bqkv_ref[l]
        # Split batch off the sublane axis (S == 8 == exactly one sublane tile).
        qkv3 = qkv.reshape(B, S, 3 * qk_width)

        # --- multi-head attention: per-head full 128-lane tiles ---
        ctx = None
        for hd in range(NUM_HEADS):
            q = qkv3[:, :, hd * HEAD_BLOCK:(hd + 1) * HEAD_BLOCK]
            k = qkv3[:, :, qk_width + hd * HEAD_BLOCK:
                           qk_width + (hd + 1) * HEAD_BLOCK]
            v = qkv3[:, :, 2 * qk_width + hd * HEAD_BLOCK:
                           2 * qk_width + (hd + 1) * HEAD_BLOCK]

            # Scores + mask + softmax in f32 (bf16 cannot hold -1e9 safely).
            s = jnp.einsum('bqd,bkd->bqk', q.astype(jnp.bfloat16),
                           k.astype(jnp.bfloat16),
                           preferred_element_type=jnp.float32) * scale
            s = s + mask_bias
            s = s - jnp.max(s, axis=-1, keepdims=True)
            p = jnp.exp(s)
            p = p / jnp.sum(p, axis=-1, keepdims=True)

            c = jnp.einsum('bqk,bkd->bqd', p.astype(jnp.bfloat16),
                           v.astype(jnp.bfloat16),
                           preferred_element_type=jnp.float32)   # (B, S, H)
            ctx = c if ctx is None else ctx + c   # heads occupy disjoint lanes

        # Heads already sit in concat layout -> single full-width Wo GEMM.
        ctx2 = ctx.reshape(B * S, HIDDEN)
        attn = jnp.dot(ctx2.astype(jnp.bfloat16), wo_ref[l],
                       preferred_element_type=jnp.float32) + bo_ref[l]
        h1 = _layernorm(attn + x, ln1_g_ref[l], ln1_b_ref[l])

        # --- feed-forward + GELU + residual + LN ---
        ff = jnp.dot(h1.astype(jnp.bfloat16), wff1_ref[l],
                     preferred_element_type=jnp.float32) + bff1_ref[l]
        ff = _gelu(ff)
        ff2 = jnp.dot(ff.astype(jnp.bfloat16), wff2_ref[l],
                      preferred_element_type=jnp.float32) + bff2_ref[l]
        x = _layernorm(ff2 + h1, ln2_g_ref[l], ln2_b_ref[l])

    o_ref[...] = x


def bert_encoder(params, h2d, mask_bias):
    """h2d: (B*S, H) f32 embeddings (pre-LN); mask_bias: (B, 1, S) f32."""
    M, H = h2d.shape
    return pl.pallas_call(
        _encoder_kernel,
        out_shape=jax.ShapeDtypeStruct((M, H), jnp.float32),
    )(h2d, mask_bias,
      params["emb_ln_g"], params["emb_ln_b"],
      params["wqkv"], params["bqkv"], params["wo"], params["bo"],
      params["ln1_g"], params["ln1_b"], params["wff1"], params["bff1"],
      params["wff2"], params["bff2"], params["ln2_g"], params["ln2_b"])


# ---------------------------- parameter init --------------------------------
def _expand_head_blocks(w):
    """(..., NUM_HEADS*HEAD_DIM) -> (..., NUM_HEADS*HEAD_BLOCK).

    Head h's columns are placed at lanes [h*HEAD_BLOCK + h*HEAD_DIM,
    h*HEAD_BLOCK + (h+1)*HEAD_DIM) of its own 128-lane block; all other lanes
    are zero.  Every per-head q/k/v slice in the kernel is then a full 128-lane
    vreg tile (zero lanes contribute nothing to the dot products), and summing
    the per-head p@v blocks reconstructs the standard concat layout for Wo.
    """
    out = jnp.zeros(w.shape[:-1] + (NUM_HEADS * HEAD_BLOCK,), w.dtype)
    for h in range(NUM_HEADS):
        src = w[..., h * HEAD_DIM:(h + 1) * HEAD_DIM]
        lo = h * HEAD_BLOCK + h * HEAD_DIM
        out = out.at[..., lo:lo + HEAD_DIM].set(src)
    return out


def init_params(key):
    def nrm(k, shape, scale=0.02):
        return scale * jax.random.normal(k, shape, dtype=jnp.float32)

    keys = jax.random.split(key, 4 + NUM_LAYERS)
    params = {
        "word_emb": nrm(keys[0], (VOCAB, HIDDEN)),
        "pos_emb": nrm(keys[1], (MAX_POS, HIDDEN)),
        "type_emb": nrm(keys[2], (2, HIDDEN)),
        "emb_ln_g": jnp.ones((1, HIDDEN), jnp.float32),
        "emb_ln_b": jnp.zeros((1, HIDDEN), jnp.float32),
        "cls_w": nrm(keys[3], (NUM_CLS_TOKENS * HIDDEN, NUM_CLASSES)),
        "cls_b": jnp.zeros((NUM_CLASSES,), jnp.float32),
    }

    wqkv, bqkv, wo, bo = [], [], [], []
    ln1_g, ln1_b, ln2_g, ln2_b = [], [], [], []
    wff1, bff1, wff2, bff2 = [], [], [], []
    for li in range(NUM_LAYERS):
        lk = jax.random.split(keys[4 + li], 6)
        wq, wk, wv = (nrm(lk[i], (HIDDEN, HIDDEN)) for i in range(3))
        bq = bk = bv = jnp.zeros((1, HIDDEN), jnp.float32)
        # Head-block expanded, fused QKV: (H, 3*NUM_HEADS*128), bf16 for MXU.
        wqkv.append(jnp.concatenate(
            [_expand_head_blocks(wq), _expand_head_blocks(wk),
             _expand_head_blocks(wv)], axis=-1).astype(jnp.bfloat16))
        bqkv.append(jnp.concatenate(
            [_expand_head_blocks(bq), _expand_head_blocks(bk),
             _expand_head_blocks(bv)], axis=-1))
        wo.append(nrm(lk[3], (HIDDEN, HIDDEN)).astype(jnp.bfloat16))
        bo.append(jnp.zeros((1, HIDDEN), jnp.float32))
        ln1_g.append(jnp.ones((1, HIDDEN), jnp.float32))
        ln1_b.append(jnp.zeros((1, HIDDEN), jnp.float32))
        wff1.append(nrm(lk[4], (HIDDEN, INTERMEDIATE)).astype(jnp.bfloat16))
        bff1.append(jnp.zeros((1, INTERMEDIATE), jnp.float32))
        wff2.append(nrm(lk[5], (INTERMEDIATE, HIDDEN)).astype(jnp.bfloat16))
        bff2.append(jnp.zeros((1, HIDDEN), jnp.float32))
        ln2_g.append(jnp.ones((1, HIDDEN), jnp.float32))
        ln2_b.append(jnp.zeros((1, HIDDEN), jnp.float32))

    stack = lambda xs: jnp.stack(xs, axis=0)   # leading NUM_LAYERS axis
    params.update(
        wqkv=stack(wqkv), bqkv=stack(bqkv), wo=stack(wo), bo=stack(bo),
        ln1_g=stack(ln1_g), ln1_b=stack(ln1_b),
        wff1=stack(wff1), bff1=stack(bff1), wff2=stack(wff2), bff2=stack(bff2),
        ln2_g=stack(ln2_g), ln2_b=stack(ln2_b))
    return params


# ------------------------------- forward ------------------------------------
@jax.jit
def legal_retrieval_forward(params, input_ids, attention_mask):
    B, S = input_ids.shape

    # Embedding table gathers stay in plain JAX (XLA fuses the adds);
    # the embedding LayerNorm runs inside the fused encoder kernel.
    # TODO(synk): token_type_ids assumed all-zero (default BERT single-segment).
    h = (params["word_emb"][input_ids]
         + params["pos_emb"][:S][None, :, :]
         + params["type_emb"][0][None, None, :])                 # (B, S, H)

    # additive attention mask: (B, 1, S) f32, 0 keep / -1e9 pad
    mask_bias = (1.0 - attention_mask.astype(jnp.float32))[:, None, :] * (-1e9)

    h_out = bert_encoder(params, h.reshape(B * S, HIDDEN), mask_bias)

    # classifier head on the first num_cls_tokens (plain JAX: output width 2)
    cls_pooled = h_out.reshape(B, S, HIDDEN)[:, :NUM_CLS_TOKENS, :]
    cls_pooled = cls_pooled.reshape(B, NUM_CLS_TOKENS * HIDDEN)
    return cls_pooled @ params["cls_w"] + params["cls_b"]        # (B, 2)


# --------------------------------- main --------------------------------------
if __name__ == "__main__":
    key = jax.random.PRNGKey(0)
    pkey, dkey = jax.random.split(key)

    params = init_params(pkey)

    B, S = 2, 8
    input_ids = jax.random.randint(dkey, (B, S), 0, VOCAB, dtype=jnp.int32)
    attention_mask = jnp.concatenate(
        [jnp.ones((B, S - 2), jnp.int32), jnp.zeros((B, 2), jnp.int32)], axis=1)

    logits = legal_retrieval_forward(params, input_ids, attention_mask)
    jax.block_until_ready(logits)
    assert logits.shape == (B, NUM_CLASSES)
    print("KERNEL_OK")
</pallas_src>

<mosaic_0001>
module attributes {stable_mosaic.version = 11 : i64} {
  func.func @_encoder_kernel(%arg0: memref<16x128xf32, #tpu.memory_space<vmem>>, %arg1: memref<2x1x8xf32, #tpu.memory_space<vmem>>, %arg2: memref<1x128xf32, #tpu.memory_space<vmem>>, %arg3: memref<1x128xf32, #tpu.memory_space<vmem>>, %arg4: memref<2x128x768xbf16, #tpu.memory_space<vmem>>, %arg5: memref<2x1x768xf32, #tpu.memory_space<vmem>>, %arg6: memref<2x128x128xbf16, #tpu.memory_space<vmem>>, %arg7: memref<2x1x128xf32, #tpu.memory_space<vmem>>, %arg8: memref<2x1x128xf32, #tpu.memory_space<vmem>>, %arg9: memref<2x1x128xf32, #tpu.memory_space<vmem>>, %arg10: memref<2x128x256xbf16, #tpu.memory_space<vmem>>, %arg11: memref<2x1x256xf32, #tpu.memory_space<vmem>>, %arg12: memref<2x256x128xbf16, #tpu.memory_space<vmem>>, %arg13: memref<2x1x128xf32, #tpu.memory_space<vmem>>, %arg14: memref<2x1x128xf32, #tpu.memory_space<vmem>>, %arg15: memref<2x1x128xf32, #tpu.memory_space<vmem>>, %arg16: memref<16x128xf32, #tpu.memory_space<vmem>>) attributes {dimension_semantics = [], scalar_prefetch = 0 : i64, scratch_operands = 0 : i64, tpu.core_type = #tpu.core_type<tc>} {
    %c0 = arith.constant 0 : index
    %c0_0 = arith.constant 0 : index
    %c0_1 = arith.constant 0 : index
    %0 = vector.load %arg1[%c0, %c0_0, %c0_1] : memref<2x1x8xf32, #tpu.memory_space<vmem>>, vector<2x1x8xf32>
    %c0_2 = arith.constant 0 : index
    %c0_3 = arith.constant 0 : index
    %1 = vector.load %arg0[%c0_2, %c0_3] : memref<16x128xf32, #tpu.memory_space<vmem>>, vector<16x128xf32>
    %c0_4 = arith.constant 0 : index
    %c0_5 = arith.constant 0 : index
    %2 = vector.load %arg2[%c0_4, %c0_5] : memref<1x128xf32, #tpu.memory_space<vmem>>, vector<1x128xf32>
    %c0_6 = arith.constant 0 : index
    %c0_7 = arith.constant 0 : index
    %3 = vector.load %arg3[%c0_6, %c0_7] : memref<1x128xf32, #tpu.memory_space<vmem>>, vector<1x128xf32>
    %cst = arith.constant dense<0.000000e+00> : vector<16xf32>
    %4 = vector.multi_reduction <add>, %1, %cst [1] : vector<16x128xf32> to vector<16xf32>
    %5 = vector.shape_cast %4 : vector<16xf32> to vector<16x1xf32>
    %cst_8 = arith.constant 1.280000e+02 : f32
    %6 = vector.broadcast %cst_8 : f32 to vector<16x1xf32>
    %7 = arith.divf %5, %6 : vector<16x1xf32>
    %8 = vector.broadcast %7 : vector<16x1xf32> to vector<16x128xf32>
    %9 = arith.subf %1, %8 : vector<16x128xf32>
    %10 = arith.mulf %9, %9 : vector<16x128xf32>
    %cst_9 = arith.constant dense<0.000000e+00> : vector<16xf32>
    %11 = vector.multi_reduction <add>, %10, %cst_9 [1] : vector<16x128xf32> to vector<16xf32>
    %12 = vector.shape_cast %11 : vector<16xf32> to vector<16x1xf32>
    %cst_10 = arith.constant 1.280000e+02 : f32
    %13 = vector.broadcast %cst_10 : f32 to vector<16x1xf32>
    %14 = arith.divf %12, %13 : vector<16x1xf32>
    %15 = vector.broadcast %7 : vector<16x1xf32> to vector<16x128xf32>
    %16 = arith.subf %1, %15 : vector<16x128xf32>
    %cst_11 = arith.constant 9.99999996E-13 : f32
    %17 = vector.broadcast %cst_11 : f32 to vector<16x1xf32>
    %18 = arith.addf %14, %17 : vector<16x1xf32>
    %19 = math.rsqrt %18 : vector<16x1xf32>
    %20 = vector.broadcast %19 : vector<16x1xf32> to vector<16x128xf32>
    %21 = arith.mulf %16, %20 : vector<16x128xf32>
    %22 = vector.broadcast %2 : vector<1x128xf32> to vector<16x128xf32>
    %23 = arith.mulf %21, %22 : vector<16x128xf32>
    %24 = vector.broadcast %3 : vector<1x128xf32> to vector<16x128xf32>
    %25 = arith.addf %23, %24 : vector<16x128xf32>
    %26 = arith.truncf %25 : vector<16x128xf32> to vector<16x128xbf16>
    %c0_12 = arith.constant 0 : index
    %c0_13 = arith.constant 0 : index
    %c0_14 = arith.constant 0 : index
    %27 = vector.load %arg4[%c0_12, %c0_13, %c0_14] : memref<2x128x768xbf16, #tpu.memory_space<vmem>>, vector<1x128x768xbf16>
    %28 = vector.shape_cast %27 : vector<1x128x768xbf16> to vector<128x768xbf16>
    %cst_15 = arith.constant dense<0.000000e+00> : vector<16x768xf32>
    %29 = tpu.matmul %26, %28, %cst_15 {dimension_numbers = #tpu.dot_dimension_numbers<[1], [0], [0], [1], [0, 0, 1, 1], [], []>} : vector<16x128xbf16>, vector<128x768xbf16>, vector<16x768xf32> -> vector<16x768xf32>
    %c0_16 = arith.constant 0 : index
    %c0_17 = arith.constant 0 : index
    %c0_18 = arith.constant 0 : index
    %30 = vector.load %arg5[%c0_16, %c0_17, %c0_18] : memref<2x1x768xf32, #tpu.memory_space<vmem>>, vector<1x1x768xf32>
    %31 = vector.shape_cast %30 : vector<1x1x768xf32> to vector<1x768xf32>
    %32 = vector.broadcast %31 : vector<1x768xf32> to vector<16x768xf32>
    %33 = arith.addf %29, %32 : vector<16x768xf32>
    %34 = vector.shape_cast %33 : vector<16x768xf32> to vector<2x8x768xf32>
    %35 = vector.extract_strided_slice %34 {offsets = [0, 0, 0], sizes = [2, 8, 128], strides = [1, 1, 1]} : vector<2x8x768xf32> to vector<2x8x128xf32>
    %36 = vector.extract_strided_slice %34 {offsets = [0, 0, 256], sizes = [2, 8, 128], strides = [1, 1, 1]} : vector<2x8x768xf32> to vector<2x8x128xf32>
    %37 = vector.extract_strided_slice %34 {offsets = [0, 0, 512], sizes = [2, 8, 128], strides = [1, 1, 1]} : vector<2x8x768xf32> to vector<2x8x128xf32>
    %38 = arith.truncf %35 : vector<2x8x128xf32> to vector<2x8x128xbf16>
    %39 = arith.truncf %36 : vector<2x8x128xf32> to vector<2x8x128xbf16>
    "tpu.trace_start"() <{level = 10 : i32, message = "bqd,bkd->bqk"}> : () -> ()
    %cst_19 = arith.constant dense<0.000000e+00> : vector<2x8x8xf32>
    %40 = tpu.matmul %38, %39, %cst_19 {dimension_numbers = #tpu.dot_dimension_numbers<[2], [2], [1], [1], [0, 0, 0, 1, 1, 1], [0], [0]>} : vector<2x8x128xbf16>, vector<2x8x128xbf16>, vector<2x8x8xf32> -> vector<2x8x8xf32>
    "tpu.trace_stop"() : () -> ()
    %cst_20 = arith.constant 1.250000e-01 : f32
    %41 = vector.broadcast %cst_20 : f32 to vector<2x8x8xf32>
    %42 = arith.mulf %40, %41 : vector<2x8x8xf32>
    %43 = vector.broadcast %0 : vector<2x1x8xf32> to vector<2x8x8xf32>
    %44 = arith.addf %42, %43 : vector<2x8x8xf32>
    %cst_21 = arith.constant dense<0xFF800000> : vector<2x8xf32>
    %45 = vector.multi_reduction <maximumf>, %44, %cst_21 [2] : vector<2x8x8xf32> to vector<2x8xf32>
    %46 = vector.shape_cast %45 : vector<2x8xf32> to vector<2x8x1xf32>
    %47 = vector.broadcast %46 : vector<2x8x1xf32> to vector<2x8x8xf32>
    %48 = arith.subf %44, %47 : vector<2x8x8xf32>
    %49 = math.exp %48 : vector<2x8x8xf32>
    %cst_22 = arith.constant dense<0.000000e+00> : vector<2x8xf32>
    %50 = vector.multi_reduction <add>, %49, %cst_22 [2] : vector<2x8x8xf32> to vector<2x8xf32>
    %51 = vector.shape_cast %50 : vector<2x8xf32> to vector<2x8x1xf32>
    %52 = vector.broadcast %51 : vector<2x8x1xf32> to vector<2x8x8xf32>
    %53 = arith.divf %49, %52 : vector<2x8x8xf32>
    %54 = arith.truncf %53 : vector<2x8x8xf32> to vector<2x8x8xbf16>
    %55 = arith.truncf %37 : vector<2x8x128xf32> to vector<2x8x128xbf16>
    "tpu.trace_start"() <{level = 10 : i32, message = "bqk,bkd->bqd"}> : () -> ()
    %cst_23 = arith.constant dense<0.000000e+00> : vector<2x8x128xf32>
    %56 = tpu.matmul %54, %55, %cst_23 {dimension_numbers = #tpu.dot_dimension_numbers<[2], [1], [1], [2], [0, 0, 0, 1, 1, 2], [0], [0]>} : vector<2x8x8xbf16>, vector<2x8x128xbf16>, vector<2x8x128xf32> -> vector<2x8x128xf32>
    "tpu.trace_stop"() : () -> ()
    %57 = vector.extract_strided_slice %34 {offsets = [0, 0, 128], sizes = [2, 8, 128], strides = [1, 1, 1]} : vector<2x8x768xf32> to vector<2x8x128xf32>
    %58 = vector.extract_strided_slice %34 {offsets = [0, 0, 384], sizes = [2, 8, 128], strides = [1, 1, 1]} : vector<2x8x768xf32> to vector<2x8x128xf32>
    %59 = vector.extract_strided_slice %34 {offsets = [0, 0, 640], sizes = [2, 8, 128], strides = [1, 1, 1]} : vector<2x8x768xf32> to vector<2x8x128xf32>
    %60 = arith.truncf %57 : vector<2x8x128xf32> to vector<2x8x128xbf16>
    %61 = arith.truncf %58 : vector<2x8x128xf32> to vector<2x8x128xbf16>
    "tpu.trace_start"() <{level = 10 : i32, message = "bqd,bkd->bqk"}> : () -> ()
    %cst_24 = arith.constant dense<0.000000e+00> : vector<2x8x8xf32>
    %62 = tpu.matmul %60, %61, %cst_24 {dimension_numbers = #tpu.dot_dimension_numbers<[2], [2], [1], [1], [0, 0, 0, 1, 1, 1], [0], [0]>} : vector<2x8x128xbf16>, vector<2x8x128xbf16>, vector<2x8x8xf32> -> vector<2x8x8xf32>
    "tpu.trace_stop"() : () -> ()
    %cst_25 = arith.constant 1.250000e-01 : f32
    %63 = vector.broadcast %cst_25 : f32 to vector<2x8x8xf32>
    %64 = arith.mulf %62, %63 : vector<2x8x8xf32>
    %65 = vector.broadcast %0 : vector<2x1x8xf32> to vector<2x8x8xf32>
    %66 = arith.addf %64, %65 : vector<2x8x8xf32>
    %cst_26 = arith.constant dense<0xFF800000> : vector<2x8xf32>
    %67 = vector.multi_reduction <maximumf>, %66, %cst_26 [2] : vector<2x8x8xf32> to vector<2x8xf32>
    %68 = vector.shape_cast %67 : vector<2x8xf32> to vector<2x8x1xf32>
    %69 = vector.broadcast %68 : vector<2x8x1xf32> to vector<2x8x8xf32>
    %70 = arith.subf %66, %69 : vector<2x8x8xf32>
    %71 = math.exp %70 : vector<2x8x8xf32>
    %cst_27 = arith.constant dense<0.000000e+00> : vector<2x8xf32>
    %72 = vector.multi_reduction <add>, %71, %cst_27 [2] : vector<2x8x8xf32> to vector<2x8xf32>
    %73 = vector.shape_cast %72 : vector<2x8xf32> to vector<2x8x1xf32>
    %74 = vector.broadcast %73 : vector<2x8x1xf32> to vector<2x8x8xf32>
    %75 = arith.divf %71, %74 : vector<2x8x8xf32>
    %76 = arith.truncf %75 : vector<2x8x8xf32> to vector<2x8x8xbf16>
    %77 = arith.truncf %59 : vector<2x8x128xf32> to vector<2x8x128xbf16>
    "tpu.trace_start"() <{level = 10 : i32, message = "bqk,bkd->bqd"}> : () -> ()
    %cst_28 = arith.constant dense<0.000000e+00> : vector<2x8x128xf32>
    %78 = tpu.matmul %76, %77, %cst_28 {dimension_numbers = #tpu.dot_dimension_numbers<[2], [1], [1], [2], [0, 0, 0, 1, 1, 2], [0], [0]>} : vector<2x8x8xbf16>, vector<2x8x128xbf16>, vector<2x8x128xf32> -> vector<2x8x128xf32>
    "tpu.trace_stop"() : () -> ()
    %79 = arith.addf %56, %78 : vector<2x8x128xf32>
    %80 = vector.shape_cast %79 : vector<2x8x128xf32> to vector<16x128xf32>
    %81 = arith.truncf %80 : vector<16x128xf32> to vector<16x128xbf16>
    %c0_29 = arith.constant 0 : index
    %c0_30 = arith.constant 0 : index
    %c0_31 = arith.constant 0 : index
    %82 = vector.load %arg6[%c0_29, %c0_30, %c0_31] : memref<2x128x128xbf16, #tpu.memory_space<vmem>>, vector<1x128x128xbf16>
    %83 = vector.shape_cast %82 : vector<1x128x128xbf16> to vector<128x128xbf16>
    %cst_32 = arith.constant dense<0.000000e+00> : vector<16x128xf32>
    %84 = tpu.matmul %81, %83, %cst_32 {dimension_numbers = #tpu.dot_dimension_numbers<[1], [0], [0], [1], [0, 0, 1, 1], [], []>} : vector<16x128xbf16>, vector<128x128xbf16>, vector<16x128xf32> -> vector<16x128xf32>
    %c0_33 = arith.constant 0 : index
    %c0_34 = arith.constant 0 : index
    %c0_35 = arith.constant 0 : index
    %85 = vector.load %arg7[%c0_33, %c0_34, %c0_35] : memref<2x1x128xf32, #tpu.memory_space<vmem>>, vector<1x1x128xf32>
    %86 = vector.shape_cast %85 : vector<1x1x128xf32> to vector<1x128xf32>
    %87 = vector.broadcast %86 : vector<1x128xf32> to vector<16x128xf32>
    %88 = arith.addf %84, %87 : vector<16x128xf32>
    %89 = arith.addf %88, %25 : vector<16x128xf32>
    %c0_36 = arith.constant 0 : index
    %c0_37 = arith.constant 0 : index
    %c0_38 = arith.constant 0 : index
    %90 = vector.load %arg8[%c0_36, %c0_37, %c0_38] : memref<2x1x128xf32, #tpu.memory_space<vmem>>, vector<1x1x128xf32>
    %91 = vector.shape_cast %90 : vector<1x1x128xf32> to vector<1x128xf32>
    %c0_39 = arith.constant 0 : index
    %c0_40 = arith.constant 0 : index
    %c0_41 = arith.constant 0 : index
    %92 = vector.load %arg9[%c0_39, %c0_40, %c0_41] : memref<2x1x128xf32, #tpu.memory_space<vmem>>, vector<1x1x128xf32>
    %93 = vector.shape_cast %92 : vector<1x1x128xf32> to vector<1x128xf32>
    %cst_42 = arith.constant dense<0.000000e+00> : vector<16xf32>
    %94 = vector.multi_reduction <add>, %89, %cst_42 [1] : vector<16x128xf32> to vector<16xf32>
    %95 = vector.shape_cast %94 : vector<16xf32> to vector<16x1xf32>
    %cst_43 = arith.constant 1.280000e+02 : f32
    %96 = vector.broadcast %cst_43 : f32 to vector<16x1xf32>
    %97 = arith.divf %95, %96 : vector<16x1xf32>
    %98 = vector.broadcast %97 : vector<16x1xf32> to vector<16x128xf32>
    %99 = arith.subf %89, %98 : vector<16x128xf32>
    %100 = arith.mulf %99, %99 : vector<16x128xf32>
    %cst_44 = arith.constant dense<0.000000e+00> : vector<16xf32>
    %101 = vector.multi_reduction <add>, %100, %cst_44 [1] : vector<16x128xf32> to vector<16xf32>
    %102 = vector.shape_cast %101 : vector<16xf32> to vector<16x1xf32>
    %cst_45 = arith.constant 1.280000e+02 : f32
    %103 = vector.broadcast %cst_45 : f32 to vector<16x1xf32>
    %104 = arith.divf %102, %103 : vector<16x1xf32>
    %105 = vector.broadcast %97 : vector<16x1xf32> to vector<16x128xf32>
    %106 = arith.subf %89, %105 : vector<16x128xf32>
    %cst_46 = arith.constant 9.99999996E-13 : f32
    %107 = vector.broadcast %cst_46 : f32 to vector<16x1xf32>
    %108 = arith.addf %104, %107 : vector<16x1xf32>
    %109 = math.rsqrt %108 : vector<16x1xf32>
    %110 = vector.broadcast %109 : vector<16x1xf32> to vector<16x128xf32>
    %111 = arith.mulf %106, %110 : vector<16x128xf32>
    %112 = vector.broadcast %91 : vector<1x128xf32> to vector<16x128xf32>
    %113 = arith.mulf %111, %112 : vector<16x128xf32>
    %114 = vector.broadcast %93 : vector<1x128xf32> to vector<16x128xf32>
    %115 = arith.addf %113, %114 : vector<16x128xf32>
    %116 = arith.truncf %115 : vector<16x128xf32> to vector<16x128xbf16>
    %c0_47 = arith.constant 0 : index
    %c0_48 = arith.constant 0 : index
    %c0_49 = arith.constant 0 : index
    %117 = vector.load %arg10[%c0_47, %c0_48, %c0_49] : memref<2x128x256xbf16, #tpu.memory_space<vmem>>, vector<1x128x256xbf16>
    %118 = vector.shape_cast %117 : vector<1x128x256xbf16> to vector<128x256xbf16>
    %cst_50 = arith.constant dense<0.000000e+00> : vector<16x256xf32>
    %119 = tpu.matmul %116, %118, %cst_50 {dimension_numbers = #tpu.dot_dimension_numbers<[1], [0], [0], [1], [0, 0, 1, 1], [], []>} : vector<16x128xbf16>, vector<128x256xbf16>, vector<16x256xf32> -> vector<16x256xf32>
    %c0_51 = arith.constant 0 : index
    %c0_52 = arith.constant 0 : index
    %c0_53 = arith.constant 0 : index
    %120 = vector.load %arg11[%c0_51, %c0_52, %c0_53] : memref<2x1x256xf32, #tpu.memory_space<vmem>>, vector<1x1x256xf32>
    %121 = vector.shape_cast %120 : vector<1x1x256xf32> to vector<1x256xf32>
    %122 = vector.broadcast %121 : vector<1x256xf32> to vector<16x256xf32>
    %123 = arith.addf %119, %122 : vector<16x256xf32>
    %cst_54 = arith.constant 5.000000e-01 : f32
    %124 = vector.broadcast %cst_54 : f32 to vector<16x256xf32>
    %125 = arith.mulf %124, %123 : vector<16x256xf32>
    %cst_55 = arith.constant 4.471500e-02 : f32
    %126 = vector.broadcast %cst_55 : f32 to vector<16x256xf32>
    %127 = arith.mulf %126, %123 : vector<16x256xf32>
    %128 = arith.mulf %127, %123 : vector<16x256xf32>
    %129 = arith.mulf %128, %123 : vector<16x256xf32>
    %130 = arith.addf %123, %129 : vector<16x256xf32>
    %cst_56 = arith.constant 0.797884583 : f32
    %131 = vector.broadcast %cst_56 : f32 to vector<16x256xf32>
    %132 = arith.mulf %131, %130 : vector<16x256xf32>
    %133 = math.tanh %132 : vector<16x256xf32>
    %cst_57 = arith.constant 1.000000e+00 : f32
    %134 = vector.broadcast %cst_57 : f32 to vector<16x256xf32>
    %135 = arith.addf %134, %133 : vector<16x256xf32>
    %136 = arith.mulf %125, %135 : vector<16x256xf32>
    %137 = arith.truncf %136 : vector<16x256xf32> to vector<16x256xbf16>
    %c0_58 = arith.constant 0 : index
    %c0_59 = arith.constant 0 : index
    %c0_60 = arith.constant 0 : index
    %138 = vector.load %arg12[%c0_58, %c0_59, %c0_60] : memref<2x256x128xbf16, #tpu.memory_space<vmem>>, vector<1x256x128xbf16>
    %139 = vector.shape_cast %138 : vector<1x256x128xbf16> to vector<256x128xbf16>
    %cst_61 = arith.constant dense<0.000000e+00> : vector<16x128xf32>
    %140 = tpu.matmul %137, %139, %cst_61 {dimension_numbers = #tpu.dot_dimension_numbers<[1], [0], [0], [1], [0, 0, 1, 1], [], []>} : vector<16x256xbf16>, vector<256x128xbf16>, vector<16x128xf32> -> vector<16x128xf32>
    %c0_62 = arith.constant 0 : index
    %c0_63 = arith.constant 0 : index
    %c0_64 = arith.constant 0 : index
    %141 = vector.load %arg13[%c0_62, %c0_63, %c0_64] : memref<2x1x128xf32, #tpu.memory_space<vmem>>, vector<1x1x128xf32>
    %142 = vector.shape_cast %141 : vector<1x1x128xf32> to vector<1x128xf32>
    %143 = vector.broadcast %142 : vector<1x128xf32> to vector<16x128xf32>
    %144 = arith.addf %140, %143 : vector<16x128xf32>
    %145 = arith.addf %144, %115 : vector<16x128xf32>
    %c0_65 = arith.constant 0 : index
    %c0_66 = arith.constant 0 : index
    %c0_67 = arith.constant 0 : index
    %146 = vector.load %arg14[%c0_65, %c0_66, %c0_67] : memref<2x1x128xf32, #tpu.memory_space<vmem>>, vector<1x1x128xf32>
    %147 = vector.shape_cast %146 : vector<1x1x128xf32> to vector<1x128xf32>
    %c0_68 = arith.constant 0 : index
    %c0_69 = arith.constant 0 : index
    %c0_70 = arith.constant 0 : index
    %148 = vector.load %arg15[%c0_68, %c0_69, %c0_70] : memref<2x1x128xf32, #tpu.memory_space<vmem>>, vector<1x1x128xf32>
    %149 = vector.shape_cast %148 : vector<1x1x128xf32> to vector<1x128xf32>
    %cst_71 = arith.constant dense<0.000000e+00> : vector<16xf32>
    %150 = vector.multi_reduction <add>, %145, %cst_71 [1] : vector<16x128xf32> to vector<16xf32>
    %151 = vector.shape_cast %150 : vector<16xf32> to vector<16x1xf32>
    %cst_72 = arith.constant 1.280000e+02 : f32
    %152 = vector.broadcast %cst_72 : f32 to vector<16x1xf32>
    %153 = arith.divf %151, %152 : vector<16x1xf32>
    %154 = vector.broadcast %153 : vector<16x1xf32> to vector<16x128xf32>
    %155 = arith.subf %145, %154 : vector<16x128xf32>
    %156 = arith.mulf %155, %155 : vector<16x128xf32>
    %cst_73 = arith.constant dense<0.000000e+00> : vector<16xf32>
    %157 = vector.multi_reduction <add>, %156, %cst_73 [1] : vector<16x128xf32> to vector<16xf32>
    %158 = vector.shape_cast %157 : vector<16xf32> to vector<16x1xf32>
    %cst_74 = arith.constant 1.280000e+02 : f32
    %159 = vector.broadcast %cst_74 : f32 to vector<16x1xf32>
    %160 = arith.divf %158, %159 : vector<16x1xf32>
    %161 = vector.broadcast %153 : vector<16x1xf32> to vector<16x128xf32>
    %162 = arith.subf %145, %161 : vector<16x128xf32>
    %cst_75 = arith.constant 9.99999996E-13 : f32
    %163 = vector.broadcast %cst_75 : f32 to vector<16x1xf32>
    %164 = arith.addf %160, %163 : vector<16x1xf32>
    %165 = math.rsqrt %164 : vector<16x1xf32>
    %166 = vector.broadcast %165 : vector<16x1xf32> to vector<16x128xf32>
    %167 = arith.mulf %162, %166 : vector<16x128xf32>
    %168 = vector.broadcast %147 : vector<1x128xf32> to vector<16x128xf32>
    %169 = arith.mulf %167, %168 : vector<16x128xf32>
    %170 = vector.broadcast %149 : vector<1x128xf32> to vector<16x128xf32>
    %171 = arith.addf %169, %170 : vector<16x128xf32>
    %172 = arith.truncf %171 : vector<16x128xf32> to vector<16x128xbf16>
    %c1 = arith.constant 1 : index
    %c0_76 = arith.constant 0 : index
    %c0_77 = arith.constant 0 : index
    %173 = vector.load %arg4[%c1, %c0_76, %c0_77] : memref<2x128x768xbf16, #tpu.memory_space<vmem>>, vector<1x128x768xbf16>
    %174 = vector.shape_cast %173 : vector<1x128x768xbf16> to vector<128x768xbf16>
    %cst_78 = arith.constant dense<0.000000e+00> : vector<16x768xf32>
    %175 = tpu.matmul %172, %174, %cst_78 {dimension_numbers = #tpu.dot_dimension_numbers<[1], [0], [0], [1], [0, 0, 1, 1], [], []>} : vector<16x128xbf16>, vector<128x768xbf16>, vector<16x768xf32> -> vector<16x768xf32>
    %c1_79 = arith.constant 1 : index
    %c0_80 = arith.constant 0 : index
    %c0_81 = arith.constant 0 : index
    %176 = vector.load %arg5[%c1_79, %c0_80, %c0_81] : memref<2x1x768xf32, #tpu.memory_space<vmem>>, vector<1x1x768xf32>
    %177 = vector.shape_cast %176 : vector<1x1x768xf32> to vector<1x768xf32>
    %178 = vector.broadcast %177 : vector<1x768xf32> to vector<16x768xf32>
    %179 = arith.addf %175, %178 : vector<16x768xf32>
    %180 = vector.shape_cast %179 : vector<16x768xf32> to vector<2x8x768xf32>
    %181 = vector.extract_strided_slice %180 {offsets = [0, 0, 0], sizes = [2, 8, 128], strides = [1, 1, 1]} : vector<2x8x768xf32> to vector<2x8x128xf32>
    %182 = vector.extract_strided_slice %180 {offsets = [0, 0, 256], sizes = [2, 8, 128], strides = [1, 1, 1]} : vector<2x8x768xf32> to vector<2x8x128xf32>
    %183 = vector.extract_strided_slice %180 {offsets = [0, 0, 512], sizes = [2, 8, 128], strides = [1, 1, 1]} : vector<2x8x768xf32> to vector<2x8x128xf32>
    %184 = arith.truncf %181 : vector<2x8x128xf32> to vector<2x8x128xbf16>
    %185 = arith.truncf %182 : vector<2x8x128xf32> to vector<2x8x128xbf16>
    "tpu.trace_start"() <{level = 10 : i32, message = "bqd,bkd->bqk"}> : () -> ()
    %cst_82 = arith.constant dense<0.000000e+00> : vector<2x8x8xf32>
    %186 = tpu.matmul %184, %185, %cst_82 {dimension_numbers = #tpu.dot_dimension_numbers<[2], [2], [1], [1], [0, 0, 0, 1, 1, 1], [0], [0]>} : vector<2x8x128xbf16>, vector<2x8x128xbf16>, vector<2x8x8xf32> -> vector<2x8x8xf32>
    "tpu.trace_stop"() : () -> ()
    %cst_83 = arith.constant 1.250000e-01 : f32
    %187 = vector.broadcast %cst_83 : f32 to vector<2x8x8xf32>
    %188 = arith.mulf %186, %187 : vector<2x8x8xf32>
    %189 = vector.broadcast %0 : vector<2x1x8xf32> to vector<2x8x8xf32>
    %190 = arith.addf %188, %189 : vector<2x8x8xf32>
    %cst_84 = arith.constant dense<0xFF800000> : vector<2x8xf32>
    %191 = vector.multi_reduction <maximumf>, %190, %cst_84 [2] : vector<2x8x8xf32> to vector<2x8xf32>
    %192 = vector.shape_cast %191 : vector<2x8xf32> to vector<2x8x1xf32>
    %193 = vector.broadcast %192 : vector<2x8x1xf32> to vector<2x8x8xf32>
    %194 = arith.subf %190, %193 : vector<2x8x8xf32>
    %195 = math.exp %194 : vector<2x8x8xf32>
    %cst_85 = arith.constant dense<0.000000e+00> : vector<2x8xf32>
    %196 = vector.multi_reduction <add>, %195, %cst_85 [2] : vector<2x8x8xf32> to vector<2x8xf32>
    %197 = vector.shape_cast %196 : vector<2x8xf32> to vector<2x8x1xf32>
    %198 = vector.broadcast %197 : vector<2x8x1xf32> to vector<2x8x8xf32>
    %199 = arith.divf %195, %198 : vector<2x8x8xf32>
    %200 = arith.truncf %199 : vector<2x8x8xf32> to vector<2x8x8xbf16>
    %201 = arith.truncf %183 : vector<2x8x128xf32> to vector<2x8x128xbf16>
    "tpu.trace_start"() <{level = 10 : i32, message = "bqk,bkd->bqd"}> : () -> ()
    %cst_86 = arith.constant dense<0.000000e+00> : vector<2x8x128xf32>
    %202 = tpu.matmul %200, %201, %cst_86 {dimension_numbers = #tpu.dot_dimension_numbers<[2], [1], [1], [2], [0, 0, 0, 1, 1, 2], [0], [0]>} : vector<2x8x8xbf16>, vector<2x8x128xbf16>, vector<2x8x128xf32> -> vector<2x8x128xf32>
    "tpu.trace_stop"() : () -> ()
    %203 = vector.extract_strided_slice %180 {offsets = [0, 0, 128], sizes = [2, 8, 128], strides = [1, 1, 1]} : vector<2x8x768xf32> to vector<2x8x128xf32>
    %204 = vector.extract_strided_slice %180 {offsets = [0, 0, 384], sizes = [2, 8, 128], strides = [1, 1, 1]} : vector<2x8x768xf32> to vector<2x8x128xf32>
    %205 = vector.extract_strided_slice %180 {offsets = [0, 0, 640], sizes = [2, 8, 128], strides = [1, 1, 1]} : vector<2x8x768xf32> to vector<2x8x128xf32>
    %206 = arith.truncf %203 : vector<2x8x128xf32> to vector<2x8x128xbf16>
    %207 = arith.truncf %204 : vector<2x8x128xf32> to vector<2x8x128xbf16>
    "tpu.trace_start"() <{level = 10 : i32, message = "bqd,bkd->bqk"}> : () -> ()
    %cst_87 = arith.constant dense<0.000000e+00> : vector<2x8x8xf32>
    %208 = tpu.matmul %206, %207, %cst_87 {dimension_numbers = #tpu.dot_dimension_numbers<[2], [2], [1], [1], [0, 0, 0, 1, 1, 1], [0], [0]>} : vector<2x8x128xbf16>, vector<2x8x128xbf16>, vector<2x8x8xf32> -> vector<2x8x8xf32>
    "tpu.trace_stop"() : () -> ()
    %cst_88 = arith.constant 1.250000e-01 : f32
    %209 = vector.broadcast %cst_88 : f32 to vector<2x8x8xf32>
    %210 = arith.mulf %208, %209 : vector<2x8x8xf32>
    %211 = vector.broadcast %0 : vector<2x1x8xf32> to vector<2x8x8xf32>
    %212 = arith.addf %210, %211 : vector<2x8x8xf32>
    %cst_89 = arith.constant dense<0xFF800000> : vector<2x8xf32>
    %213 = vector.multi_reduction <maximumf>, %212, %cst_89 [2] : vector<2x8x8xf32> to vector<2x8xf32>
    %214 = vector.shape_cast %213 : vector<2x8xf32> to vector<2x8x1xf32>
    %215 = vector.broadcast %214 : vector<2x8x1xf32> to vector<2x8x8xf32>
    %216 = arith.subf %212, %215 : vector<2x8x8xf32>
    %217 = math.exp %216 : vector<2x8x8xf32>
    %cst_90 = arith.constant dense<0.000000e+00> : vector<2x8xf32>
    %218 = vector.multi_reduction <add>, %217, %cst_90 [2] : vector<2x8x8xf32> to vector<2x8xf32>
    %219 = vector.shape_cast %218 : vector<2x8xf32> to vector<2x8x1xf32>
    %220 = vector.broadcast %219 : vector<2x8x1xf32> to vector<2x8x8xf32>
    %221 = arith.divf %217, %220 : vector<2x8x8xf32>
    %222 = arith.truncf %221 : vector<2x8x8xf32> to vector<2x8x8xbf16>
    %223 = arith.truncf %205 : vector<2x8x128xf32> to vector<2x8x128xbf16>
    "tpu.trace_start"() <{level = 10 : i32, message = "bqk,bkd->bqd"}> : () -> ()
    %cst_91 = arith.constant dense<0.000000e+00> : vector<2x8x128xf32>
    %224 = tpu.matmul %222, %223, %cst_91 {dimension_numbers = #tpu.dot_dimension_numbers<[2], [1], [1], [2], [0, 0, 0, 1, 1, 2], [0], [0]>} : vector<2x8x8xbf16>, vector<2x8x128xbf16>, vector<2x8x128xf32> -> vector<2x8x128xf32>
    "tpu.trace_stop"() : () -> ()
    %225 = arith.addf %202, %224 : vector<2x8x128xf32>
    %226 = vector.shape_cast %225 : vector<2x8x128xf32> to vector<16x128xf32>
    %227 = arith.truncf %226 : vector<16x128xf32> to vector<16x128xbf16>
    %c1_92 = arith.constant 1 : index
    %c0_93 = arith.constant 0 : index
    %c0_94 = arith.constant 0 : index
    %228 = vector.load %arg6[%c1_92, %c0_93, %c0_94] : memref<2x128x128xbf16, #tpu.memory_space<vmem>>, vector<1x128x128xbf16>
    %229 = vector.shape_cast %228 : vector<1x128x128xbf16> to vector<128x128xbf16>
    %cst_95 = arith.constant dense<0.000000e+00> : vector<16x128xf32>
    %230 = tpu.matmul %227, %229, %cst_95 {dimension_numbers = #tpu.dot_dimension_numbers<[1], [0], [0], [1], [0, 0, 1, 1], [], []>} : vector<16x128xbf16>, vector<128x128xbf16>, vector<16x128xf32> -> vector<16x128xf32>
    %c1_96 = arith.constant 1 : index
    %c0_97 = arith.constant 0 : index
    %c0_98 = arith.constant 0 : index
    %231 = vector.load %arg7[%c1_96, %c0_97, %c0_98] : memref<2x1x128xf32, #tpu.memory_space<vmem>>, vector<1x1x128xf32>
    %232 = vector.shape_cast %231 : vector<1x1x128xf32> to vector<1x128xf32>
    %233 = vector.broadcast %232 : vector<1x128xf32> to vector<16x128xf32>
    %234 = arith.addf %230, %233 : vector<16x128xf32>
    %235 = arith.addf %234, %171 : vector<16x128xf32>
    %c1_99 = arith.constant 1 : index
    %c0_100 = arith.constant 0 : index
    %c0_101 = arith.constant 0 : index
    %236 = vector.load %arg8[%c1_99, %c0_100, %c0_101] : memref<2x1x128xf32, #tpu.memory_space<vmem>>, vector<1x1x128xf32>
    %237 = vector.shape_cast %236 : vector<1x1x128xf32> to vector<1x128xf32>
    %c1_102 = arith.constant 1 : index
    %c0_103 = arith.constant 0 : index
    %c0_104 = arith.constant 0 : index
    %238 = vector.load %arg9[%c1_102, %c0_103, %c0_104] : memref<2x1x128xf32, #tpu.memory_space<vmem>>, vector<1x1x128xf32>
    %239 = vector.shape_cast %238 : vector<1x1x128xf32> to vector<1x128xf32>
    %cst_105 = arith.constant dense<0.000000e+00> : vector<16xf32>
    %240 = vector.multi_reduction <add>, %235, %cst_105 [1] : vector<16x128xf32> to vector<16xf32>
    %241 = vector.shape_cast %240 : vector<16xf32> to vector<16x1xf32>
    %cst_106 = arith.constant 1.280000e+02 : f32
    %242 = vector.broadcast %cst_106 : f32 to vector<16x1xf32>
    %243 = arith.divf %241, %242 : vector<16x1xf32>
    %244 = vector.broadcast %243 : vector<16x1xf32> to vector<16x128xf32>
    %245 = arith.subf %235, %244 : vector<16x128xf32>
    %246 = arith.mulf %245, %245 : vector<16x128xf32>
    %cst_107 = arith.constant dense<0.000000e+00> : vector<16xf32>
    %247 = vector.multi_reduction <add>, %246, %cst_107 [1] : vector<16x128xf32> to vector<16xf32>
    %248 = vector.shape_cast %247 : vector<16xf32> to vector<16x1xf32>
    %cst_108 = arith.constant 1.280000e+02 : f32
    %249 = vector.broadcast %cst_108 : f32 to vector<16x1xf32>
    %250 = arith.divf %248, %249 : vector<16x1xf32>
    %251 = vector.broadcast %243 : vector<16x1xf32> to vector<16x128xf32>
    %252 = arith.subf %235, %251 : vector<16x128xf32>
    %cst_109 = arith.constant 9.99999996E-13 : f32
    %253 = vector.broadcast %cst_109 : f32 to vector<16x1xf32>
    %254 = arith.addf %250, %253 : vector<16x1xf32>
    %255 = math.rsqrt %254 : vector<16x1xf32>
    %256 = vector.broadcast %255 : vector<16x1xf32> to vector<16x128xf32>
    %257 = arith.mulf %252, %256 : vector<16x128xf32>
    %258 = vector.broadcast %237 : vector<1x128xf32> to vector<16x128xf32>
    %259 = arith.mulf %257, %258 : vector<16x128xf32>
    %260 = vector.broadcast %239 : vector<1x128xf32> to vector<16x128xf32>
    %261 = arith.addf %259, %260 : vector<16x128xf32>
    %262 = arith.truncf %261 : vector<16x128xf32> to vector<16x128xbf16>
    %c1_110 = arith.constant 1 : index
    %c0_111 = arith.constant 0 : index
    %c0_112 = arith.constant 0 : index
    %263 = vector.load %arg10[%c1_110, %c0_111, %c0_112] : memref<2x128x256xbf16, #tpu.memory_space<vmem>>, vector<1x128x256xbf16>
    %264 = vector.shape_cast %263 : vector<1x128x256xbf16> to vector<128x256xbf16>
    %cst_113 = arith.constant dense<0.000000e+00> : vector<16x256xf32>
    %265 = tpu.matmul %262, %264, %cst_113 {dimension_numbers = #tpu.dot_dimension_numbers<[1], [0], [0], [1], [0, 0, 1, 1], [], []>} : vector<16x128xbf16>, vector<128x256xbf16>, vector<16x256xf32> -> vector<16x256xf32>
    %c1_114 = arith.constant 1 : index
    %c0_115 = arith.constant 0 : index
    %c0_116 = arith.constant 0 : index
    %266 = vector.load %arg11[%c1_114, %c0_115, %c0_116] : memref<2x1x256xf32, #tpu.memory_space<vmem>>, vector<1x1x256xf32>
    %267 = vector.shape_cast %266 : vector<1x1x256xf32> to vector<1x256xf32>
    %268 = vector.broadcast %267 : vector<1x256xf32> to vector<16x256xf32>
    %269 = arith.addf %265, %268 : vector<16x256xf32>
    %cst_117 = arith.constant 5.000000e-01 : f32
    %270 = vector.broadcast %cst_117 : f32 to vector<16x256xf32>
    %271 = arith.mulf %270, %269 : vector<16x256xf32>
    %cst_118 = arith.constant 4.471500e-02 : f32
    %272 = vector.broadcast %cst_118 : f32 to vector<16x256xf32>
    %273 = arith.mulf %272, %269 : vector<16x256xf32>
    %274 = arith.mulf %273, %269 : vector<16x256xf32>
    %275 = arith.mulf %274, %269 : vector<16x256xf32>
    %276 = arith.addf %269, %275 : vector<16x256xf32>
    %cst_119 = arith.constant 0.797884583 : f32
    %277 = vector.broadcast %cst_119 : f32 to vector<16x256xf32>
    %278 = arith.mulf %277, %276 : vector<16x256xf32>
    %279 = math.tanh %278 : vector<16x256xf32>
    %cst_120 = arith.constant 1.000000e+00 : f32
    %280 = vector.broadcast %cst_120 : f32 to vector<16x256xf32>
    %281 = arith.addf %280, %279 : vector<16x256xf32>
    %282 = arith.mulf %271, %281 : vector<16x256xf32>
    %283 = arith.truncf %282 : vector<16x256xf32> to vector<16x256xbf16>
    %c1_121 = arith.constant 1 : index
    %c0_122 = arith.constant 0 : index
    %c0_123 = arith.constant 0 : index
    %284 = vector.load %arg12[%c1_121, %c0_122, %c0_123] : memref<2x256x128xbf16, #tpu.memory_space<vmem>>, vector<1x256x128xbf16>
    %285 = vector.shape_cast %284 : vector<1x256x128xbf16> to vector<256x128xbf16>
    %cst_124 = arith.constant dense<0.000000e+00> : vector<16x128xf32>
    %286 = tpu.matmul %283, %285, %cst_124 {dimension_numbers = #tpu.dot_dimension_numbers<[1], [0], [0], [1], [0, 0, 1, 1], [], []>} : vector<16x256xbf16>, vector<256x128xbf16>, vector<16x128xf32> -> vector<16x128xf32>
    %c1_125 = arith.constant 1 : index
    %c0_126 = arith.constant 0 : index
    %c0_127 = arith.constant 0 : index
    %287 = vector.load %arg13[%c1_125, %c0_126, %c0_127] : memref<2x1x128xf32, #tpu.memory_space<vmem>>, vector<1x1x128xf32>
    %288 = vector.shape_cast %287 : vector<1x1x128xf32> to vector<1x128xf32>
    %289 = vector.broadcast %288 : vector<1x128xf32> to vector<16x128xf32>
    %290 = arith.addf %286, %289 : vector<16x128xf32>
    %291 = arith.addf %290, %261 : vector<16x128xf32>
    %c1_128 = arith.constant 1 : index
    %c0_129 = arith.constant 0 : index
    %c0_130 = arith.constant 0 : index
    %292 = vector.load %arg14[%c1_128, %c0_129, %c0_130] : memref<2x1x128xf32, #tpu.memory_space<vmem>>, vector<1x1x128xf32>
    %293 = vector.shape_cast %292 : vector<1x1x128xf32> to vector<1x128xf32>
    %c1_131 = arith.constant 1 : index
    %c0_132 = arith.constant 0 : index
    %c0_133 = arith.constant 0 : index
    %294 = vector.load %arg15[%c1_131, %c0_132, %c0_133] : memref<2x1x128xf32, #tpu.memory_space<vmem>>, vector<1x1x128xf32>
    %295 = vector.shape_cast %294 : vector<1x1x128xf32> to vector<1x128xf32>
    %cst_134 = arith.constant dense<0.000000e+00> : vector<16xf32>
    %296 = vector.multi_reduction <add>, %291, %cst_134 [1] : vector<16x128xf32> to vector<16xf32>
    %297 = vector.shape_cast %296 : vector<16xf32> to vector<16x1xf32>
    %cst_135 = arith.constant 1.280000e+02 : f32
    %298 = vector.broadcast %cst_135 : f32 to vector<16x1xf32>
    %299 = arith.divf %297, %298 : vector<16x1xf32>
    %300 = vector.broadcast %299 : vector<16x1xf32> to vector<16x128xf32>
    %301 = arith.subf %291, %300 : vector<16x128xf32>
    %302 = arith.mulf %301, %301 : vector<16x128xf32>
    %cst_136 = arith.constant dense<0.000000e+00> : vector<16xf32>
    %303 = vector.multi_reduction <add>, %302, %cst_136 [1] : vector<16x128xf32> to vector<16xf32>
    %304 = vector.shape_cast %303 : vector<16xf32> to vector<16x1xf32>
    %cst_137 = arith.constant 1.280000e+02 : f32
    %305 = vector.broadcast %cst_137 : f32 to vector<16x1xf32>
    %306 = arith.divf %304, %305 : vector<16x1xf32>
    %307 = vector.broadcast %299 : vector<16x1xf32> to vector<16x128xf32>
    %308 = arith.subf %291, %307 : vector<16x128xf32>
    %cst_138 = arith.constant 9.99999996E-13 : f32
    %309 = vector.broadcast %cst_138 : f32 to vector<16x1xf32>
    %310 = arith.addf %306, %309 : vector<16x1xf32>
    %311 = math.rsqrt %310 : vector<16x1xf32>
    %312 = vector.broadcast %311 : vector<16x1xf32> to vector<16x128xf32>
    %313 = arith.mulf %308, %312 : vector<16x128xf32>
    %314 = vector.broadcast %293 : vector<1x128xf32> to vector<16x128xf32>
    %315 = arith.mulf %313, %314 : vector<16x128xf32>
    %316 = vector.broadcast %295 : vector<1x128xf32> to vector<16x128xf32>
    %317 = arith.addf %315, %316 : vector<16x128xf32>
    %c0_139 = arith.constant 0 : index
    %c0_140 = arith.constant 0 : index
    %318 = vector.load %arg16[%c0_139, %c0_140] : memref<16x128xf32, #tpu.memory_space<vmem>>, vector<16x128xf32>
    tpu.vector_store %arg16[%c0_139, %c0_140], %317 {strides = array<i32>} : memref<16x128xf32, #tpu.memory_space<vmem>>, vector<16x128xf32>,
    return
  }
}

</mosaic_0001>

<llo_original>
// kernel: legal_retrieval_forward.1
$region0: #{legal_retrieval_forward.1}
  #allocation0 [shape = 'u32[]', space=smem, size = 0x4, offset = 0x4, fixed_abs, tag = 'smem constant byte address 0x4 - core index']
  #allocation1 [shape = 'u32[144,128]{1,0:T(1,128)}', space=vmem, size = 0x12000, scoped, tag = 'internal scratch']
  %s0 = inlined_call_operand.vmem [shape: f32[16,128], index: 0, kind: input, shape index: {}]
  %s1 = inlined_call_operand.vmem [shape: f32[2,1,8], index: 1, kind: input, shape index: {}]
  %s2 = inlined_call_operand.hbm [shape: f32[1,128], index: 2, kind: input, shape index: {}]
  %s3 = inlined_call_operand.hbm [shape: f32[1,128], index: 3, kind: input, shape index: {}]
  %s4 = inlined_call_operand.hbm [shape: bf16[2,128,768], index: 4, kind: input, shape index: {}]
  %s5 = inlined_call_operand.vmem [shape: f32[2,1,768], index: 5, kind: input, shape index: {}]
  %s6 = inlined_call_operand.hbm [shape: bf16[2,128,128], index: 6, kind: input, shape index: {}]
  %s7 = inlined_call_operand.vmem [shape: f32[2,1,128], index: 7, kind: input, shape index: {}]
  %s8 = inlined_call_operand.vmem [shape: f32[2,1,128], index: 8, kind: input, shape index: {}]
  %s9 = inlined_call_operand.vmem [shape: f32[2,1,128], index: 9, kind: input, shape index: {}]
  %s10 = inlined_call_operand.vmem [shape: bf16[2,128,256], index: 10, kind: input, shape index: {}]
  %s11 = inlined_call_operand.vmem [shape: f32[2,1,256], index: 11, kind: input, shape index: {}]
  %s12 = inlined_call_operand.hbm [shape: bf16[2,256,128], index: 12, kind: input, shape index: {}]
  %s13 = inlined_call_operand.vmem [shape: f32[2,1,128], index: 13, kind: input, shape index: {}]
  %s14 = inlined_call_operand.vmem [shape: f32[2,1,128], index: 14, kind: input, shape index: {}]
  %s15 = inlined_call_operand.vmem [shape: f32[2,1,128], index: 15, kind: input, shape index: {}]
  %s16 = inlined_call_operand.vmem [shape: f32[16,128], index: 16, kind: output, shape index: {}]
  %s17 = sld [smem:[#allocation0]]
  $region94: #{legal_retrieval_forward.1} parent=0
    _
  %s19 = ssub.s32 1, %s17
  %s20 = scalar_select 0, %s19, %s17
  $region1: #{legal_retrieval_forward.1} parent=0
    #allocation2 [shape = 'u8[512]{0}', space=vmem, size = 0x400, scoped, tag = 'input window, operand 2, single buffered']
    #allocation3 [shape = 's32[1]{0}', space=sflag, size = 0x4, scoped, tag = 'scoped memory for legal_retrieval_forward.1']
    #allocation4 [shape = 'u8[512]{0}', space=vmem, size = 0x400, scoped, tag = 'input window, operand 3, single buffered']
    #allocation5 [shape = 's32[1]{0}', space=sflag, size = 0x4, scoped, tag = 'scoped memory for legal_retrieval_forward.1']
    #allocation6 [shape = 'u8[393216]{0}', space=vmem, size = 0x60000, scoped, tag = 'input window, operand 4, single buffered']
    #allocation7 [shape = 'u8[65536]{0}', space=vmem, size = 0x10000, scoped, tag = 'input window, operand 6, single buffered']
    #allocation8 [shape = 's32[1]{0}', space=sflag, size = 0x4, scoped, tag = 'scoped memory for legal_retrieval_forward.1']
    #allocation9 [shape = 'u8[131072]{0}', space=vmem, size = 0x20000, scoped, tag = 'input window, operand 12, single buffered']
    %21 = vsyncpa [#allocation3], 0
    %22 = vsyncpa [#allocation5], 0
    %23 = vsyncpa [#allocation8], 0
    // Predicated region
    $region2: #{legal_retrieval_forward.1} parent=1 // pred_check
      _
    $region3: #{legal_retrieval_forward.1} parent=1 // pred_check_branch
      %25 = sbr.rel (0) target = $region5
    $region4: #{legal_retrieval_forward.1} parent=1 // pred_region
      _
    $region5: #{legal_retrieval_forward.1} parent=1 // pred_fallthru
      _
    // Predicated region
    $region6: #{legal_retrieval_forward.1} parent=1 // pred_check
      _
    $region7: #{legal_retrieval_forward.1} parent=1 // pred_check_branch
      %27 = sbr.rel (0) target = $region9
    $region8: #{legal_retrieval_forward.1} parent=1 // pred_region
      _
    $region9: #{legal_retrieval_forward.1} parent=1 // pred_fallthru
      _
    // Predicated region
    $region10: #{legal_retrieval_forward.1} parent=1 // pred_check
      _
    $region11: #{legal_retrieval_forward.1} parent=1 // pred_check_branch
      %29 = sbr.rel (0) target = $region13
    $region12: #{legal_retrieval_forward.1} parent=1 // pred_region
      %s31 = ssub.s32 16, 16
      %32 = vsyncadd [#allocation3], %s31
      %s34 = sshll.u32 [#allocation2], 4
      %s35 = int_to_ptr.vmem [resolvable:$true] %s34
      %37 = dma.hbm_to_vmem [thread:$0]  %s2, 16, %s35, [#allocation3]
    $region13: #{legal_retrieval_forward.1} parent=1 // pred_fallthru
      _
    // Predicated region
    $region14: #{legal_retrieval_forward.1} parent=1 // pred_check
      _
    $region15: #{legal_retrieval_forward.1} parent=1 // pred_check_branch
      %39 = sbr.rel (0) target = $region17
    $region16: #{legal_retrieval_forward.1} parent=1 // pred_region
      %s41 = ssub.s32 16, 16
      %42 = vsyncadd [#allocation5], %s41
      %s44 = sshll.u32 [#allocation4], 4
      %s45 = int_to_ptr.vmem [resolvable:$true] %s44
      %47 = dma.hbm_to_vmem [thread:$0]  %s3, 16, %s45, [#allocation5]
    $region17: #{legal_retrieval_forward.1} parent=1 // pred_fallthru
      _
    // Predicated region
    $region18: #{legal_retrieval_forward.1} parent=1 // pred_check
      _
    $region19: #{legal_retrieval_forward.1} parent=1 // pred_check_branch
      %49 = sbr.rel (0) target = $region21
    $region20: #{legal_retrieval_forward.1} parent=1 // pred_region
      %s51 = ssub.s32 12288, 12288
      %52 = vsyncadd [#allocation5], %s51
      %s53 = sshll.u32 [#allocation6], 4
      %s54 = int_to_ptr.vmem [resolvable:$true] %s53
      %59 = dma.hbm_to_vmem [thread:$0]  %s4, 12288, %s54, [#allocation5], 384, 384, 24
    $region21: #{legal_retrieval_forward.1} parent=1 // pred_fallthru
      _
    // Predicated region
    $region22: #{legal_retrieval_forward.1} parent=1 // pred_check
      _
    $region23: #{legal_retrieval_forward.1} parent=1 // pred_check_branch
      %61 = sbr.rel (0) target = $region25
    $region24: #{legal_retrieval_forward.1} parent=1 // pred_region
      _
    $region25: #{legal_retrieval_forward.1} parent=1 // pred_fallthru
      _
    // Predicated region
    $region26: #{legal_retrieval_forward.1} parent=1 // pred_check
      _
    $region27: #{legal_retrieval_forward.1} parent=1 // pred_check_branch
      %63 = sbr.rel (0) target = $region29
    $region28: #{legal_retrieval_forward.1} parent=1 // pred_region
      %s65 = ssub.s32 2048, 2048
      %66 = vsyncadd [#allocation8], %s65
      %s67 = sshll.u32 [#allocation7], 4
      %s68 = int_to_ptr.vmem [resolvable:$true] %s67
      %73 = dma.hbm_to_vmem [thread:$0]  %s6, 2048, %s68, [#allocation8], 64, 64, 4
    $region29: #{legal_retrieval_forward.1} parent=1 // pred_fallthru
      _
    // Predicated region
    $region30: #{legal_retrieval_forward.1} parent=1 // pred_check
      _
    $region31: #{legal_retrieval_forward.1} parent=1 // pred_check_branch
      %75 = sbr.rel (0) target = $region33
    $region32: #{legal_retrieval_forward.1} parent=1 // pred_region
      _
    $region33: #{legal_retrieval_forward.1} parent=1 // pred_fallthru
      _
    // Predicated region
    $region34: #{legal_retrieval_forward.1} parent=1 // pred_check
      _
    $region35: #{legal_retrieval_forward.1} parent=1 // pred_check_branch
      %77 = sbr.rel (0) target = $region37
    $region36: #{legal_retrieval_forward.1} parent=1 // pred_region
      _
    $region37: #{legal_retrieval_forward.1} parent=1 // pred_fallthru
      _
    // Predicated region
    $region38: #{legal_retrieval_forward.1} parent=1 // pred_check
      _
    $region39: #{legal_retrieval_forward.1} parent=1 // pred_check_branch
      %79 = sbr.rel (0) target = $region41
    $region40: #{legal_retrieval_forward.1} parent=1 // pred_region
      _
    $region41: #{legal_retrieval_forward.1} parent=1 // pred_fallthru
      _
    // Predicated region
    $region42: #{legal_retrieval_forward.1} parent=1 // pred_check
      _
    $region43: #{legal_retrieval_forward.1} parent=1 // pred_check_branch
      %81 = sbr.rel (0) target = $region45
    $region44: #{legal_retrieval_forward.1} parent=1 // pred_region
      _
    $region45: #{legal_retrieval_forward.1} parent=1 // pred_fallthru
      _
    // Predicated region
    $region46: #{legal_retrieval_forward.1} parent=1 // pred_check
      _
    $region47: #{legal_retrieval_forward.1} parent=1 // pred_check_branch
      %83 = sbr.rel (0) target = $region49
    $region48: #{legal_retrieval_forward.1} parent=1 // pred_region
      _
    $region49: #{legal_retrieval_forward.1} parent=1 // pred_fallthru
      _
    // Predicated region
    $region50: #{legal_retrieval_forward.1} parent=1 // pred_check
      _
    $region51: #{legal_retrieval_forward.1} parent=1 // pred_check_branch
      %85 = sbr.rel (0) target = $region53
    $region52: #{legal_retrieval_forward.1} parent=1 // pred_region
      %s87 = ssub.s32 4096, 4096
      %88 = vsyncadd [#allocation8], %s87
      %s89 = sshll.u32 [#allocation9], 4
      %s90 = int_to_ptr.vmem [resolvable:$true] %s89
      %95 = dma.hbm_to_vmem [thread:$0]  %s12, 4096, %s90, [#allocation8], 64, 64, 4
    $region53: #{legal_retrieval_forward.1} parent=1 // pred_fallthru
      _
    // Predicated region
    $region54: #{legal_retrieval_forward.1} parent=1 // pred_check
      _
    $region55: #{legal_retrieval_forward.1} parent=1 // pred_check_branch
      %97 = sbr.rel (0) target = $region57
    $region56: #{legal_retrieval_forward.1} parent=1 // pred_region
      _
    $region57: #{legal_retrieval_forward.1} parent=1 // pred_fallthru
      _
    // Predicated region
    $region58: #{legal_retrieval_forward.1} parent=1 // pred_check
      _
    $region59: #{legal_retrieval_forward.1} parent=1 // pred_check_branch
      %99 = sbr.rel (0) target = $region61
    $region60: #{legal_retrieval_forward.1} parent=1 // pred_region
      _
    $region61: #{legal_retrieval_forward.1} parent=1 // pred_fallthru
      _
    // Predicated region
    $region62: #{legal_retrieval_forward.1} parent=1 // pred_check
      _
    $region63: #{legal_retrieval_forward.1} parent=1 // pred_check_branch
      %101 = sbr.rel (0) target = $region65
    $region64: #{legal_retrieval_forward.1} parent=1 // pred_region
      _
    $region65: #{legal_retrieval_forward.1} parent=1 // pred_fallthru
      _
    // Predicated region
    $region66: #{legal_retrieval_forward.1} parent=1 // pred_check
      _
    $region67: #{legal_retrieval_forward.1} parent=1 // pred_check_branch
      %103 = sbr.rel (0) target = $region69
    $region68: #{legal_retrieval_forward.1} parent=1 // pred_region
      %104 = dma.done [#allocation3], 16
    $region69: #{legal_retrieval_forward.1} parent=1 // pred_fallthru
      _
    // Predicated region
    $region70: #{legal_retrieval_forward.1} parent=1 // pred_check
      _
    $region71: #{legal_retrieval_forward.1} parent=1 // pred_check_branch
      %106 = sbr.rel (0) target = $region73
    $region72: #{legal_retrieval_forward.1} parent=1 // pred_region
      %107 = dma.done [#allocation5], 16
    $region73: #{legal_retrieval_forward.1} parent=1 // pred_fallthru
      _
    // Predicated region
    $region74: #{legal_retrieval_forward.1} parent=1 // pred_check
      _
    $region75: #{legal_retrieval_forward.1} parent=1 // pred_check_branch
      %109 = sbr.rel (0) target = $region77
    $region76: #{legal_retrieval_forward.1} parent=1 // pred_region
      %110 = dma.done [#allocation5], 12288
    $region77: #{legal_retrieval_forward.1} parent=1 // pred_fallthru
      _
    // Predicated region
    $region78: #{legal_retrieval_forward.1} parent=1 // pred_check
      _
    $region79: #{legal_retrieval_forward.1} parent=1 // pred_check_branch
      %112 = sbr.rel (0) target = $region81
    $region80: #{legal_retrieval_forward.1} parent=1 // pred_region
      %113 = dma.done [#allocation8], 2048
    $region81: #{legal_retrieval_forward.1} parent=1 // pred_fallthru
      _
    // Predicated region
    $region82: #{legal_retrieval_forward.1} parent=1 // pred_check
      _
    $region83: #{legal_retrieval_forward.1} parent=1 // pred_check_branch
      %115 = sbr.rel (0) target = $region85
    $region84: #{legal_retrieval_forward.1} parent=1 // pred_region
      %116 = dma.done [#allocation8], 4096
    $region85: #{legal_retrieval_forward.1} parent=1 // pred_fallthru
      _
    %v118 = vld [vmem:[%s1] sm:$0x1]
    %v119 = vld [vmem:[%s1 + $0x1] sm:$0x1]
    %v120 = vld [vmem:[%s0] sm:$0xff]
    %v121 = vld [vmem:[%s0 + $0x8] sm:$0xff]
    %v122 = vld [vmem:[#allocation2] sm:$0x1]
    %v123 = vld [vmem:[#allocation4] sm:$0x1]
    %124 = vadd.xlane.f32.xlu0 %v120
    %v125 = vpop.xlane.xlu0 %124
    %126 = vadd.xlane.f32.xlu0 %v121
    %v127 = vpop.xlane.xlu0 %126
    %v128 = vrcp.pop 128.0
    %v129 = vmul.f32 %v125, %v128
    %v130 = vmul.f32 %v127, %v128
    %v131 = vsub.f32 %v120, %v129
    %v132 = vsub.f32 %v121, %v130
    %v133 = vmul.f32 %v131, %v131
    %v134 = vmul.f32 %v132, %v132
    %135 = vadd.xlane.f32.xlu0 %v133
    %v136 = vpop.xlane.xlu0 %135
    %137 = vadd.xlane.f32.xlu0 %v134
    %v138 = vpop.xlane.xlu0 %137
    %v139 = vmul.f32 %v136, %v128
    %v140 = vmul.f32 %v138, %v128
    %v141 = vadd.f32 %v139, 1e-12
    %v142 = vadd.f32 %v140, 1e-12
    %v143 = vrsqrt.pop %v141
    %v144 = vrsqrt.pop %v142
    %v145 = vmul.f32 %v131, %v143
    %v146 = vmul.f32 %v132, %v144
    %v148 = vlaneseq
    %v149 = vshrl.u32 %v148, 7
    %v150 = vsub.s32 0, %v149
    %v151 = vrot.slane %v122, %v150
    %v153 = vmul.f32 %v145, %v151
    %v154 = vmul.f32 %v146, %v151
    %v156 = vlaneseq
    %v157 = vshrl.u32 %v156, 7
    %v158 = vsub.s32 0, %v157
    %v159 = vrot.slane %v123, %v158
    %v161 = vadd.f32 %v153, %v159
    %v162 = vadd.f32 %v154, %v159
    %v163 = vpack.c.bf16 %v162, %v161
    %v164 = vld [vmem:[#allocation6] sm:$0xff]
    %v165 = vld [vmem:[#allocation6 + $0x8] sm:$0xff]
    %v166 = vld [vmem:[#allocation6 + $0x10] sm:$0xff]
    %v167 = vld [vmem:[#allocation6 + $0x18] sm:$0xff]
    %v168 = vld [vmem:[#allocation6 + $0x20] sm:$0xff]
    %v169 = vld [vmem:[#allocation6 + $0x28] sm:$0xff]
    %v170 = vld [vmem:[#allocation6 + $0x30] sm:$0xff]
    %v171 = vld [vmem:[#allocation6 + $0x38] sm:$0xff]
    %v172 = vld [vmem:[#allocation6 + $0x40] sm:$0xff]
    %v173 = vld [vmem:[#allocation6 + $0x48] sm:$0xff]
    %v174 = vld [vmem:[#allocation6 + $0x50] sm:$0xff]
    %v175 = vld [vmem:[#allocation6 + $0x58] sm:$0xff]
    %v176 = vld [vmem:[#allocation6 + $0x60] sm:$0xff]
    %v177 = vld [vmem:[#allocation6 + $0x68] sm:$0xff]
    %v178 = vld [vmem:[#allocation6 + $0x70] sm:$0xff]
    %v179 = vld [vmem:[#allocation6 + $0x78] sm:$0xff]
    %v180 = vld [vmem:[#allocation6 + $0x80] sm:$0xff]
    %v181 = vld [vmem:[#allocation6 + $0x88] sm:$0xff]
    %v182 = vld [vmem:[#allocation6 + $0x90] sm:$0xff]
    %v183 = vld [vmem:[#allocation6 + $0x98] sm:$0xff]
    %v184 = vld [vmem:[#allocation6 + $0xa0] sm:$0xff]
    %v185 = vld [vmem:[#allocation6 + $0xa8] sm:$0xff]
    %v186 = vld [vmem:[#allocation6 + $0xb0] sm:$0xff]
    %v187 = vld [vmem:[#allocation6 + $0xb8] sm:$0xff]
    %v188 = vld [vmem:[#allocation6 + $0xc0] sm:$0xff]
    %v189 = vld [vmem:[#allocation6 + $0xc8] sm:$0xff]
    %v190 = vld [vmem:[#allocation6 + $0xd0] sm:$0xff]
    %v191 = vld [vmem:[#allocation6 + $0xd8] sm:$0xff]
    %v192 = vld [vmem:[#allocation6 + $0xe0] sm:$0xff]
    %v193 = vld [vmem:[#allocation6 + $0xe8] sm:$0xff]
    %v194 = vld [vmem:[#allocation6 + $0xf0] sm:$0xff]
    %v195 = vld [vmem:[#allocation6 + $0xf8] sm:$0xff]
    %v196 = vld [vmem:[#allocation6 + $0x100] sm:$0xff]
    %v197 = vld [vmem:[#allocation6 + $0x108] sm:$0xff]
    %v198 = vld [vmem:[#allocation6 + $0x110] sm:$0xff]
    %v199 = vld [vmem:[#allocation6 + $0x118] sm:$0xff]
    %v200 = vld [vmem:[#allocation6 + $0x120] sm:$0xff]
    %v201 = vld [vmem:[#allocation6 + $0x128] sm:$0xff]
    %v202 = vld [vmem:[#allocation6 + $0x130] sm:$0xff]
    %v203 = vld [vmem:[#allocation6 + $0x138] sm:$0xff]
    %v204 = vld [vmem:[#allocation6 + $0x140] sm:$0xff]
    %v205 = vld [vmem:[#allocation6 + $0x148] sm:$0xff]
    %v206 = vld [vmem:[#allocation6 + $0x150] sm:$0xff]
    %v207 = vld [vmem:[#allocation6 + $0x158] sm:$0xff]
    %v208 = vld [vmem:[#allocation6 + $0x160] sm:$0xff]
    %v209 = vld [vmem:[#allocation6 + $0x168] sm:$0xff]
    %v210 = vld [vmem:[#allocation6 + $0x170] sm:$0xff]
    %v211 = vld [vmem:[#allocation6 + $0x178] sm:$0xff]
    %v212 = vld [vmem:[%s5] sm:$0x3f]
    %v214 = vlaneseq
    %v215 = vshrl.u32 %v214, 7
    %v216 = vsub.s32 0, %v215
    %v217 = vrot.slane %v212, %v216
    %v218 = vlaneseq
    %v219 = vshrl.u32 %v218, 7
    %v220 = vsub.s32 1, %v219
    %v221 = vrot.slane %v212, %v220
    %v222 = vlaneseq
    %v223 = vshrl.u32 %v222, 7
    %v224 = vsub.s32 2, %v223
    %v225 = vrot.slane %v212, %v224
    %v226 = vlaneseq
    %v227 = vshrl.u32 %v226, 7
    %v228 = vsub.s32 3, %v227
    %v229 = vrot.slane %v212, %v228
    %v230 = vlaneseq
    %v231 = vshrl.u32 %v230, 7
    %v232 = vsub.s32 4, %v231
    %v233 = vrot.slane %v212, %v232
    %v234 = vlaneseq
    %v235 = vshrl.u32 %v234, 7
    %v236 = vsub.s32 5, %v235
    %v237 = vrot.slane %v212, %v236
    %v292 = vunpack.c.l.b16 %v164
    %v293 = vunpack.c.h.b16 %v164
    %v294 = vunpack.c.l.b16 %v165
    %v295 = vunpack.c.h.b16 %v165
    %v296 = vunpack.c.l.b16 %v166
    %v297 = vunpack.c.h.b16 %v166
    %v298 = vunpack.c.l.b16 %v167
    %v299 = vunpack.c.h.b16 %v167
    %v300 = vunpack.c.l.b16 %v168
    %v301 = vunpack.c.h.b16 %v168
    %v302 = vunpack.c.l.b16 %v169
    %v303 = vunpack.c.h.b16 %v169
    %v304 = vunpack.c.l.b16 %v170
    %v305 = vunpack.c.h.b16 %v170
    %v306 = vunpack.c.l.b16 %v171
    %v307 = vunpack.c.h.b16 %v171
    %v308 = vunpack.c.l.b16 %v172
    %v309 = vunpack.c.h.b16 %v172
    %v310 = vunpack.c.l.b16 %v173
    %v311 = vunpack.c.h.b16 %v173
    %v312 = vunpack.c.l.b16 %v174
    %v313 = vunpack.c.h.b16 %v174
    %v314 = vunpack.c.l.b16 %v175
    %v315 = vunpack.c.h.b16 %v175
    %v316 = vunpack.c.l.b16 %v176
    %v317 = vunpack.c.h.b16 %v176
    %v318 = vunpack.c.l.b16 %v177
    %v319 = vunpack.c.h.b16 %v177
    %v320 = vunpack.c.l.b16 %v178
    %v321 = vunpack.c.h.b16 %v178
    %v322 = vunpack.c.l.b16 %v179
    %v323 = vunpack.c.h.b16 %v179
    %v324 = vunpack.c.l.b16 %v180
    %v325 = vunpack.c.h.b16 %v180
    %v326 = vunpack.c.l.b16 %v181
    %v327 = vunpack.c.h.b16 %v181
    %v328 = vunpack.c.l.b16 %v182
    %v329 = vunpack.c.h.b16 %v182
    %v330 = vunpack.c.l.b16 %v183
    %v331 = vunpack.c.h.b16 %v183
    %v332 = vunpack.c.l.b16 %v184
    %v333 = vunpack.c.h.b16 %v184
    %v334 = vunpack.c.l.b16 %v185
    %v335 = vunpack.c.h.b16 %v185
    %v336 = vunpack.c.l.b16 %v186
    %v337 = vunpack.c.h.b16 %v186
    %v338 = vunpack.c.l.b16 %v187
    %v339 = vunpack.c.h.b16 %v187
    %v340 = vunpack.c.l.b16 %v188
    %v341 = vunpack.c.h.b16 %v188
    %v342 = vunpack.c.l.b16 %v189
    %v343 = vunpack.c.h.b16 %v189
    %v344 = vunpack.c.l.b16 %v190
    %v345 = vunpack.c.h.b16 %v190
    %v346 = vunpack.c.l.b16 %v191
    %v347 = vunpack.c.h.b16 %v191
    %v348 = vunpack.c.l.b16 %v192
    %v349 = vunpack.c.h.b16 %v192
    %v350 = vunpack.c.l.b16 %v193
    %v351 = vunpack.c.h.b16 %v193
    %v352 = vunpack.c.l.b16 %v194
    %v353 = vunpack.c.h.b16 %v194
    %v354 = vunpack.c.l.b16 %v195
    %v355 = vunpack.c.h.b16 %v195
    %v356 = vunpack.c.l.b16 %v196
    %v357 = vunpack.c.h.b16 %v196
    %v358 = vunpack.c.l.b16 %v197
    %v359 = vunpack.c.h.b16 %v197
    %v360 = vunpack.c.l.b16 %v198
    %v361 = vunpack.c.h.b16 %v198
    %v362 = vunpack.c.l.b16 %v199
    %v363 = vunpack.c.h.b16 %v199
    %v364 = vunpack.c.l.b16 %v200
    %v365 = vunpack.c.h.b16 %v200
    %v366 = vunpack.c.l.b16 %v201
    %v367 = vunpack.c.h.b16 %v201
    %v368 = vunpack.c.l.b16 %v202
    %v369 = vunpack.c.h.b16 %v202
    %v370 = vunpack.c.l.b16 %v203
    %v371 = vunpack.c.h.b16 %v203
    %v372 = vunpack.c.l.b16 %v204
    %v373 = vunpack.c.h.b16 %v204
    %v374 = vunpack.c.l.b16 %v205
    %v375 = vunpack.c.h.b16 %v205
    %v376 = vunpack.c.l.b16 %v206
    %v377 = vunpack.c.h.b16 %v206
    %v378 = vunpack.c.l.b16 %v207
    %v379 = vunpack.c.h.b16 %v207
    %v380 = vunpack.c.l.b16 %v208
    %v381 = vunpack.c.h.b16 %v208
    %v382 = vunpack.c.l.b16 %v209
    %v383 = vunpack.c.h.b16 %v209
    %v384 = vunpack.c.l.b16 %v210
    %v385 = vunpack.c.h.b16 %v210
    %v386 = vunpack.c.l.b16 %v211
    %v387 = vunpack.c.h.b16 %v211
    %v388 = vpack.c.b16 %v298, %v292
    %v389 = vpack.c.b16 %v299, %v293
    %v390 = vpack.c.b16 %v300, %v294
    %v391 = vpack.c.b16 %v301, %v295
    %v392 = vpack.c.b16 %v302, %v296
    %v393 = vpack.c.b16 %v303, %v297
    %v394 = vpack.c.b16 %v310, %v304
    %v395 = vpack.c.b16 %v311, %v305
    %v396 = vpack.c.b16 %v312, %v306
    %v397 = vpack.c.b16 %v313, %v307
    %v398 = vpack.c.b16 %v314, %v308
    %v399 = vpack.c.b16 %v315, %v309
    %v400 = vpack.c.b16 %v322, %v316
    %v401 = vpack.c.b16 %v323, %v317
    %v402 = vpack.c.b16 %v324, %v318
    %v403 = vpack.c.b16 %v325, %v319
    %v404 = vpack.c.b16 %v326, %v320
    %v405 = vpack.c.b16 %v327, %v321
    %v406 = vpack.c.b16 %v334, %v328
    %v407 = vpack.c.b16 %v335, %v329
    %v408 = vpack.c.b16 %v336, %v330
    %v409 = vpack.c.b16 %v337, %v331
    %v410 = vpack.c.b16 %v338, %v332
    %v411 = vpack.c.b16 %v339, %v333
    %v412 = vpack.c.b16 %v346, %v340
    %v413 = vpack.c.b16 %v347, %v341
    %v414 = vpack.c.b16 %v348, %v342
    %v415 = vpack.c.b16 %v349, %v343
    %v416 = vpack.c.b16 %v350, %v344
    %v417 = vpack.c.b16 %v351, %v345
    %v418 = vpack.c.b16 %v358, %v352
    %v419 = vpack.c.b16 %v359, %v353
    %v420 = vpack.c.b16 %v360, %v354
    %v421 = vpack.c.b16 %v361, %v355
    %v422 = vpack.c.b16 %v362, %v356
    %v423 = vpack.c.b16 %v363, %v357
    %v424 = vpack.c.b16 %v370, %v364
    %v425 = vpack.c.b16 %v371, %v365
    %v426 = vpack.c.b16 %v372, %v366
    %v427 = vpack.c.b16 %v373, %v367
    %v428 = vpack.c.b16 %v374, %v368
    %v429 = vpack.c.b16 %v375, %v369
    %v430 = vpack.c.b16 %v382, %v376
    %v431 = vpack.c.b16 %v383, %v377
    %v432 = vpack.c.b16 %v384, %v378
    %v433 = vpack.c.b16 %v385, %v379
    %v434 = vpack.c.b16 %v386, %v380
    %v435 = vpack.c.b16 %v387, %v381
    %484 = vmatprep.subr.bf16.mxu0 %v389
    %485 = vmatpush1.bf16.msra.mxu0 %v388
    %486 = vmatprep.subr.bf16.mxu0 %v395
    %487 = vmatpush1.bf16.msra.mxu0 %v394
    %488 = vmatprep.subr.bf16.mxu0 %v401
    %489 = vmatpush1.bf16.msra.mxu0 %v400
    %490 = vmatprep.subr.bf16.mxu0 %v407
    %491 = vmatpush1.bf16.msra.mxu0 %v406
    %492 = vmatprep.subr.bf16.mxu0 %v413
    %493 = vmatpush1.bf16.msra.mxu0 %v412
    %494 = vmatprep.subr.bf16.mxu0 %v419
    %495 = vmatpush1.bf16.msra.mxu0 %v418
    %496 = vmatprep.subr.bf16.mxu0 %v425
    %497 = vmatpush1.bf16.msra.mxu0 %v424
    %498 = vmatprep.subr.bf16.mxu0 %v431
    %499 = vmatpush1.bf16.msra.mxu0 %v430
    %500 = vmatprep.subr.bf16.mxu0 0
    %501 = vmatpush1.bf16.msra.mxu0 0
    %502 = vmatprep.subr.bf16.mxu0 0
    %503 = vmatpush1.bf16.msra.mxu0 0
    %504 = vmatprep.subr.bf16.mxu0 0
    %505 = vmatpush1.bf16.msra.mxu0 0
    %506 = vmatprep.subr.bf16.mxu0 0
    %507 = vmatpush1.bf16.msra.mxu0 0
    %508 = vmatprep.subr.bf16.mxu0 0
    %509 = vmatpush1.bf16.msra.mxu0 0
    %510 = vmatprep.subr.bf16.mxu0 0
    %511 = vmatpush1.bf16.msra.mxu0 0
    %512 = vmatprep.subr.bf16.mxu0 0
    %513 = vmatpush1.bf16.msra.mxu0 0
    %514 = vmatprep.subr.bf16.mxu0 0
    %515 = vmatpush1.bf16.msra.mxu0 0
    %516 = vmatprep.mubr.bf16.mxu0 0
    %517 = vmatmul.mubr.bf16.gmra.mrb[0].mxu0 %v163
    %v518 = vpop.f32.mrb[0].mxu0
    %v519 = vadd.f32 %v217, %v518
    %v520 = vpop.f32.mrb[0].mxu0
    %v521 = vadd.f32 %v221, %v520
    %v522 = vpop.f32.mrb[0].mxu0
    %v523 = vadd.f32 %v217, %v522
    %v524 = vpop.f32.mrb[0].mxu0
    %v525 = vadd.f32 %v221, %v524
    %526 = vdwg.mxu0
    %527 = vmatprep.subr.bf16.mxu0 %v391
    %528 = vmatpush1.bf16.msra.mxu0 %v390
    %529 = vmatprep.subr.bf16.mxu0 %v397
    %530 = vmatpush1.bf16.msra.mxu0 %v396
    %531 = vmatprep.subr.bf16.mxu0 %v403
    %532 = vmatpush1.bf16.msra.mxu0 %v402
    %533 = vmatprep.subr.bf16.mxu0 %v409
    %534 = vmatpush1.bf16.msra.mxu0 %v408
    %535 = vmatprep.subr.bf16.mxu0 %v415
    %536 = vmatpush1.bf16.msra.mxu0 %v414
    %537 = vmatprep.subr.bf16.mxu0 %v421
    %538 = vmatpush1.bf16.msra.mxu0 %v420
    %539 = vmatprep.subr.bf16.mxu0 %v427
    %540 = vmatpush1.bf16.msra.mxu0 %v426
    %541 = vmatprep.subr.bf16.mxu0 %v433
    %542 = vmatpush1.bf16.msra.mxu0 %v432
    %543 = vmatprep.subr.bf16.mxu0 0
    %544 = vmatpush1.bf16.msra.mxu0 0
    %545 = vmatprep.subr.bf16.mxu0 0
    %546 = vmatpush1.bf16.msra.mxu0 0
    %547 = vmatprep.subr.bf16.mxu0 0
    %548 = vmatpush1.bf16.msra.mxu0 0
    %549 = vmatprep.subr.bf16.mxu0 0
    %550 = vmatpush1.bf16.msra.mxu0 0
    %551 = vmatprep.subr.bf16.mxu0 0
    %552 = vmatpush1.bf16.msra.mxu0 0
    %553 = vmatprep.subr.bf16.mxu0 0
    %554 = vmatpush1.bf16.msra.mxu0 0
    %555 = vmatprep.subr.bf16.mxu0 0
    %556 = vmatpush1.bf16.msra.mxu0 0
    %557 = vmatprep.subr.bf16.mxu0 0
    %558 = vmatpush1.bf16.msra.mxu0 0
    %559 = vmatprep.mubr.bf16.mxu0 0
    %560 = vmatmul.mubr.bf16.gmra.mrb[0].mxu0 %v163
    %v561 = vpop.f32.mrb[0].mxu0
    %v562 = vadd.f32 %v225, %v561
    %v563 = vpop.f32.mrb[0].mxu0
    %v564 = vadd.f32 %v229, %v563
    %v565 = vpop.f32.mrb[0].mxu0
    %v566 = vadd.f32 %v225, %v565
    %v567 = vpop.f32.mrb[0].mxu0
    %v568 = vadd.f32 %v229, %v567
    %569 = vdwg.mxu0
    %570 = vmatprep.subr.bf16.mxu0 %v393
    %571 = vmatpush1.bf16.msra.mxu0 %v392
    %572 = vmatprep.subr.bf16.mxu0 %v399
    %573 = vmatpush1.bf16.msra.mxu0 %v398
    %574 = vmatprep.subr.bf16.mxu0 %v405
    %575 = vmatpush1.bf16.msra.mxu0 %v404
    %576 = vmatprep.subr.bf16.mxu0 %v411
    %577 = vmatpush1.bf16.msra.mxu0 %v410
    %578 = vmatprep.subr.bf16.mxu0 %v417
    %579 = vmatpush1.bf16.msra.mxu0 %v416
    %580 = vmatprep.subr.bf16.mxu0 %v423
    %581 = vmatpush1.bf16.msra.mxu0 %v422
    %582 = vmatprep.subr.bf16.mxu0 %v429
    %583 = vmatpush1.bf16.msra.mxu0 %v428
    %584 = vmatprep.subr.bf16.mxu0 %v435
    %585 = vmatpush1.bf16.msra.mxu0 %v434
    %586 = vmatprep.subr.bf16.mxu0 0
    %587 = vmatpush1.bf16.msra.mxu0 0
    %588 = vmatprep.subr.bf16.mxu0 0
    %589 = vmatpush1.bf16.msra.mxu0 0
    %590 = vmatprep.subr.bf16.mxu0 0
    %591 = vmatpush1.bf16.msra.mxu0 0
    %592 = vmatprep.subr.bf16.mxu0 0
    %593 = vmatpush1.bf16.msra.mxu0 0
    %594 = vmatprep.subr.bf16.mxu0 0
    %595 = vmatpush1.bf16.msra.mxu0 0
    %596 = vmatprep.subr.bf16.mxu0 0
    %597 = vmatpush1.bf16.msra.mxu0 0
    %598 = vmatprep.subr.bf16.mxu0 0
    %599 = vmatpush1.bf16.msra.mxu0 0
    %600 = vmatprep.subr.bf16.mxu0 0
    %601 = vmatpush1.bf16.msra.mxu0 0
    %602 = vmatprep.mubr.bf16.mxu0 0
    %603 = vmatmul.mubr.bf16.gmra.mrb[0].mxu0 %v163
    %v604 = vpop.f32.mrb[0].mxu0
    %v605 = vadd.f32 %v233, %v604
    %v606 = vpop.f32.mrb[0].mxu0
    %v607 = vadd.f32 %v237, %v606
    %v608 = vpop.f32.mrb[0].mxu0
    %v609 = vadd.f32 %v233, %v608
    %v610 = vpop.f32.mrb[0].mxu0
    %v611 = vadd.f32 %v237, %v610
    %612 = vdwg.mxu0
    %v613 = vpack.c.bf16 %v519, %v519
    %v614 = vpack.c.bf16 %v523, %v523
    %v615 = vpack.c.bf16 %v562, %v562
    %v616 = vpack.c.bf16 %v566, %v566
    %617 = vmatprep.subr.bf16.mxu0 0
    %618 = vmatpush1.bf16.xpose.msra.mxu0 %v615
    %619 = vmatprep.subr.bf16.mxu0 0
    %620 = vmatpush1.bf16.xpose.msra.mxu0 0
    %621 = vmatprep.subr.bf16.mxu0 0
    %622 = vmatpush1.bf16.xpose.msra.mxu0 0
    %623 = vmatprep.subr.bf16.mxu0 0
    %624 = vmatpush1.bf16.xpose.msra.mxu0 0
    %625 = vmatprep.subr.bf16.mxu0 0
    %626 = vmatpush1.bf16.xpose.msra.mxu0 0
    %627 = vmatprep.subr.bf16.mxu0 0
    %628 = vmatpush1.bf16.xpose.msra.mxu0 0
    %629 = vmatprep.subr.bf16.mxu0 0
    %630 = vmatpush1.bf16.xpose.msra.mxu0 0
    %631 = vmatprep.subr.bf16.mxu0 0
    %632 = vmatpush1.bf16.xpose.msra.mxu0 0
    %633 = vmatprep.subr.bf16.mxu0 0
    %634 = vmatpush1.bf16.xpose.msra.mxu0 0
    %635 = vmatprep.subr.bf16.mxu0 0
    %636 = vmatpush1.bf16.xpose.msra.mxu0 0
    %637 = vmatprep.subr.bf16.mxu0 0
    %638 = vmatpush1.bf16.xpose.msra.mxu0 0
    %639 = vmatprep.subr.bf16.mxu0 0
    %640 = vmatpush1.bf16.xpose.msra.mxu0 0
    %641 = vmatprep.subr.bf16.mxu0 0
    %642 = vmatpush1.bf16.xpose.msra.mxu0 0
    %643 = vmatprep.subr.bf16.mxu0 0
    %644 = vmatpush1.bf16.xpose.msra.mxu0 0
    %645 = vmatprep.subr.bf16.mxu0 0
    %646 = vmatpush1.bf16.xpose.msra.mxu0 0
    %647 = vmatprep.subr.bf16.mxu0 0
    %648 = vmatpush1.bf16.xpose.msra.mxu0 0
    %649 = vmatprep.mubr.bf16.mxu0 0
    %650 = vmatmul.mubr.bf16.gmra.mrb[0].mxu0 %v613
    %v651 = vpop.f32.mrb[0].mxu0
    %v652 = vadd.f32 0.0, %v651
    %v653 = vpop.f32.mrb[0].mxu0
    %v654 = vpop.f32.mrb[0].mxu0
    %v655 = vpop.f32.mrb[0].mxu0
    %656 = vdwg.mxu0
    %657 = vmatprep.subr.bf16.mxu0 0
    %658 = vmatpush1.bf16.xpose.msra.mxu0 %v616
    %659 = vmatprep.subr.bf16.mxu0 0
    %660 = vmatpush1.bf16.xpose.msra.mxu0 0
    %661 = vmatprep.subr.bf16.mxu0 0
    %662 = vmatpush1.bf16.xpose.msra.mxu0 0
    %663 = vmatprep.subr.bf16.mxu0 0
    %664 = vmatpush1.bf16.xpose.msra.mxu0 0
    %665 = vmatprep.subr.bf16.mxu0 0
    %666 = vmatpush1.bf16.xpose.msra.mxu0 0
    %667 = vmatprep.subr.bf16.mxu0 0
    %668 = vmatpush1.bf16.xpose.msra.mxu0 0
    %669 = vmatprep.subr.bf16.mxu0 0
    %670 = vmatpush1.bf16.xpose.msra.mxu0 0
    %671 = vmatprep.subr.bf16.mxu0 0
    %672 = vmatpush1.bf16.xpose.msra.mxu0 0
    %673 = vmatprep.subr.bf16.mxu0 0
    %674 = vmatpush1.bf16.xpose.msra.mxu0 0
    %675 = vmatprep.subr.bf16.mxu0 0
    %676 = vmatpush1.bf16.xpose.msra.mxu0 0
    %677 = vmatprep.subr.bf16.mxu0 0
    %678 = vmatpush1.bf16.xpose.msra.mxu0 0
    %679 = vmatprep.subr.bf16.mxu0 0
    %680 = vmatpush1.bf16.xpose.msra.mxu0 0
    %681 = vmatprep.subr.bf16.mxu0 0
    %682 = vmatpush1.bf16.xpose.msra.mxu0 0
    %683 = vmatprep.subr.bf16.mxu0 0
    %684 = vmatpush1.bf16.xpose.msra.mxu0 0
    %685 = vmatprep.subr.bf16.mxu0 0
    %686 = vmatpush1.bf16.xpose.msra.mxu0 0
    %687 = vmatprep.subr.bf16.mxu0 0
    %688 = vmatpush1.bf16.xpose.msra.mxu0 0
    %689 = vmatprep.mubr.bf16.mxu0 0
    %690 = vmatmul.mubr.bf16.gmra.mrb[0].mxu0 %v614
    %v691 = vpop.f32.mrb[0].mxu0
    %v692 = vadd.f32 0.0, %v691
    %v693 = vpop.f32.mrb[0].mxu0
    %v694 = vpop.f32.mrb[0].mxu0
    %v695 = vpop.f32.mrb[0].mxu0
    %696 = vdwg.mxu0
    %v697 = vmul.f32 %v652, 0.125
    %v698 = vmul.f32 %v692, 0.125
    %v701 = vlaneseq
    %v702 = vshrl.u32 %v701, 7
    %v703 = vsub.s32 0, %v702
    %v704 = vrot.slane %v118, %v703
    %v705 = vlaneseq
    %v706 = vshrl.u32 %v705, 7
    %v707 = vsub.s32 0, %v706
    %v708 = vrot.slane %v119, %v707
    %v711 = vadd.f32 %v697, %v704
    %v712 = vadd.f32 %v698, %v708
    %vm713 = vcmask 64512
    %v714 = vsel %vm713, %v711, -inf
    %715 = vmax.xlane.f32.xlu0 %v714
    %v716 = vpop.xlane.xlu0 %715
    %v717 = vsel %vm713, %v712, -inf
    %718 = vmax.xlane.f32.xlu0 %v717
    %v719 = vpop.xlane.xlu0 %718
    %v720 = vsub.f32 %v711, %v716
    %v721 = vsub.f32 %v712, %v719
    %v722 = vmul.f32 %v720, 1.442695
    %v723 = vpow.pop %v722
    %v724 = vmul.f32 %v721, 1.442695
    %v725 = vpow.pop %v724
    %v726 = vsel %vm713, %v723, 0.0
    %727 = vadd.xlane.f32.xlu0 %v726
    %v728 = vpop.xlane.xlu0 %727
    %v729 = vsel %vm713, %v725, 0.0
    %730 = vadd.xlane.f32.xlu0 %v729
    %v731 = vpop.xlane.xlu0 %730
    %v732 = vrcp.pop %v728
    %v733 = vmul.f32 %v723, %v732
    %v734 = vrcp.pop %v731
    %v735 = vmul.f32 %v725, %v734
    %v736 = vpack.c.bf16 %v733, %v733
    %v737 = vpack.c.bf16 %v735, %v735
    %v738 = vpack.c.bf16 %v605, %v605
    %v739 = vpack.c.bf16 %v609, %v609
    %v740 = vpack.c.bf16 %v521, %v521
    %v741 = vpack.c.bf16 %v525, %v525
    %v742 = vpack.c.bf16 %v564, %v564
    %v743 = vpack.c.bf16 %v568, %v568
    %744 = vmatprep.subr.bf16.mxu0 0
    %745 = vmatpush1.bf16.xpose.msra.mxu0 %v742
    %746 = vmatprep.subr.bf16.mxu0 0
    %747 = vmatpush1.bf16.xpose.msra.mxu0 0
    %748 = vmatprep.subr.bf16.mxu0 0
    %749 = vmatpush1.bf16.xpose.msra.mxu0 0
    %750 = vmatprep.subr.bf16.mxu0 0
    %751 = vmatpush1.bf16.xpose.msra.mxu0 0
    %752 = vmatprep.subr.bf16.mxu0 0
    %753 = vmatpush1.bf16.xpose.msra.mxu0 0
    %754 = vmatprep.subr.bf16.mxu0 0
    %755 = vmatpush1.bf16.xpose.msra.mxu0 0
    %756 = vmatprep.subr.bf16.mxu0 0
    %757 = vmatpush1.bf16.xpose.msra.mxu0 0
    %758 = vmatprep.subr.bf16.mxu0 0
    %759 = vmatpush1.bf16.xpose.msra.mxu0 0
    %760 = vmatprep.subr.bf16.mxu0 0
    %761 = vmatpush1.bf16.xpose.msra.mxu0 0
    %762 = vmatprep.subr.bf16.mxu0 0
    %763 = vmatpush1.bf16.xpose.msra.mxu0 0
    %764 = vmatprep.subr.bf16.mxu0 0
    %765 = vmatpush1.bf16.xpose.msra.mxu0 0
    %766 = vmatprep.subr.bf16.mxu0 0
    %767 = vmatpush1.bf16.xpose.msra.mxu0 0
    %768 = vmatprep.subr.bf16.mxu0 0
    %769 = vmatpush1.bf16.xpose.msra.mxu0 0
    %770 = vmatprep.subr.bf16.mxu0 0
    %771 = vmatpush1.bf16.xpose.msra.mxu0 0
    %772 = vmatprep.subr.bf16.mxu0 0
    %773 = vmatpush1.bf16.xpose.msra.mxu0 0
    %774 = vmatprep.subr.bf16.mxu0 0
    %775 = vmatpush1.bf16.xpose.msra.mxu0 0
    %776 = vmatprep.mubr.bf16.mxu0 0
    %777 = vmatmul.mubr.bf16.gmra.mrb[0].mxu0 %v740
    %v778 = vpop.f32.mrb[0].mxu0
    %v779 = vadd.f32 0.0, %v778
    %v780 = vpop.f32.mrb[0].mxu0
    %v781 = vpop.f32.mrb[0].mxu0
    %v782 = vpop.f32.mrb[0].mxu0
    %783 = vdwg.mxu0
    %784 = vmatprep.subr.bf16.mxu0 0
    %785 = vmatpush1.bf16.xpose.msra.mxu0 %v743
    %786 = vmatprep.subr.bf16.mxu0 0
    %787 = vmatpush1.bf16.xpose.msra.mxu0 0
    %788 = vmatprep.subr.bf16.mxu0 0
    %789 = vmatpush1.bf16.xpose.msra.mxu0 0
    %790 = vmatprep.subr.bf16.mxu0 0
    %791 = vmatpush1.bf16.xpose.msra.mxu0 0
    %792 = vmatprep.subr.bf16.mxu0 0
    %793 = vmatpush1.bf16.xpose.msra.mxu0 0
    %794 = vmatprep.subr.bf16.mxu0 0
    %795 = vmatpush1.bf16.xpose.msra.mxu0 0
    %796 = vmatprep.subr.bf16.mxu0 0
    %797 = vmatpush1.bf16.xpose.msra.mxu0 0
    %798 = vmatprep.subr.bf16.mxu0 0
    %799 = vmatpush1.bf16.xpose.msra.mxu0 0
    %800 = vmatprep.subr.bf16.mxu0 0
    %801 = vmatpush1.bf16.xpose.msra.mxu0 0
    %802 = vmatprep.subr.bf16.mxu0 0
    %803 = vmatpush1.bf16.xpose.msra.mxu0 0
    %804 = vmatprep.subr.bf16.mxu0 0
    %805 = vmatpush1.bf16.xpose.msra.mxu0 0
    %806 = vmatprep.subr.bf16.mxu0 0
    %807 = vmatpush1.bf16.xpose.msra.mxu0 0
    %808 = vmatprep.subr.bf16.mxu0 0
    %809 = vmatpush1.bf16.xpose.msra.mxu0 0
    %810 = vmatprep.subr.bf16.mxu0 0
    %811 = vmatpush1.bf16.xpose.msra.mxu0 0
    %812 = vmatprep.subr.bf16.mxu0 0
    %813 = vmatpush1.bf16.xpose.msra.mxu0 0
    %814 = vmatprep.subr.bf16.mxu0 0
    %815 = vmatpush1.bf16.xpose.msra.mxu0 0
    %816 = vmatprep.mubr.bf16.mxu0 0
    %817 = vmatmul.mubr.bf16.gmra.mrb[0].mxu0 %v741
    %v818 = vpop.f32.mrb[0].mxu0
    %v819 = vadd.f32 0.0, %v818
    %v820 = vpop.f32.mrb[0].mxu0
    %v821 = vpop.f32.mrb[0].mxu0
    %v822 = vpop.f32.mrb[0].mxu0
    %823 = vdwg.mxu0
    %v824 = vmul.f32 %v779, 0.125
    %v825 = vmul.f32 %v819, 0.125
    %v826 = vadd.f32 %v824, %v704
    %v827 = vadd.f32 %v825, %v708
    %v828 = vsel %vm713, %v826, -inf
    %829 = vmax.xlane.f32.xlu0 %v828
    %v830 = vpop.xlane.xlu0 %829
    %v831 = vsel %vm713, %v827, -inf
    %832 = vmax.xlane.f32.xlu0 %v831
    %v833 = vpop.xlane.xlu0 %832
    %v834 = vsub.f32 %v826, %v830
    %v835 = vsub.f32 %v827, %v833
    %v836 = vmul.f32 %v834, 1.442695
    %v837 = vpow.pop %v836
    %v838 = vmul.f32 %v835, 1.442695
    %v839 = vpow.pop %v838
    %v840 = vsel %vm713, %v837, 0.0
    %841 = vadd.xlane.f32.xlu0 %v840
    %v842 = vpop.xlane.xlu0 %841
    %v843 = vsel %vm713, %v839, 0.0
    %844 = vadd.xlane.f32.xlu0 %v843
    %v845 = vpop.xlane.xlu0 %844
    %v846 = vrcp.pop %v842
    %v847 = vmul.f32 %v837, %v846
    %v848 = vrcp.pop %v845
    %v849 = vmul.f32 %v839, %v848
    %v850 = vpack.c.bf16 %v847, %v847
    %v851 = vpack.c.bf16 %v849, %v849
    %v852 = vpack.c.bf16 %v607, %v607
    %v853 = vpack.c.bf16 %v611, %v611
    %v855 = vsel %vm713, %v850, 0
    %vm857 = vcmask 1043456
    %v859 = vsel %vm857, %v852, 0
    %861 = vmatprep.subr.bf16.mxu0 0
    %862 = vmatpush1.bf16.msra.mxu0 %v859
    %863 = vmatprep.subr.bf16.mxu0 0
    %864 = vmatpush1.bf16.msra.mxu0 0
    %865 = vmatprep.subr.bf16.mxu0 0
    %866 = vmatpush1.bf16.msra.mxu0 0
    %867 = vmatprep.subr.bf16.mxu0 0
    %868 = vmatpush1.bf16.msra.mxu0 0
    %869 = vmatprep.subr.bf16.mxu0 0
    %870 = vmatpush1.bf16.msra.mxu0 0
    %871 = vmatprep.subr.bf16.mxu0 0
    %872 = vmatpush1.bf16.msra.mxu0 0
    %873 = vmatprep.subr.bf16.mxu0 0
    %874 = vmatpush1.bf16.msra.mxu0 0
    %875 = vmatprep.subr.bf16.mxu0 0
    %876 = vmatpush1.bf16.msra.mxu0 0
    %877 = vmatprep.subr.bf16.mxu0 0
    %878 = vmatpush1.bf16.msra.mxu0 0
    %879 = vmatprep.subr.bf16.mxu0 0
    %880 = vmatpush1.bf16.msra.mxu0 0
    %881 = vmatprep.subr.bf16.mxu0 0
    %882 = vmatpush1.bf16.msra.mxu0 0
    %883 = vmatprep.subr.bf16.mxu0 0
    %884 = vmatpush1.bf16.msra.mxu0 0
    %885 = vmatprep.subr.bf16.mxu0 0
    %886 = vmatpush1.bf16.msra.mxu0 0
    %887 = vmatprep.subr.bf16.mxu0 0
    %888 = vmatpush1.bf16.msra.mxu0 0
    %889 = vmatprep.subr.bf16.mxu0 0
    %890 = vmatpush1.bf16.msra.mxu0 0
    %891 = vmatprep.subr.bf16.mxu0 0
    %892 = vmatpush1.bf16.msra.mxu0 0
    %893 = vmatprep.mubr.bf16.mxu0 0
    %894 = vmatmul.mubr.bf16.gmra.mrb[0].mxu0 %v855
    %v895 = vpop.f32.mrb[0].mxu0
    %v896 = vadd.f32 0.0, %v895
    %v897 = vpop.f32.mrb[0].mxu0
    %v898 = vpop.f32.mrb[0].mxu0
    %v899 = vpop.f32.mrb[0].mxu0
    %900 = vdwg.mxu0
    %v902 = vsel %vm713, %v851, 0
    %v905 = vsel %vm857, %v853, 0
    %907 = vmatprep.subr.bf16.mxu0 0
    %908 = vmatpush1.bf16.msra.mxu0 %v905
    %909 = vmatprep.subr.bf16.mxu0 0
    %910 = vmatpush1.bf16.msra.mxu0 0
    %911 = vmatprep.subr.bf16.mxu0 0
    %912 = vmatpush1.bf16.msra.mxu0 0
    %913 = vmatprep.subr.bf16.mxu0 0
    %914 = vmatpush1.bf16.msra.mxu0 0
    %915 = vmatprep.subr.bf16.mxu0 0
    %916 = vmatpush1.bf16.msra.mxu0 0
    %917 = vmatprep.subr.bf16.mxu0 0
    %918 = vmatpush1.bf16.msra.mxu0 0
    %919 = vmatprep.subr.bf16.mxu0 0
    %920 = vmatpush1.bf16.msra.mxu0 0
    %921 = vmatprep.subr.bf16.mxu0 0
    %922 = vmatpush1.bf16.msra.mxu0 0
    %923 = vmatprep.subr.bf16.mxu0 0
    %924 = vmatpush1.bf16.msra.mxu0 0
    %925 = vmatprep.subr.bf16.mxu0 0
    %926 = vmatpush1.bf16.msra.mxu0 0
    %927 = vmatprep.subr.bf16.mxu0 0
    %928 = vmatpush1.bf16.msra.mxu0 0
    %929 = vmatprep.subr.bf16.mxu0 0
    %930 = vmatpush1.bf16.msra.mxu0 0
    %931 = vmatprep.subr.bf16.mxu0 0
    %932 = vmatpush1.bf16.msra.mxu0 0
    %933 = vmatprep.subr.bf16.mxu0 0
    %934 = vmatpush1.bf16.msra.mxu0 0
    %935 = vmatprep.subr.bf16.mxu0 0
    %936 = vmatpush1.bf16.msra.mxu0 0
    %937 = vmatprep.subr.bf16.mxu0 0
    %938 = vmatpush1.bf16.msra.mxu0 0
    %939 = vmatprep.mubr.bf16.mxu0 0
    %940 = vmatmul.mubr.bf16.gmra.mrb[0].mxu0 %v902
    %v941 = vpop.f32.mrb[0].mxu0
    %v942 = vadd.f32 0.0, %v941
    %v943 = vpop.f32.mrb[0].mxu0
    %v944 = vpop.f32.mrb[0].mxu0
    %v945 = vpop.f32.mrb[0].mxu0
    %946 = vdwg.mxu0
    %v948 = vsel %vm713, %v736, 0
    %v951 = vsel %vm857, %v738, 0
    %953 = vmatprep.subr.bf16.mxu0 0
    %954 = vmatpush1.bf16.msra.mxu0 %v951
    %955 = vmatprep.subr.bf16.mxu0 0
    %956 = vmatpush1.bf16.msra.mxu0 0
    %957 = vmatprep.subr.bf16.mxu0 0
    %958 = vmatpush1.bf16.msra.mxu0 0
    %959 = vmatprep.subr.bf16.mxu0 0
    %960 = vmatpush1.bf16.msra.mxu0 0
    %961 = vmatprep.subr.bf16.mxu0 0
    %962 = vmatpush1.bf16.msra.mxu0 0
    %963 = vmatprep.subr.bf16.mxu0 0
    %964 = vmatpush1.bf16.msra.mxu0 0
    %965 = vmatprep.subr.bf16.mxu0 0
    %966 = vmatpush1.bf16.msra.mxu0 0
    %967 = vmatprep.subr.bf16.mxu0 0
    %968 = vmatpush1.bf16.msra.mxu0 0
    %969 = vmatprep.subr.bf16.mxu0 0
    %970 = vmatpush1.bf16.msra.mxu0 0
    %971 = vmatprep.subr.bf16.mxu0 0
    %972 = vmatpush1.bf16.msra.mxu0 0
    %973 = vmatprep.subr.bf16.mxu0 0
    %974 = vmatpush1.bf16.msra.mxu0 0
    %975 = vmatprep.subr.bf16.mxu0 0
    %976 = vmatpush1.bf16.msra.mxu0 0
    %977 = vmatprep.subr.bf16.mxu0 0
    %978 = vmatpush1.bf16.msra.mxu0 0
    %979 = vmatprep.subr.bf16.mxu0 0
    %980 = vmatpush1.bf16.msra.mxu0 0
    %981 = vmatprep.subr.bf16.mxu0 0
    %982 = vmatpush1.bf16.msra.mxu0 0
    %983 = vmatprep.subr.bf16.mxu0 0
    %984 = vmatpush1.bf16.msra.mxu0 0
    %985 = vmatprep.mubr.bf16.mxu0 0
    %986 = vmatmul.mubr.bf16.gmra.mrb[0].mxu0 %v948
    %v987 = vpop.f32.mrb[0].mxu0
    %v988 = vadd.f32 %v896, %v987
    %v989 = vpop.f32.mrb[0].mxu0
    %v990 = vpop.f32.mrb[0].mxu0
    %v991 = vpop.f32.mrb[0].mxu0
    %992 = vdwg.mxu0
    %v994 = vsel %vm713, %v737, 0
    %v997 = vsel %vm857, %v739, 0
    %999 = vmatprep.subr.bf16.mxu0 0
    %1000 = vmatpush1.bf16.msra.mxu0 %v997
    %1001 = vmatprep.subr.bf16.mxu0 0
    %1002 = vmatpush1.bf16.msra.mxu0 0
    %1003 = vmatprep.subr.bf16.mxu0 0
    %1004 = vmatpush1.bf16.msra.mxu0 0
    %1005 = vmatprep.subr.bf16.mxu0 0
    %1006 = vmatpush1.bf16.msra.mxu0 0
    %1007 = vmatprep.subr.bf16.mxu0 0
    %1008 = vmatpush1.bf16.msra.mxu0 0
    %1009 = vmatprep.subr.bf16.mxu0 0
    %1010 = vmatpush1.bf16.msra.mxu0 0
    %1011 = vmatprep.subr.bf16.mxu0 0
    %1012 = vmatpush1.bf16.msra.mxu0 0
    %1013 = vmatprep.subr.bf16.mxu0 0
    %1014 = vmatpush1.bf16.msra.mxu0 0
    %1015 = vmatprep.subr.bf16.mxu0 0
    %1016 = vmatpush1.bf16.msra.mxu0 0
    %1017 = vmatprep.subr.bf16.mxu0 0
    %1018 = vmatpush1.bf16.msra.mxu0 0
    %1019 = vmatprep.subr.bf16.mxu0 0
    %1020 = vmatpush1.bf16.msra.mxu0 0
    %1021 = vmatprep.subr.bf16.mxu0 0
    %1022 = vmatpush1.bf16.msra.mxu0 0
    %1023 = vmatprep.subr.bf16.mxu0 0
    %1024 = vmatpush1.bf16.msra.mxu0 0
    %1025 = vmatprep.subr.bf16.mxu0 0
    %1026 = vmatpush1.bf16.msra.mxu0 0
    %1027 = vmatprep.subr.bf16.mxu0 0
    %1028 = vmatpush1.bf16.msra.mxu0 0
    %1029 = vmatprep.subr.bf16.mxu0 0
    %1030 = vmatpush1.bf16.msra.mxu0 0
    %1031 = vmatprep.mubr.bf16.mxu0 0
    %1032 = vmatmul.mubr.bf16.gmra.mrb[0].mxu0 %v994
    %v1033 = vpop.f32.mrb[0].mxu0
    %v1034 = vadd.f32 %v942, %v1033
    %v1035 = vpop.f32.mrb[0].mxu0
    %v1036 = vpop.f32.mrb[0].mxu0
    %v1037 = vpop.f32.mrb[0].mxu0
    %1038 = vdwg.mxu0
    %v1039 = vpack.c.bf16 %v1034, %v988
    %v1040 = vld [vmem:[#allocation7] sm:$0xf]
    %v1041 = vld [vmem:[#allocation7 + $0x4] sm:$0xf]
    %v1042 = vld [vmem:[#allocation7 + $0x8] sm:$0xf]
    %v1043 = vld [vmem:[#allocation7 + $0xc] sm:$0xf]
    %v1044 = vld [vmem:[#allocation7 + $0x10] sm:$0xf]
    %v1045 = vld [vmem:[#allocation7 + $0x14] sm:$0xf]
    %v1046 = vld [vmem:[#allocation7 + $0x18] sm:$0xf]
    %v1047 = vld [vmem:[#allocation7 + $0x1c] sm:$0xf]
    %v1048 = vld [vmem:[#allocation7 + $0x20] sm:$0xf]
    %v1049 = vld [vmem:[#allocation7 + $0x24] sm:$0xf]
    %v1050 = vld [vmem:[#allocation7 + $0x28] sm:$0xf]
    %v1051 = vld [vmem:[#allocation7 + $0x2c] sm:$0xf]
    %v1052 = vld [vmem:[#allocation7 + $0x30] sm:$0xf]
    %v1053 = vld [vmem:[#allocation7 + $0x34] sm:$0xf]
    %v1054 = vld [vmem:[#allocation7 + $0x38] sm:$0xf]
    %v1055 = vld [vmem:[#allocation7 + $0x3c] sm:$0xf]
    %v1056 = vld [vmem:[%s7] sm:$0x1]
    %v1058 = vlaneseq
    %v1059 = vshrl.u32 %v1058, 7
    %v1060 = vsub.s32 0, %v1059
    %v1061 = vrot.slane %v1056, %v1060
    %v1079 = vunpack.c.l.b16 %v1040
    %v1080 = vunpack.c.l.b16 %v1041
    %v1081 = vunpack.c.l.b16 %v1042
    %v1082 = vunpack.c.l.b16 %v1043
    %v1083 = vunpack.c.l.b16 %v1044
    %v1084 = vunpack.c.l.b16 %v1045
    %v1085 = vunpack.c.l.b16 %v1046
    %v1086 = vunpack.c.l.b16 %v1047
    %v1087 = vunpack.c.l.b16 %v1048
    %v1088 = vunpack.c.l.b16 %v1049
    %v1089 = vunpack.c.l.b16 %v1050
    %v1090 = vunpack.c.l.b16 %v1051
    %v1091 = vunpack.c.l.b16 %v1052
    %v1092 = vunpack.c.l.b16 %v1053
    %v1093 = vunpack.c.l.b16 %v1054
    %v1094 = vunpack.c.l.b16 %v1055
    %v1095 = vpack.c.b16 %v1080, %v1079
    %v1096 = vpack.c.b16 %v1082, %v1081
    %v1097 = vpack.c.b16 %v1084, %v1083
    %v1098 = vpack.c.b16 %v1086, %v1085
    %v1099 = vpack.c.b16 %v1088, %v1087
    %v1100 = vpack.c.b16 %v1090, %v1089
    %v1101 = vpack.c.b16 %v1092, %v1091
    %v1102 = vpack.c.b16 %v1094, %v1093
    %1111 = vmatprep.subr.bf16.mxu0 0
    %1112 = vmatpush1.bf16.msra.mxu0 %v1095
    %1113 = vmatprep.subr.bf16.mxu0 0
    %1114 = vmatpush1.bf16.msra.mxu0 %v1096
    %1115 = vmatprep.subr.bf16.mxu0 0
    %1116 = vmatpush1.bf16.msra.mxu0 %v1097
    %1117 = vmatprep.subr.bf16.mxu0 0
    %1118 = vmatpush1.bf16.msra.mxu0 %v1098
    %1119 = vmatprep.subr.bf16.mxu0 0
    %1120 = vmatpush1.bf16.msra.mxu0 %v1099
    %1121 = vmatprep.subr.bf16.mxu0 0
    %1122 = vmatpush1.bf16.msra.mxu0 %v1100
    %1123 = vmatprep.subr.bf16.mxu0 0
    %1124 = vmatpush1.bf16.msra.mxu0 %v1101
    %1125 = vmatprep.subr.bf16.mxu0 0
    %1126 = vmatpush1.bf16.msra.mxu0 %v1102
    %1127 = vmatprep.subr.bf16.mxu0 0
    %1128 = vmatpush1.bf16.msra.mxu0 0
    %1129 = vmatprep.subr.bf16.mxu0 0
    %1130 = vmatpush1.bf16.msra.mxu0 0
    %1131 = vmatprep.subr.bf16.mxu0 0
    %1132 = vmatpush1.bf16.msra.mxu0 0
    %1133 = vmatprep.subr.bf16.mxu0 0
    %1134 = vmatpush1.bf16.msra.mxu0 0
    %1135 = vmatprep.subr.bf16.mxu0 0
    %1136 = vmatpush1.bf16.msra.mxu0 0
    %1137 = vmatprep.subr.bf16.mxu0 0
    %1138 = vmatpush1.bf16.msra.mxu0 0
    %1139 = vmatprep.subr.bf16.mxu0 0
    %1140 = vmatpush1.bf16.msra.mxu0 0
    %1141 = vmatprep.subr.bf16.mxu0 0
    %1142 = vmatpush1.bf16.msra.mxu0 0
    %1143 = vmatprep.mubr.bf16.mxu0 0
    %1144 = vmatmul.mubr.bf16.gmra.mrb[0].mxu0 %v1039
    %v1145 = vpop.f32.mrb[0].mxu0
    %v1146 = vadd.f32 %v1061, %v1145
    %v1147 = vpop.f32.mrb[0].mxu0
    %v1148 = vpop.f32.mrb[0].mxu0
    %v1149 = vadd.f32 %v1061, %v1148
    %v1150 = vpop.f32.mrb[0].mxu0
    %1151 = vdwg.mxu0
    %v1152 = vadd.f32 %v1146, %v161
    %v1153 = vadd.f32 %v1149, %v162
    %v1154 = vld [vmem:[%s8] sm:$0x1]
    %v1155 = vld [vmem:[%s9] sm:$0x1]
    %1156 = vadd.xlane.f32.xlu0 %v1152
    %v1157 = vpop.xlane.xlu0 %1156
    %1158 = vadd.xlane.f32.xlu0 %v1153
    %v1159 = vpop.xlane.xlu0 %1158
    %v1160 = vmul.f32 %v1157, %v128
    %v1161 = vmul.f32 %v1159, %v128
    %v1162 = vsub.f32 %v1152, %v1160
    %v1163 = vsub.f32 %v1153, %v1161
    %v1164 = vmul.f32 %v1162, %v1162
    %v1165 = vmul.f32 %v1163, %v1163
    %1166 = vadd.xlane.f32.xlu0 %v1164
    %v1167 = vpop.xlane.xlu0 %1166
    %1168 = vadd.xlane.f32.xlu0 %v1165
    %v1169 = vpop.xlane.xlu0 %1168
    %v1170 = vmul.f32 %v1167, %v128
    %v1171 = vmul.f32 %v1169, %v128
    %v1172 = vadd.f32 %v1170, 1e-12
    %v1173 = vadd.f32 %v1171, 1e-12
    %v1174 = vrsqrt.pop %v1172
    %v1175 = vrsqrt.pop %v1173
    %v1176 = vmul.f32 %v1162, %v1174
    %v1177 = vmul.f32 %v1163, %v1175
    %v1179 = vlaneseq
    %v1180 = vshrl.u32 %v1179, 7
    %v1181 = vsub.s32 0, %v1180
    %v1182 = vrot.slane %v1154, %v1181
    %v1184 = vmul.f32 %v1176, %v1182
    %v1185 = vmul.f32 %v1177, %v1182
    %v1187 = vlaneseq
    %v1188 = vshrl.u32 %v1187, 7
    %v1189 = vsub.s32 0, %v1188
    %v1190 = vrot.slane %v1155, %v1189
    %v1192 = vadd.f32 %v1184, %v1190
    %v1193 = vadd.f32 %v1185, %v1190
    %v1194 = vpack.c.bf16 %v1193, %v1192
    %v1195 = vld [vmem:[%s10] sm:$0xff]
    %v1196 = vld [vmem:[%s10 + $0x8] sm:$0xff]
    %v1197 = vld [vmem:[%s10 + $0x10] sm:$0xff]
    %v1198 = vld [vmem:[%s10 + $0x18] sm:$0xff]
    %v1199 = vld [vmem:[%s10 + $0x20] sm:$0xff]
    %v1200 = vld [vmem:[%s10 + $0x28] sm:$0xff]
    %v1201 = vld [vmem:[%s10 + $0x30] sm:$0xff]
    %v1202 = vld [vmem:[%s10 + $0x38] sm:$0xff]
    %v1203 = vld [vmem:[%s10 + $0x40] sm:$0xff]
    %v1204 = vld [vmem:[%s10 + $0x48] sm:$0xff]
    %v1205 = vld [vmem:[%s10 + $0x50] sm:$0xff]
    %v1206 = vld [vmem:[%s10 + $0x58] sm:$0xff]
    %v1207 = vld [vmem:[%s10 + $0x60] sm:$0xff]
    %v1208 = vld [vmem:[%s10 + $0x68] sm:$0xff]
    %v1209 = vld [vmem:[%s10 + $0x70] sm:$0xff]
    %v1210 = vld [vmem:[%s10 + $0x78] sm:$0xff]
    %v1211 = vld [vmem:[%s11] sm:$0x3]
    %v1213 = vlaneseq
    %v1214 = vshrl.u32 %v1213, 7
    %v1215 = vsub.s32 0, %v1214
    %v1216 = vrot.slane %v1211, %v1215
    %v1217 = vlaneseq
    %v1218 = vshrl.u32 %v1217, 7
    %v1219 = vsub.s32 1, %v1218
    %v1220 = vrot.slane %v1211, %v1219
    %v1239 = vunpack.c.l.b16 %v1195
    %v1240 = vunpack.c.h.b16 %v1195
    %v1241 = vunpack.c.l.b16 %v1196
    %v1242 = vunpack.c.h.b16 %v1196
    %v1243 = vunpack.c.l.b16 %v1197
    %v1244 = vunpack.c.h.b16 %v1197
    %v1245 = vunpack.c.l.b16 %v1198
    %v1246 = vunpack.c.h.b16 %v1198
    %v1247 = vunpack.c.l.b16 %v1199
    %v1248 = vunpack.c.h.b16 %v1199
    %v1249 = vunpack.c.l.b16 %v1200
    %v1250 = vunpack.c.h.b16 %v1200
    %v1251 = vunpack.c.l.b16 %v1201
    %v1252 = vunpack.c.h.b16 %v1201
    %v1253 = vunpack.c.l.b16 %v1202
    %v1254 = vunpack.c.h.b16 %v1202
    %v1255 = vunpack.c.l.b16 %v1203
    %v1256 = vunpack.c.h.b16 %v1203
    %v1257 = vunpack.c.l.b16 %v1204
    %v1258 = vunpack.c.h.b16 %v1204
    %v1259 = vunpack.c.l.b16 %v1205
    %v1260 = vunpack.c.h.b16 %v1205
    %v1261 = vunpack.c.l.b16 %v1206
    %v1262 = vunpack.c.h.b16 %v1206
    %v1263 = vunpack.c.l.b16 %v1207
    %v1264 = vunpack.c.h.b16 %v1207
    %v1265 = vunpack.c.l.b16 %v1208
    %v1266 = vunpack.c.h.b16 %v1208
    %v1267 = vunpack.c.l.b16 %v1209
    %v1268 = vunpack.c.h.b16 %v1209
    %v1269 = vunpack.c.l.b16 %v1210
    %v1270 = vunpack.c.h.b16 %v1210
    %v1271 = vpack.c.b16 %v1241, %v1239
    %v1272 = vpack.c.b16 %v1242, %v1240
    %v1273 = vpack.c.b16 %v1245, %v1243
    %v1274 = vpack.c.b16 %v1246, %v1244
    %v1275 = vpack.c.b16 %v1249, %v1247
    %v1276 = vpack.c.b16 %v1250, %v1248
    %v1277 = vpack.c.b16 %v1253, %v1251
    %v1278 = vpack.c.b16 %v1254, %v1252
    %v1279 = vpack.c.b16 %v1257, %v1255
    %v1280 = vpack.c.b16 %v1258, %v1256
    %v1281 = vpack.c.b16 %v1261, %v1259
    %v1282 = vpack.c.b16 %v1262, %v1260
    %v1283 = vpack.c.b16 %v1265, %v1263
    %v1284 = vpack.c.b16 %v1266, %v1264
    %v1285 = vpack.c.b16 %v1269, %v1267
    %v1286 = vpack.c.b16 %v1270, %v1268
    %1303 = vmatprep.subr.bf16.mxu0 %v1272
    %1304 = vmatpush1.bf16.msra.mxu0 %v1271
    %1305 = vmatprep.subr.bf16.mxu0 %v1274
    %1306 = vmatpush1.bf16.msra.mxu0 %v1273
    %1307 = vmatprep.subr.bf16.mxu0 %v1276
    %1308 = vmatpush1.bf16.msra.mxu0 %v1275
    %1309 = vmatprep.subr.bf16.mxu0 %v1278
    %1310 = vmatpush1.bf16.msra.mxu0 %v1277
    %1311 = vmatprep.subr.bf16.mxu0 %v1280
    %1312 = vmatpush1.bf16.msra.mxu0 %v1279
    %1313 = vmatprep.subr.bf16.mxu0 %v1282
    %1314 = vmatpush1.bf16.msra.mxu0 %v1281
    %1315 = vmatprep.subr.bf16.mxu0 %v1284
    %1316 = vmatpush1.bf16.msra.mxu0 %v1283
    %1317 = vmatprep.subr.bf16.mxu0 %v1286
    %1318 = vmatpush1.bf16.msra.mxu0 %v1285
    %1319 = vmatprep.subr.bf16.mxu0 0
    %1320 = vmatpush1.bf16.msra.mxu0 0
    %1321 = vmatprep.subr.bf16.mxu0 0
    %1322 = vmatpush1.bf16.msra.mxu0 0
    %1323 = vmatprep.subr.bf16.mxu0 0
    %1324 = vmatpush1.bf16.msra.mxu0 0
    %1325 = vmatprep.subr.bf16.mxu0 0
    %1326 = vmatpush1.bf16.msra.mxu0 0
    %1327 = vmatprep.subr.bf16.mxu0 0
    %1328 = vmatpush1.bf16.msra.mxu0 0
    %1329 = vmatprep.subr.bf16.mxu0 0
    %1330 = vmatpush1.bf16.msra.mxu0 0
    %1331 = vmatprep.subr.bf16.mxu0 0
    %1332 = vmatpush1.bf16.msra.mxu0 0
    %1333 = vmatprep.subr.bf16.mxu0 0
    %1334 = vmatpush1.bf16.msra.mxu0 0
    %1335 = vmatprep.mubr.bf16.mxu0 0
    %1336 = vmatmul.mubr.bf16.gmra.mrb[0].mxu0 %v1194
    %v1337 = vpop.f32.mrb[0].mxu0
    %v1338 = vadd.f32 %v1216, %v1337
    %v1339 = vpop.f32.mrb[0].mxu0
    %v1340 = vadd.f32 %v1220, %v1339
    %v1341 = vpop.f32.mrb[0].mxu0
    %v1342 = vadd.f32 %v1216, %v1341
    %v1343 = vpop.f32.mrb[0].mxu0
    %v1344 = vadd.f32 %v1220, %v1343
    %1345 = vdwg.mxu0
    %v1346 = vmul.f32 %v1338, 0.5
    %v1347 = vmul.f32 %v1340, 0.5
    %v1348 = vmul.f32 %v1342, 0.5
    %v1349 = vmul.f32 %v1344, 0.5
    %v1350 = vmul.f32 %v1338, 0.044715
    %v1351 = vmul.f32 %v1340, 0.044715
    %v1352 = vmul.f32 %v1342, 0.044715
    %v1353 = vmul.f32 %v1344, 0.044715
    %v1354 = vmul.f32 %v1350, %v1338
    %v1355 = vmul.f32 %v1351, %v1340
    %v1356 = vmul.f32 %v1352, %v1342
    %v1357 = vmul.f32 %v1353, %v1344
    %v1358 = vmul.f32 %v1354, %v1338
    %v1359 = vmul.f32 %v1355, %v1340
    %v1360 = vmul.f32 %v1356, %v1342
    %v1361 = vmul.f32 %v1357, %v1344
    %v1362 = vadd.f32 %v1338, %v1358
    %v1363 = vadd.f32 %v1340, %v1359
    %v1364 = vadd.f32 %v1342, %v1360
    %v1365 = vadd.f32 %v1344, %v1361
    %v1366 = vmul.f32 %v1362, 0.7978846
    %v1367 = vmul.f32 %v1363, 0.7978846
    %v1368 = vmul.f32 %v1364, 0.7978846
    %v1369 = vmul.f32 %v1365, 0.7978846
    %v1370 = vtanh.pop %v1366
    %v1371 = vtanh.pop %v1367
    %v1372 = vtanh.pop %v1368
    %v1373 = vtanh.pop %v1369
    %v1374 = vadd.f32 %v1370, 1.0
    %v1375 = vadd.f32 %v1371, 1.0
    %v1376 = vadd.f32 %v1372, 1.0
    %v1377 = vadd.f32 %v1373, 1.0
    %v1378 = vmul.f32 %v1346, %v1374
    %v1379 = vmul.f32 %v1347, %v1375
    %v1380 = vmul.f32 %v1348, %v1376
    %v1381 = vmul.f32 %v1349, %v1377
    %v1382 = vpack.c.bf16 %v1380, %v1378
    %v1383 = vpack.c.bf16 %v1381, %v1379
    %v1384 = vld [vmem:[#allocation9] sm:$0xf]
    %v1385 = vld [vmem:[#allocation9 + $0x4] sm:$0xf]
    %v1386 = vld [vmem:[#allocation9 + $0x8] sm:$0xf]
    %v1387 = vld [vmem:[#allocation9 + $0xc] sm:$0xf]
    %v1388 = vld [vmem:[#allocation9 + $0x10] sm:$0xf]
    %v1389 = vld [vmem:[#allocation9 + $0x14] sm:$0xf]
    %v1390 = vld [vmem:[#allocation9 + $0x18] sm:$0xf]
    %v1391 = vld [vmem:[#allocation9 + $0x1c] sm:$0xf]
    %v1392 = vld [vmem:[#allocation9 + $0x20] sm:$0xf]
    %v1393 = vld [vmem:[#allocation9 + $0x24] sm:$0xf]
    %v1394 = vld [vmem:[#allocation9 + $0x28] sm:$0xf]
    %v1395 = vld [vmem:[#allocation9 + $0x2c] sm:$0xf]
    %v1396 = vld [vmem:[#allocation9 + $0x30] sm:$0xf]
    %v1397 = vld [vmem:[#allocation9 + $0x34] sm:$0xf]
    %v1398 = vld [vmem:[#allocation9 + $0x38] sm:$0xf]
    %v1399 = vld [vmem:[#allocation9 + $0x3c] sm:$0xf]
    %v1400 = vld [vmem:[#allocation9 + $0x40] sm:$0xf]
    %v1401 = vld [vmem:[#allocation9 + $0x44] sm:$0xf]
    %v1402 = vld [vmem:[#allocation9 + $0x48] sm:$0xf]
    %v1403 = vld [vmem:[#allocation9 + $0x4c] sm:$0xf]
    %v1404 = vld [vmem:[#allocation9 + $0x50] sm:$0xf]
    %v1405 = vld [vmem:[#allocation9 + $0x54] sm:$0xf]
    %v1406 = vld [vmem:[#allocation9 + $0x58] sm:$0xf]
    %v1407 = vld [vmem:[#allocation9 + $0x5c] sm:$0xf]
    %v1408 = vld [vmem:[#allocation9 + $0x60] sm:$0xf]
    %v1409 = vld [vmem:[#allocation9 + $0x64] sm:$0xf]
    %v1410 = vld [vmem:[#allocation9 + $0x68] sm:$0xf]
    %v1411 = vld [vmem:[#allocation9 + $0x6c] sm:$0xf]
    %v1412 = vld [vmem:[#allocation9 + $0x70] sm:$0xf]
    %v1413 = vld [vmem:[#allocation9 + $0x74] sm:$0xf]
    %v1414 = vld [vmem:[#allocation9 + $0x78] sm:$0xf]
    %v1415 = vld [vmem:[#allocation9 + $0x7c] sm:$0xf]
    %v1416 = vld [vmem:[%s13] sm:$0x1]
    %v1418 = vlaneseq
    %v1419 = vshrl.u32 %v1418, 7
    %v1420 = vsub.s32 0, %v1419
    %v1421 = vrot.slane %v1416, %v1420
    %v1455 = vunpack.c.l.b16 %v1384
    %v1456 = vunpack.c.l.b16 %v1385
    %v1457 = vunpack.c.l.b16 %v1386
    %v1458 = vunpack.c.l.b16 %v1387
    %v1459 = vunpack.c.l.b16 %v1388
    %v1460 = vunpack.c.l.b16 %v1389
    %v1461 = vunpack.c.l.b16 %v1390
    %v1462 = vunpack.c.l.b16 %v1391
    %v1463 = vunpack.c.l.b16 %v1392
    %v1464 = vunpack.c.l.b16 %v1393
    %v1465 = vunpack.c.l.b16 %v1394
    %v1466 = vunpack.c.l.b16 %v1395
    %v1467 = vunpack.c.l.b16 %v1396
    %v1468 = vunpack.c.l.b16 %v1397
    %v1469 = vunpack.c.l.b16 %v1398
    %v1470 = vunpack.c.l.b16 %v1399
    %v1471 = vunpack.c.l.b16 %v1400
    %v1472 = vunpack.c.l.b16 %v1401
    %v1473 = vunpack.c.l.b16 %v1402
    %v1474 = vunpack.c.l.b16 %v1403
    %v1475 = vunpack.c.l.b16 %v1404
    %v1476 = vunpack.c.l.b16 %v1405
    %v1477 = vunpack.c.l.b16 %v1406
    %v1478 = vunpack.c.l.b16 %v1407
    %v1479 = vunpack.c.l.b16 %v1408
    %v1480 = vunpack.c.l.b16 %v1409
    %v1481 = vunpack.c.l.b16 %v1410
    %v1482 = vunpack.c.l.b16 %v1411
    %v1483 = vunpack.c.l.b16 %v1412
    %v1484 = vunpack.c.l.b16 %v1413
    %v1485 = vunpack.c.l.b16 %v1414
    %v1486 = vunpack.c.l.b16 %v1415
    %v1487 = vpack.c.b16 %v1456, %v1455
    %v1488 = vpack.c.b16 %v1458, %v1457
    %v1489 = vpack.c.b16 %v1460, %v1459
    %v1490 = vpack.c.b16 %v1462, %v1461
    %v1491 = vpack.c.b16 %v1464, %v1463
    %v1492 = vpack.c.b16 %v1466, %v1465
    %v1493 = vpack.c.b16 %v1468, %v1467
    %v1494 = vpack.c.b16 %v1470, %v1469
    %v1495 = vpack.c.b16 %v1472, %v1471
    %v1496 = vpack.c.b16 %v1474, %v1473
    %v1497 = vpack.c.b16 %v1476, %v1475
    %v1498 = vpack.c.b16 %v1478, %v1477
    %v1499 = vpack.c.b16 %v1480, %v1479
    %v1500 = vpack.c.b16 %v1482, %v1481
    %v1501 = vpack.c.b16 %v1484, %v1483
    %v1502 = vpack.c.b16 %v1486, %v1485
    %1519 = vmatprep.subr.bf16.mxu0 0
    %1520 = vmatpush1.bf16.msra.mxu0 %v1487
    %1521 = vmatprep.subr.bf16.mxu0 0
    %1522 = vmatpush1.bf16.msra.mxu0 %v1488
    %1523 = vmatprep.subr.bf16.mxu0 0
    %1524 = vmatpush1.bf16.msra.mxu0 %v1489
    %1525 = vmatprep.subr.bf16.mxu0 0
    %1526 = vmatpush1.bf16.msra.mxu0 %v1490
    %1527 = vmatprep.subr.bf16.mxu0 0
    %1528 = vmatpush1.bf16.msra.mxu0 %v1491
    %1529 = vmatprep.subr.bf16.mxu0 0
    %1530 = vmatpush1.bf16.msra.mxu0 %v1492
    %1531 = vmatprep.subr.bf16.mxu0 0
    %1532 = vmatpush1.bf16.msra.mxu0 %v1493
    %1533 = vmatprep.subr.bf16.mxu0 0
    %1534 = vmatpush1.bf16.msra.mxu0 %v1494
    %1535 = vmatprep.subr.bf16.mxu0 0
    %1536 = vmatpush1.bf16.msra.mxu0 %v1495
    %1537 = vmatprep.subr.bf16.mxu0 0
    %1538 = vmatpush1.bf16.msra.mxu0 %v1496
    %1539 = vmatprep.subr.bf16.mxu0 0
    %1540 = vmatpush1.bf16.msra.mxu0 %v1497
    %1541 = vmatprep.subr.bf16.mxu0 0
    %1542 = vmatpush1.bf16.msra.mxu0 %v1498
    %1543 = vmatprep.subr.bf16.mxu0 0
    %1544 = vmatpush1.bf16.msra.mxu0 %v1499
    %1545 = vmatprep.subr.bf16.mxu0 0
    %1546 = vmatpush1.bf16.msra.mxu0 %v1500
    %1547 = vmatprep.subr.bf16.mxu0 0
    %1548 = vmatpush1.bf16.msra.mxu0 %v1501
    %1549 = vmatprep.subr.bf16.mxu0 0
    %1550 = vmatpush1.bf16.msra.mxu0 %v1502
    %1551 = vmatprep.mubr.bf16.mxu0 %v1383
    %1552 = vmatmul.mubr.bf16.gmra.mrb[0].mxu0 %v1382
    %v1553 = vpop.f32.mrb[0].mxu0
    %v1554 = vadd.f32 %v1421, %v1553
    %v1555 = vpop.f32.mrb[0].mxu0
    %v1556 = vpop.f32.mrb[0].mxu0
    %v1557 = vadd.f32 %v1421, %v1556
    %v1558 = vpop.f32.mrb[0].mxu0
    %1559 = vdwg.mxu0
    %v1560 = vadd.f32 %v1554, %v1192
    %v1561 = vadd.f32 %v1557, %v1193
    %v1562 = vld [vmem:[%s14] sm:$0x1]
    %v1563 = vld [vmem:[%s15] sm:$0x1]
    %1564 = vadd.xlane.f32.xlu0 %v1560
    %v1565 = vpop.xlane.xlu0 %1564
    %1566 = vadd.xlane.f32.xlu0 %v1561
    %v1567 = vpop.xlane.xlu0 %1566
    %v1568 = vmul.f32 %v1565, %v128
    %v1569 = vmul.f32 %v1567, %v128
    %v1570 = vsub.f32 %v1560, %v1568
    %v1571 = vsub.f32 %v1561, %v1569
    %v1572 = vmul.f32 %v1570, %v1570
    %v1573 = vmul.f32 %v1571, %v1571
    %1574 = vadd.xlane.f32.xlu0 %v1572
    %v1575 = vpop.xlane.xlu0 %1574
    %1576 = vadd.xlane.f32.xlu0 %v1573
    %v1577 = vpop.xlane.xlu0 %1576
    %v1578 = vmul.f32 %v1575, %v128
    %v1579 = vmul.f32 %v1577, %v128
    %v1580 = vadd.f32 %v1578, 1e-12
    %v1581 = vadd.f32 %v1579, 1e-12
    %v1582 = vrsqrt.pop %v1580
    %v1583 = vrsqrt.pop %v1581
    %v1584 = vmul.f32 %v1570, %v1582
    %v1585 = vmul.f32 %v1571, %v1583
    %v1587 = vlaneseq
    %v1588 = vshrl.u32 %v1587, 7
    %v1589 = vsub.s32 0, %v1588
    %v1590 = vrot.slane %v1562, %v1589
    %v1592 = vmul.f32 %v1584, %v1590
    %v1593 = vmul.f32 %v1585, %v1590
    %v1595 = vlaneseq
    %v1596 = vshrl.u32 %v1595, 7
    %v1597 = vsub.s32 0, %v1596
    %v1598 = vrot.slane %v1563, %v1597
    %v1600 = vadd.f32 %v1592, %v1598
    %v1601 = vadd.f32 %v1593, %v1598
    %v1602 = vpack.c.bf16 %v1601, %v1600
    %s1603 = scalar_lea.vmem [#allocation6], 384
    %v1604 = vld [vmem:[%s1603] sm:$0xff]
    %v1605 = vld [vmem:[%s1603 + $0x8] sm:$0xff]
    %v1606 = vld [vmem:[%s1603 + $0x10] sm:$0xff]
    %v1607 = vld [vmem:[%s1603 + $0x18] sm:$0xff]
    %v1608 = vld [vmem:[%s1603 + $0x20] sm:$0xff]
    %v1609 = vld [vmem:[%s1603 + $0x28] sm:$0xff]
    %v1610 = vld [vmem:[%s1603 + $0x30] sm:$0xff]
    %v1611 = vld [vmem:[%s1603 + $0x38] sm:$0xff]
    %v1612 = vld [vmem:[%s1603 + $0x40] sm:$0xff]
    %v1613 = vld [vmem:[%s1603 + $0x48] sm:$0xff]
    %v1614 = vld [vmem:[%s1603 + $0x50] sm:$0xff]
    %v1615 = vld [vmem:[%s1603 + $0x58] sm:$0xff]
    %v1616 = vld [vmem:[%s1603 + $0x60] sm:$0xff]
    %v1617 = vld [vmem:[%s1603 + $0x68] sm:$0xff]
    %v1618 = vld [vmem:[%s1603 + $0x70] sm:$0xff]
    %v1619 = vld [vmem:[%s1603 + $0x78] sm:$0xff]
    %v1620 = vld [vmem:[%s1603 + $0x80] sm:$0xff]
    %v1621 = vld [vmem:[%s1603 + $0x88] sm:$0xff]
    %v1622 = vld [vmem:[%s1603 + $0x90] sm:$0xff]
    %v1623 = vld [vmem:[%s1603 + $0x98] sm:$0xff]
    %v1624 = vld [vmem:[%s1603 + $0xa0] sm:$0xff]
    %v1625 = vld [vmem:[%s1603 + $0xa8] sm:$0xff]
    %v1626 = vld [vmem:[%s1603 + $0xb0] sm:$0xff]
    %v1627 = vld [vmem:[%s1603 + $0xb8] sm:$0xff]
    %v1628 = vld [vmem:[%s1603 + $0xc0] sm:$0xff]
    %v1629 = vld [vmem:[%s1603 + $0xc8] sm:$0xff]
    %v1630 = vld [vmem:[%s1603 + $0xd0] sm:$0xff]
    %v1631 = vld [vmem:[%s1603 + $0xd8] sm:$0xff]
    %v1632 = vld [vmem:[%s1603 + $0xe0] sm:$0xff]
    %v1633 = vld [vmem:[%s1603 + $0xe8] sm:$0xff]
    %v1634 = vld [vmem:[%s1603 + $0xf0] sm:$0xff]
    %v1635 = vld [vmem:[%s1603 + $0xf8] sm:$0xff]
    %v1636 = vld [vmem:[%s1603 + $0x100] sm:$0xff]
    %v1637 = vld [vmem:[%s1603 + $0x108] sm:$0xff]
    %v1638 = vld [vmem:[%s1603 + $0x110] sm:$0xff]
    %v1639 = vld [vmem:[%s1603 + $0x118] sm:$0xff]
    %v1640 = vld [vmem:[%s1603 + $0x120] sm:$0xff]
    %v1641 = vld [vmem:[%s1603 + $0x128] sm:$0xff]
    %v1642 = vld [vmem:[%s1603 + $0x130] sm:$0xff]
    %v1643 = vld [vmem:[%s1603 + $0x138] sm:$0xff]
    %v1644 = vld [vmem:[%s1603 + $0x140] sm:$0xff]
    %v1645 = vld [vmem:[%s1603 + $0x148] sm:$0xff]
    %v1646 = vld [vmem:[%s1603 + $0x150] sm:$0xff]
    %v1647 = vld [vmem:[%s1603 + $0x158] sm:$0xff]
    %v1648 = vld [vmem:[%s1603 + $0x160] sm:$0xff]
    %v1649 = vld [vmem:[%s1603 + $0x168] sm:$0xff]
    %v1650 = vld [vmem:[%s1603 + $0x170] sm:$0xff]
    %v1651 = vld [vmem:[%s1603 + $0x178] sm:$0xff]
    %s1652 = scalar_lea.vmem %s5, 6
    %v1653 = vld [vmem:[%s1652] sm:$0x3f]
    %v1655 = vlaneseq
    %v1656 = vshrl.u32 %v1655, 7
    %v1657 = vsub.s32 0, %v1656
    %v1658 = vrot.slane %v1653, %v1657
    %v1659 = vlaneseq
    %v1660 = vshrl.u32 %v1659, 7
    %v1661 = vsub.s32 1, %v1660
    %v1662 = vrot.slane %v1653, %v1661
    %v1663 = vlaneseq
    %v1664 = vshrl.u32 %v1663, 7
    %v1665 = vsub.s32 2, %v1664
    %v1666 = vrot.slane %v1653, %v1665
    %v1667 = vlaneseq
    %v1668 = vshrl.u32 %v1667, 7
    %v1669 = vsub.s32 3, %v1668
    %v1670 = vrot.slane %v1653, %v1669
    %v1671 = vlaneseq
    %v1672 = vshrl.u32 %v1671, 7
    %v1673 = vsub.s32 4, %v1672
    %v1674 = vrot.slane %v1653, %v1673
    %v1675 = vlaneseq
    %v1676 = vshrl.u32 %v1675, 7
    %v1677 = vsub.s32 5, %v1676
    %v1678 = vrot.slane %v1653, %v1677
    %v1733 = vunpack.c.l.b16 %v1604
    %v1734 = vunpack.c.h.b16 %v1604
    %v1735 = vunpack.c.l.b16 %v1605
    %v1736 = vunpack.c.h.b16 %v1605
    %v1737 = vunpack.c.l.b16 %v1606
    %v1738 = vunpack.c.h.b16 %v1606
    %v1739 = vunpack.c.l.b16 %v1607
    %v1740 = vunpack.c.h.b16 %v1607
    %v1741 = vunpack.c.l.b16 %v1608
    %v1742 = vunpack.c.h.b16 %v1608
    %v1743 = vunpack.c.l.b16 %v1609
    %v1744 = vunpack.c.h.b16 %v1609
    %v1745 = vunpack.c.l.b16 %v1610
    %v1746 = vunpack.c.h.b16 %v1610
    %v1747 = vunpack.c.l.b16 %v1611
    %v1748 = vunpack.c.h.b16 %v1611
    %v1749 = vunpack.c.l.b16 %v1612
    %v1750 = vunpack.c.h.b16 %v1612
    %v1751 = vunpack.c.l.b16 %v1613
    %v1752 = vunpack.c.h.b16 %v1613
    %v1753 = vunpack.c.l.b16 %v1614
    %v1754 = vunpack.c.h.b16 %v1614
    %v1755 = vunpack.c.l.b16 %v1615
    %v1756 = vunpack.c.h.b16 %v1615
    %v1757 = vunpack.c.l.b16 %v1616
    %v1758 = vunpack.c.h.b16 %v1616
    %v1759 = vunpack.c.l.b16 %v1617
    %v1760 = vunpack.c.h.b16 %v1617
    %v1761 = vunpack.c.l.b16 %v1618
    %v1762 = vunpack.c.h.b16 %v1618
    %v1763 = vunpack.c.l.b16 %v1619
    %v1764 = vunpack.c.h.b16 %v1619
    %v1765 = vunpack.c.l.b16 %v1620
    %v1766 = vunpack.c.h.b16 %v1620
    %v1767 = vunpack.c.l.b16 %v1621
    %v1768 = vunpack.c.h.b16 %v1621
    %v1769 = vunpack.c.l.b16 %v1622
    %v1770 = vunpack.c.h.b16 %v1622
    %v1771 = vunpack.c.l.b16 %v1623
    %v1772 = vunpack.c.h.b16 %v1623
    %v1773 = vunpack.c.l.b16 %v1624
    %v1774 = vunpack.c.h.b16 %v1624
    %v1775 = vunpack.c.l.b16 %v1625
    %v1776 = vunpack.c.h.b16 %v1625
    %v1777 = vunpack.c.l.b16 %v1626
    %v1778 = vunpack.c.h.b16 %v1626
    %v1779 = vunpack.c.l.b16 %v1627
    %v1780 = vunpack.c.h.b16 %v1627
    %v1781 = vunpack.c.l.b16 %v1628
    %v1782 = vunpack.c.h.b16 %v1628
    %v1783 = vunpack.c.l.b16 %v1629
    %v1784 = vunpack.c.h.b16 %v1629
    %v1785 = vunpack.c.l.b16 %v1630
    %v1786 = vunpack.c.h.b16 %v1630
    %v1787 = vunpack.c.l.b16 %v1631
    %v1788 = vunpack.c.h.b16 %v1631
    %v1789 = vunpack.c.l.b16 %v1632
    %v1790 = vunpack.c.h.b16 %v1632
    %v1791 = vunpack.c.l.b16 %v1633
    %v1792 = vunpack.c.h.b16 %v1633
    %v1793 = vunpack.c.l.b16 %v1634
    %v1794 = vunpack.c.h.b16 %v1634
    %v1795 = vunpack.c.l.b16 %v1635
    %v1796 = vunpack.c.h.b16 %v1635
    %v1797 = vunpack.c.l.b16 %v1636
    %v1798 = vunpack.c.h.b16 %v1636
    %v1799 = vunpack.c.l.b16 %v1637
    %v1800 = vunpack.c.h.b16 %v1637
    %v1801 = vunpack.c.l.b16 %v1638
    %v1802 = vunpack.c.h.b16 %v1638
    %v1803 = vunpack.c.l.b16 %v1639
    %v1804 = vunpack.c.h.b16 %v1639
    %v1805 = vunpack.c.l.b16 %v1640
    %v1806 = vunpack.c.h.b16 %v1640
    %v1807 = vunpack.c.l.b16 %v1641
    %v1808 = vunpack.c.h.b16 %v1641
    %v1809 = vunpack.c.l.b16 %v1642
    %v1810 = vunpack.c.h.b16 %v1642
    %v1811 = vunpack.c.l.b16 %v1643
    %v1812 = vunpack.c.h.b16 %v1643
    %v1813 = vunpack.c.l.b16 %v1644
    %v1814 = vunpack.c.h.b16 %v1644
    %v1815 = vunpack.c.l.b16 %v1645
    %v1816 = vunpack.c.h.b16 %v1645
    %v1817 = vunpack.c.l.b16 %v1646
    %v1818 = vunpack.c.h.b16 %v1646
    %v1819 = vunpack.c.l.b16 %v1647
    %v1820 = vunpack.c.h.b16 %v1647
    %v1821 = vunpack.c.l.b16 %v1648
    %v1822 = vunpack.c.h.b16 %v1648
    %v1823 = vunpack.c.l.b16 %v1649
    %v1824 = vunpack.c.h.b16 %v1649
    %v1825 = vunpack.c.l.b16 %v1650
    %v1826 = vunpack.c.h.b16 %v1650
    %v1827 = vunpack.c.l.b16 %v1651
    %v1828 = vunpack.c.h.b16 %v1651
    %v1829 = vpack.c.b16 %v1739, %v1733
    %v1830 = vpack.c.b16 %v1740, %v1734
    %v1831 = vpack.c.b16 %v1741, %v1735
    %v1832 = vpack.c.b16 %v1742, %v1736
    %v1833 = vpack.c.b16 %v1743, %v1737
    %v1834 = vpack.c.b16 %v1744, %v1738
    %v1835 = vpack.c.b16 %v1751, %v1745
    %v1836 = vpack.c.b16 %v1752, %v1746
    %v1837 = vpack.c.b16 %v1753, %v1747
    %v1838 = vpack.c.b16 %v1754, %v1748
    %v1839 = vpack.c.b16 %v1755, %v1749
    %v1840 = vpack.c.b16 %v1756, %v1750
    %v1841 = vpack.c.b16 %v1763, %v1757
    %v1842 = vpack.c.b16 %v1764, %v1758
    %v1843 = vpack.c.b16 %v1765, %v1759
    %v1844 = vpack.c.b16 %v1766, %v1760
    %v1845 = vpack.c.b16 %v1767, %v1761
    %v1846 = vpack.c.b16 %v1768, %v1762
    %v1847 = vpack.c.b16 %v1775, %v1769
    %v1848 = vpack.c.b16 %v1776, %v1770
    %v1849 = vpack.c.b16 %v1777, %v1771
    %v1850 = vpack.c.b16 %v1778, %v1772
    %v1851 = vpack.c.b16 %v1779, %v1773
    %v1852 = vpack.c.b16 %v1780, %v1774
    %v1853 = vpack.c.b16 %v1787, %v1781
    %v1854 = vpack.c.b16 %v1788, %v1782
    %v1855 = vpack.c.b16 %v1789, %v1783
    %v1856 = vpack.c.b16 %v1790, %v1784
    %v1857 = vpack.c.b16 %v1791, %v1785
    %v1858 = vpack.c.b16 %v1792, %v1786
    %v1859 = vpack.c.b16 %v1799, %v1793
    %v1860 = vpack.c.b16 %v1800, %v1794
    %v1861 = vpack.c.b16 %v1801, %v1795
    %v1862 = vpack.c.b16 %v1802, %v1796
    %v1863 = vpack.c.b16 %v1803, %v1797
    %v1864 = vpack.c.b16 %v1804, %v1798
    %v1865 = vpack.c.b16 %v1811, %v1805
    %v1866 = vpack.c.b16 %v1812, %v1806
    %v1867 = vpack.c.b16 %v1813, %v1807
    %v1868 = vpack.c.b16 %v1814, %v1808
    %v1869 = vpack.c.b16 %v1815, %v1809
    %v1870 = vpack.c.b16 %v1816, %v1810
    %v1871 = vpack.c.b16 %v1823, %v1817
    %v1872 = vpack.c.b16 %v1824, %v1818
    %v1873 = vpack.c.b16 %v1825, %v1819
    %v1874 = vpack.c.b16 %v1826, %v1820
    %v1875 = vpack.c.b16 %v1827, %v1821
    %v1876 = vpack.c.b16 %v1828, %v1822
    %1925 = vmatprep.subr.bf16.mxu0 %v1830
    %1926 = vmatpush1.bf16.msra.mxu0 %v1829
    %1927 = vmatprep.subr.bf16.mxu0 %v1836
    %1928 = vmatpush1.bf16.msra.mxu0 %v1835
    %1929 = vmatprep.subr.bf16.mxu0 %v1842
    %1930 = vmatpush1.bf16.msra.mxu0 %v1841
    %1931 = vmatprep.subr.bf16.mxu0 %v1848
    %1932 = vmatpush1.bf16.msra.mxu0 %v1847
    %1933 = vmatprep.subr.bf16.mxu0 %v1854
    %1934 = vmatpush1.bf16.msra.mxu0 %v1853
    %1935 = vmatprep.subr.bf16.mxu0 %v1860
    %1936 = vmatpush1.bf16.msra.mxu0 %v1859
    %1937 = vmatprep.subr.bf16.mxu0 %v1866
    %1938 = vmatpush1.bf16.msra.mxu0 %v1865
    %1939 = vmatprep.subr.bf16.mxu0 %v1872
    %1940 = vmatpush1.bf16.msra.mxu0 %v1871
    %1941 = vmatprep.subr.bf16.mxu0 0
    %1942 = vmatpush1.bf16.msra.mxu0 0
    %1943 = vmatprep.subr.bf16.mxu0 0
    %1944 = vmatpush1.bf16.msra.mxu0 0
    %1945 = vmatprep.subr.bf16.mxu0 0
    %1946 = vmatpush1.bf16.msra.mxu0 0
    %1947 = vmatprep.subr.bf16.mxu0 0
    %1948 = vmatpush1.bf16.msra.mxu0 0
    %1949 = vmatprep.subr.bf16.mxu0 0
    %1950 = vmatpush1.bf16.msra.mxu0 0
    %1951 = vmatprep.subr.bf16.mxu0 0
    %1952 = vmatpush1.bf16.msra.mxu0 0
    %1953 = vmatprep.subr.bf16.mxu0 0
    %1954 = vmatpush1.bf16.msra.mxu0 0
    %1955 = vmatprep.subr.bf16.mxu0 0
    %1956 = vmatpush1.bf16.msra.mxu0 0
    %1957 = vmatprep.mubr.bf16.mxu0 0
    %1958 = vmatmul.mubr.bf16.gmra.mrb[0].mxu0 %v1602
    %v1959 = vpop.f32.mrb[0].mxu0
    %v1960 = vadd.f32 %v1658, %v1959
    %v1961 = vpop.f32.mrb[0].mxu0
    %v1962 = vadd.f32 %v1662, %v1961
    %v1963 = vpop.f32.mrb[0].mxu0
    %v1964 = vadd.f32 %v1658, %v1963
    %v1965 = vpop.f32.mrb[0].mxu0
    %v1966 = vadd.f32 %v1662, %v1965
    %1967 = vdwg.mxu0
    %1968 = vmatprep.subr.bf16.mxu0 %v1832
    %1969 = vmatpush1.bf16.msra.mxu0 %v1831
    %1970 = vmatprep.subr.bf16.mxu0 %v1838
    %1971 = vmatpush1.bf16.msra.mxu0 %v1837
    %1972 = vmatprep.subr.bf16.mxu0 %v1844
    %1973 = vmatpush1.bf16.msra.mxu0 %v1843
    %1974 = vmatprep.subr.bf16.mxu0 %v1850
    %1975 = vmatpush1.bf16.msra.mxu0 %v1849
    %1976 = vmatprep.subr.bf16.mxu0 %v1856
    %1977 = vmatpush1.bf16.msra.mxu0 %v1855
    %1978 = vmatprep.subr.bf16.mxu0 %v1862
    %1979 = vmatpush1.bf16.msra.mxu0 %v1861
    %1980 = vmatprep.subr.bf16.mxu0 %v1868
    %1981 = vmatpush1.bf16.msra.mxu0 %v1867
    %1982 = vmatprep.subr.bf16.mxu0 %v1874
    %1983 = vmatpush1.bf16.msra.mxu0 %v1873
    %1984 = vmatprep.subr.bf16.mxu0 0
    %1985 = vmatpush1.bf16.msra.mxu0 0
    %1986 = vmatprep.subr.bf16.mxu0 0
    %1987 = vmatpush1.bf16.msra.mxu0 0
    %1988 = vmatprep.subr.bf16.mxu0 0
    %1989 = vmatpush1.bf16.msra.mxu0 0
    %1990 = vmatprep.subr.bf16.mxu0 0
    %1991 = vmatpush1.bf16.msra.mxu0 0
    %1992 = vmatprep.subr.bf16.mxu0 0
    %1993 = vmatpush1.bf16.msra.mxu0 0
    %1994 = vmatprep.subr.bf16.mxu0 0
    %1995 = vmatpush1.bf16.msra.mxu0 0
    %1996 = vmatprep.subr.bf16.mxu0 0
    %1997 = vmatpush1.bf16.msra.mxu0 0
    %1998 = vmatprep.subr.bf16.mxu0 0
    %1999 = vmatpush1.bf16.msra.mxu0 0
    %2000 = vmatprep.mubr.bf16.mxu0 0
    %2001 = vmatmul.mubr.bf16.gmra.mrb[0].mxu0 %v1602
    %v2002 = vpop.f32.mrb[0].mxu0
    %v2003 = vadd.f32 %v1666, %v2002
    %v2004 = vpop.f32.mrb[0].mxu0
    %v2005 = vadd.f32 %v1670, %v2004
    %v2006 = vpop.f32.mrb[0].mxu0
    %v2007 = vadd.f32 %v1666, %v2006
    %v2008 = vpop.f32.mrb[0].mxu0
    %v2009 = vadd.f32 %v1670, %v2008
    %2010 = vdwg.mxu0
    %2011 = vmatprep.subr.bf16.mxu0 %v1834
    %2012 = vmatpush1.bf16.msra.mxu0 %v1833
    %2013 = vmatprep.subr.bf16.mxu0 %v1840
    %2014 = vmatpush1.bf16.msra.mxu0 %v1839
    %2015 = vmatprep.subr.bf16.mxu0 %v1846
    %2016 = vmatpush1.bf16.msra.mxu0 %v1845
    %2017 = vmatprep.subr.bf16.mxu0 %v1852
    %2018 = vmatpush1.bf16.msra.mxu0 %v1851
    %2019 = vmatprep.subr.bf16.mxu0 %v1858
    %2020 = vmatpush1.bf16.msra.mxu0 %v1857
    %2021 = vmatprep.subr.bf16.mxu0 %v1864
    %2022 = vmatpush1.bf16.msra.mxu0 %v1863
    %2023 = vmatprep.subr.bf16.mxu0 %v1870
    %2024 = vmatpush1.bf16.msra.mxu0 %v1869
    %2025 = vmatprep.subr.bf16.mxu0 %v1876
    %2026 = vmatpush1.bf16.msra.mxu0 %v1875
    %2027 = vmatprep.subr.bf16.mxu0 0
    %2028 = vmatpush1.bf16.msra.mxu0 0
    %2029 = vmatprep.subr.bf16.mxu0 0
    %2030 = vmatpush1.bf16.msra.mxu0 0
    %2031 = vmatprep.subr.bf16.mxu0 0
    %2032 = vmatpush1.bf16.msra.mxu0 0
    %2033 = vmatprep.subr.bf16.mxu0 0
    %2034 = vmatpush1.bf16.msra.mxu0 0
    %2035 = vmatprep.subr.bf16.mxu0 0
    %2036 = vmatpush1.bf16.msra.mxu0 0
    %2037 = vmatprep.subr.bf16.mxu0 0
    %2038 = vmatpush1.bf16.msra.mxu0 0
    %2039 = vmatprep.subr.bf16.mxu0 0
    %2040 = vmatpush1.bf16.msra.mxu0 0
    %2041 = vmatprep.subr.bf16.mxu0 0
    %2042 = vmatpush1.bf16.msra.mxu0 0
    %2043 = vmatprep.mubr.bf16.mxu0 0
    %2044 = vmatmul.mubr.bf16.gmra.mrb[0].mxu0 %v1602
    %v2045 = vpop.f32.mrb[0].mxu0
    %v2046 = vadd.f32 %v1674, %v2045
    %v2047 = vpop.f32.mrb[0].mxu0
    %v2048 = vadd.f32 %v1678, %v2047
    %v2049 = vpop.f32.mrb[0].mxu0
    %v2050 = vadd.f32 %v1674, %v2049
    %v2051 = vpop.f32.mrb[0].mxu0
    %v2052 = vadd.f32 %v1678, %v2051
    %2053 = vdwg.mxu0
    %v2054 = vpack.c.bf16 %v1960, %v1960
    %v2055 = vpack.c.bf16 %v1964, %v1964
    %v2056 = vpack.c.bf16 %v2003, %v2003
    %v2057 = vpack.c.bf16 %v2007, %v2007
    %2058 = vmatprep.subr.bf16.mxu0 0
    %2059 = vmatpush1.bf16.xpose.msra.mxu0 %v2056
    %2060 = vmatprep.subr.bf16.mxu0 0
    %2061 = vmatpush1.bf16.xpose.msra.mxu0 0
    %2062 = vmatprep.subr.bf16.mxu0 0
    %2063 = vmatpush1.bf16.xpose.msra.mxu0 0
    %2064 = vmatprep.subr.bf16.mxu0 0
    %2065 = vmatpush1.bf16.xpose.msra.mxu0 0
    %2066 = vmatprep.subr.bf16.mxu0 0
    %2067 = vmatpush1.bf16.xpose.msra.mxu0 0
    %2068 = vmatprep.subr.bf16.mxu0 0
    %2069 = vmatpush1.bf16.xpose.msra.mxu0 0
    %2070 = vmatprep.subr.bf16.mxu0 0
    %2071 = vmatpush1.bf16.xpose.msra.mxu0 0
    %2072 = vmatprep.subr.bf16.mxu0 0
    %2073 = vmatpush1.bf16.xpose.msra.mxu0 0
    %2074 = vmatprep.subr.bf16.mxu0 0
    %2075 = vmatpush1.bf16.xpose.msra.mxu0 0
    %2076 = vmatprep.subr.bf16.mxu0 0
    %2077 = vmatpush1.bf16.xpose.msra.mxu0 0
    %2078 = vmatprep.subr.bf16.mxu0 0
    %2079 = vmatpush1.bf16.xpose.msra.mxu0 0
    %2080 = vmatprep.subr.bf16.mxu0 0
    %2081 = vmatpush1.bf16.xpose.msra.mxu0 0
    %2082 = vmatprep.subr.bf16.mxu0 0
    %2083 = vmatpush1.bf16.xpose.msra.mxu0 0
    %2084 = vmatprep.subr.bf16.mxu0 0
    %2085 = vmatpush1.bf16.xpose.msra.mxu0 0
    %2086 = vmatprep.subr.bf16.mxu0 0
    %2087 = vmatpush1.bf16.xpose.msra.mxu0 0
    %2088 = vmatprep.subr.bf16.mxu0 0
    %2089 = vmatpush1.bf16.xpose.msra.mxu0 0
    %2090 = vmatprep.mubr.bf16.mxu0 0
    %2091 = vmatmul.mubr.bf16.gmra.mrb[0].mxu0 %v2054
    %v2092 = vpop.f32.mrb[0].mxu0
    %v2093 = vadd.f32 0.0, %v2092
    %v2094 = vpop.f32.mrb[0].mxu0
    %v2095 = vpop.f32.mrb[0].mxu0
    %v2096 = vpop.f32.mrb[0].mxu0
    %2097 = vdwg.mxu0
    %2098 = vmatprep.subr.bf16.mxu0 0
    %2099 = vmatpush1.bf16.xpose.msra.mxu0 %v2057
    %2100 = vmatprep.subr.bf16.mxu0 0
    %2101 = vmatpush1.bf16.xpose.msra.mxu0 0
    %2102 = vmatprep.subr.bf16.mxu0 0
    %2103 = vmatpush1.bf16.xpose.msra.mxu0 0
    %2104 = vmatprep.subr.bf16.mxu0 0
    %2105 = vmatpush1.bf16.xpose.msra.mxu0 0
    %2106 = vmatprep.subr.bf16.mxu0 0
    %2107 = vmatpush1.bf16.xpose.msra.mxu0 0
    %2108 = vmatprep.subr.bf16.mxu0 0
    %2109 = vmatpush1.bf16.xpose.msra.mxu0 0
    %2110 = vmatprep.subr.bf16.mxu0 0
    %2111 = vmatpush1.bf16.xpose.msra.mxu0 0
    %2112 = vmatprep.subr.bf16.mxu0 0
    %2113 = vmatpush1.bf16.xpose.msra.mxu0 0
    %2114 = vmatprep.subr.bf16.mxu0 0
    %2115 = vmatpush1.bf16.xpose.msra.mxu0 0
    %2116 = vmatprep.subr.bf16.mxu0 0
    %2117 = vmatpush1.bf16.xpose.msra.mxu0 0
    %2118 = vmatprep.subr.bf16.mxu0 0
    %2119 = vmatpush1.bf16.xpose.msra.mxu0 0
    %2120 = vmatprep.subr.bf16.mxu0 0
    %2121 = vmatpush1.bf16.xpose.msra.mxu0 0
    %2122 = vmatprep.subr.bf16.mxu0 0
    %2123 = vmatpush1.bf16.xpose.msra.mxu0 0
    %2124 = vmatprep.subr.bf16.mxu0 0
    %2125 = vmatpush1.bf16.xpose.msra.mxu0 0
    %2126 = vmatprep.subr.bf16.mxu0 0
    %2127 = vmatpush1.bf16.xpose.msra.mxu0 0
    %2128 = vmatprep.subr.bf16.mxu0 0
    %2129 = vmatpush1.bf16.xpose.msra.mxu0 0
    %2130 = vmatprep.mubr.bf16.mxu0 0
    %2131 = vmatmul.mubr.bf16.gmra.mrb[0].mxu0 %v2055
    %v2132 = vpop.f32.mrb[0].mxu0
    %v2133 = vadd.f32 0.0, %v2132
    %v2134 = vpop.f32.mrb[0].mxu0
    %v2135 = vpop.f32.mrb[0].mxu0
    %v2136 = vpop.f32.mrb[0].mxu0
    %2137 = vdwg.mxu0
    %v2138 = vmul.f32 %v2093, 0.125
    %v2139 = vmul.f32 %v2133, 0.125
    %v2140 = vadd.f32 %v2138, %v704
    %v2141 = vadd.f32 %v2139, %v708
    %v2142 = vsel %vm713, %v2140, -inf
    %2143 = vmax.xlane.f32.xlu0 %v2142
    %v2144 = vpop.xlane.xlu0 %2143
    %v2145 = vsel %vm713, %v2141, -inf
    %2146 = vmax.xlane.f32.xlu0 %v2145
    %v2147 = vpop.xlane.xlu0 %2146
    %v2148 = vsub.f32 %v2140, %v2144
    %v2149 = vsub.f32 %v2141, %v2147
    %v2150 = vmul.f32 %v2148, 1.442695
    %v2151 = vpow.pop %v2150
    %v2152 = vmul.f32 %v2149, 1.442695
    %v2153 = vpow.pop %v2152
    %v2154 = vsel %vm713, %v2151, 0.0
    %2155 = vadd.xlane.f32.xlu0 %v2154
    %v2156 = vpop.xlane.xlu0 %2155
    %v2157 = vsel %vm713, %v2153, 0.0
    %2158 = vadd.xlane.f32.xlu0 %v2157
    %v2159 = vpop.xlane.xlu0 %2158
    %v2160 = vrcp.pop %v2156
    %v2161 = vmul.f32 %v2151, %v2160
    %v2162 = vrcp.pop %v2159
    %v2163 = vmul.f32 %v2153, %v2162
    %v2164 = vpack.c.bf16 %v2161, %v2161
    %v2165 = vpack.c.bf16 %v2163, %v2163
    %v2166 = vpack.c.bf16 %v2046, %v2046
    %v2167 = vpack.c.bf16 %v2050, %v2050
    %v2168 = vpack.c.bf16 %v1962, %v1962
    %v2169 = vpack.c.bf16 %v1966, %v1966
    %v2170 = vpack.c.bf16 %v2005, %v2005
    %v2171 = vpack.c.bf16 %v2009, %v2009
    %2172 = vmatprep.subr.bf16.mxu0 0
    %2173 = vmatpush1.bf16.xpose.msra.mxu0 %v2170
    %2174 = vmatprep.subr.bf16.mxu0 0
    %2175 = vmatpush1.bf16.xpose.msra.mxu0 0
    %2176 = vmatprep.subr.bf16.mxu0 0
    %2177 = vmatpush1.bf16.xpose.msra.mxu0 0
    %2178 = vmatprep.subr.bf16.mxu0 0
    %2179 = vmatpush1.bf16.xpose.msra.mxu0 0
    %2180 = vmatprep.subr.bf16.mxu0 0
    %2181 = vmatpush1.bf16.xpose.msra.mxu0 0
    %2182 = vmatprep.subr.bf16.mxu0 0
    %2183 = vmatpush1.bf16.xpose.msra.mxu0 0
    %2184 = vmatprep.subr.bf16.mxu0 0
    %2185 = vmatpush1.bf16.xpose.msra.mxu0 0
    %2186 = vmatprep.subr.bf16.mxu0 0
    %2187 = vmatpush1.bf16.xpose.msra.mxu0 0
    %2188 = vmatprep.subr.bf16.mxu0 0
    %2189 = vmatpush1.bf16.xpose.msra.mxu0 0
    %2190 = vmatprep.subr.bf16.mxu0 0
    %2191 = vmatpush1.bf16.xpose.msra.mxu0 0
    %2192 = vmatprep.subr.bf16.mxu0 0
    %2193 = vmatpush1.bf16.xpose.msra.mxu0 0
    %2194 = vmatprep.subr.bf16.mxu0 0
    %2195 = vmatpush1.bf16.xpose.msra.mxu0 0
    %2196 = vmatprep.subr.bf16.mxu0 0
    %2197 = vmatpush1.bf16.xpose.msra.mxu0 0
    %2198 = vmatprep.subr.bf16.mxu0 0
    %2199 = vmatpush1.bf16.xpose.msra.mxu0 0
    %2200 = vmatprep.subr.bf16.mxu0 0
    %2201 = vmatpush1.bf16.xpose.msra.mxu0 0
    %2202 = vmatprep.subr.bf16.mxu0 0
    %2203 = vmatpush1.bf16.xpose.msra.mxu0 0
    %2204 = vmatprep.mubr.bf16.mxu0 0
    %2205 = vmatmul.mubr.bf16.gmra.mrb[0].mxu0 %v2168
    %v2206 = vpop.f32.mrb[0].mxu0
    %v2207 = vadd.f32 0.0, %v2206
    %v2208 = vpop.f32.mrb[0].mxu0
    %v2209 = vpop.f32.mrb[0].mxu0
    %v2210 = vpop.f32.mrb[0].mxu0
    %2211 = vdwg.mxu0
    %2212 = vmatprep.subr.bf16.mxu0 0
    %2213 = vmatpush1.bf16.xpose.msra.mxu0 %v2171
    %2214 = vmatprep.subr.bf16.mxu0 0
    %2215 = vmatpush1.bf16.xpose.msra.mxu0 0
    %2216 = vmatprep.subr.bf16.mxu0 0
    %2217 = vmatpush1.bf16.xpose.msra.mxu0 0
    %2218 = vmatprep.subr.bf16.mxu0 0
    %2219 = vmatpush1.bf16.xpose.msra.mxu0 0
    %2220 = vmatprep.subr.bf16.mxu0 0
    %2221 = vmatpush1.bf16.xpose.msra.mxu0 0
    %2222 = vmatprep.subr.bf16.mxu0 0
    %2223 = vmatpush1.bf16.xpose.msra.mxu0 0
    %2224 = vmatprep.subr.bf16.mxu0 0
    %2225 = vmatpush1.bf16.xpose.msra.mxu0 0
    %2226 = vmatprep.subr.bf16.mxu0 0
    %2227 = vmatpush1.bf16.xpose.msra.mxu0 0
    %2228 = vmatprep.subr.bf16.mxu0 0
    %2229 = vmatpush1.bf16.xpose.msra.mxu0 0
    %2230 = vmatprep.subr.bf16.mxu0 0
    %2231 = vmatpush1.bf16.xpose.msra.mxu0 0
    %2232 = vmatprep.subr.bf16.mxu0 0
    %2233 = vmatpush1.bf16.xpose.msra.mxu0 0
    %2234 = vmatprep.subr.bf16.mxu0 0
    %2235 = vmatpush1.bf16.xpose.msra.mxu0 0
    %2236 = vmatprep.subr.bf16.mxu0 0
    %2237 = vmatpush1.bf16.xpose.msra.mxu0 0
    %2238 = vmatprep.subr.bf16.mxu0 0
    %2239 = vmatpush1.bf16.xpose.msra.mxu0 0
    %2240 = vmatprep.subr.bf16.mxu0 0
    %2241 = vmatpush1.bf16.xpose.msra.mxu0 0
    %2242 = vmatprep.subr.bf16.mxu0 0
    %2243 = vmatpush1.bf16.xpose.msra.mxu0 0
    %2244 = vmatprep.mubr.bf16.mxu0 0
    %2245 = vmatmul.mubr.bf16.gmra.mrb[0].mxu0 %v2169
    %v2246 = vpop.f32.mrb[0].mxu0
    %v2247 = vadd.f32 0.0, %v2246
    %v2248 = vpop.f32.mrb[0].mxu0
    %v2249 = vpop.f32.mrb[0].mxu0
    %v2250 = vpop.f32.mrb[0].mxu0
    %2251 = vdwg.mxu0
    %v2252 = vmul.f32 %v2207, 0.125
    %v2253 = vmul.f32 %v2247, 0.125
    %v2254 = vadd.f32 %v2252, %v704
    %v2255 = vadd.f32 %v2253, %v708
    %v2256 = vsel %vm713, %v2254, -inf
    %2257 = vmax.xlane.f32.xlu0 %v2256
    %v2258 = vpop.xlane.xlu0 %2257
    %v2259 = vsel %vm713, %v2255, -inf
    %2260 = vmax.xlane.f32.xlu0 %v2259
    %v2261 = vpop.xlane.xlu0 %2260
    %v2262 = vsub.f32 %v2254, %v2258
    %v2263 = vsub.f32 %v2255, %v2261
    %v2264 = vmul.f32 %v2262, 1.442695
    %v2265 = vpow.pop %v2264
    %v2266 = vmul.f32 %v2263, 1.442695
    %v2267 = vpow.pop %v2266
    %v2268 = vsel %vm713, %v2265, 0.0
    %2269 = vadd.xlane.f32.xlu0 %v2268
    %v2270 = vpop.xlane.xlu0 %2269
    %v2271 = vsel %vm713, %v2267, 0.0
    %2272 = vadd.xlane.f32.xlu0 %v2271
    %v2273 = vpop.xlane.xlu0 %2272
    %v2274 = vrcp.pop %v2270
    %v2275 = vmul.f32 %v2265, %v2274
    %v2276 = vrcp.pop %v2273
    %v2277 = vmul.f32 %v2267, %v2276
    %v2278 = vpack.c.bf16 %v2275, %v2275
    %v2279 = vpack.c.bf16 %v2277, %v2277
    %v2280 = vpack.c.bf16 %v2048, %v2048
    %v2281 = vpack.c.bf16 %v2052, %v2052
    %v2283 = vsel %vm713, %v2278, 0
    %v2286 = vsel %vm857, %v2280, 0
    %2288 = vmatprep.subr.bf16.mxu0 0
    %2289 = vmatpush1.bf16.msra.mxu0 %v2286
    %2290 = vmatprep.subr.bf16.mxu0 0
    %2291 = vmatpush1.bf16.msra.mxu0 0
    %2292 = vmatprep.subr.bf16.mxu0 0
    %2293 = vmatpush1.bf16.msra.mxu0 0
    %2294 = vmatprep.subr.bf16.mxu0 0
    %2295 = vmatpush1.bf16.msra.mxu0 0
    %2296 = vmatprep.subr.bf16.mxu0 0
    %2297 = vmatpush1.bf16.msra.mxu0 0
    %2298 = vmatprep.subr.bf16.mxu0 0
    %2299 = vmatpush1.bf16.msra.mxu0 0
    %2300 = vmatprep.subr.bf16.mxu0 0
    %2301 = vmatpush1.bf16.msra.mxu0 0
    %2302 = vmatprep.subr.bf16.mxu0 0
    %2303 = vmatpush1.bf16.msra.mxu0 0
    %2304 = vmatprep.subr.bf16.mxu0 0
    %2305 = vmatpush1.bf16.msra.mxu0 0
    %2306 = vmatprep.subr.bf16.mxu0 0
    %2307 = vmatpush1.bf16.msra.mxu0 0
    %2308 = vmatprep.subr.bf16.mxu0 0
    %2309 = vmatpush1.bf16.msra.mxu0 0
    %2310 = vmatprep.subr.bf16.mxu0 0
    %2311 = vmatpush1.bf16.msra.mxu0 0
    %2312 = vmatprep.subr.bf16.mxu0 0
    %2313 = vmatpush1.bf16.msra.mxu0 0
    %2314 = vmatprep.subr.bf16.mxu0 0
    %2315 = vmatpush1.bf16.msra.mxu0 0
    %2316 = vmatprep.subr.bf16.mxu0 0
    %2317 = vmatpush1.bf16.msra.mxu0 0
    %2318 = vmatprep.subr.bf16.mxu0 0
    %2319 = vmatpush1.bf16.msra.mxu0 0
    %2320 = vmatprep.mubr.bf16.mxu0 0
    %2321 = vmatmul.mubr.bf16.gmra.mrb[0].mxu0 %v2283
    %v2322 = vpop.f32.mrb[0].mxu0
    %v2323 = vadd.f32 0.0, %v2322
    %v2324 = vpop.f32.mrb[0].mxu0
    %v2325 = vpop.f32.mrb[0].mxu0
    %v2326 = vpop.f32.mrb[0].mxu0
    %2327 = vdwg.mxu0
    %v2329 = vsel %vm713, %v2279, 0
    %v2332 = vsel %vm857, %v2281, 0
    %2334 = vmatprep.subr.bf16.mxu0 0
    %2335 = vmatpush1.bf16.msra.mxu0 %v2332
    %2336 = vmatprep.subr.bf16.mxu0 0
    %2337 = vmatpush1.bf16.msra.mxu0 0
    %2338 = vmatprep.subr.bf16.mxu0 0
    %2339 = vmatpush1.bf16.msra.mxu0 0
    %2340 = vmatprep.subr.bf16.mxu0 0
    %2341 = vmatpush1.bf16.msra.mxu0 0
    %2342 = vmatprep.subr.bf16.mxu0 0
    %2343 = vmatpush1.bf16.msra.mxu0 0
    %2344 = vmatprep.subr.bf16.mxu0 0
    %2345 = vmatpush1.bf16.msra.mxu0 0
    %2346 = vmatprep.subr.bf16.mxu0 0
    %2347 = vmatpush1.bf16.msra.mxu0 0
    %2348 = vmatprep.subr.bf16.mxu0 0
    %2349 = vmatpush1.bf16.msra.mxu0 0
    %2350 = vmatprep.subr.bf16.mxu0 0
    %2351 = vmatpush1.bf16.msra.mxu0 0
    %2352 = vmatprep.subr.bf16.mxu0 0
    %2353 = vmatpush1.bf16.msra.mxu0 0
    %2354 = vmatprep.subr.bf16.mxu0 0
    %2355 = vmatpush1.bf16.msra.mxu0 0
    %2356 = vmatprep.subr.bf16.mxu0 0
    %2357 = vmatpush1.bf16.msra.mxu0 0
    %2358 = vmatprep.subr.bf16.mxu0 0
    %2359 = vmatpush1.bf16.msra.mxu0 0
    %2360 = vmatprep.subr.bf16.mxu0 0
    %2361 = vmatpush1.bf16.msra.mxu0 0
    %2362 = vmatprep.subr.bf16.mxu0 0
    %2363 = vmatpush1.bf16.msra.mxu0 0
    %2364 = vmatprep.subr.bf16.mxu0 0
    %2365 = vmatpush1.bf16.msra.mxu0 0
    %2366 = vmatprep.mubr.bf16.mxu0 0
    %2367 = vmatmul.mubr.bf16.gmra.mrb[0].mxu0 %v2329
    %v2368 = vpop.f32.mrb[0].mxu0
    %v2369 = vadd.f32 0.0, %v2368
    %v2370 = vpop.f32.mrb[0].mxu0
    %v2371 = vpop.f32.mrb[0].mxu0
    %v2372 = vpop.f32.mrb[0].mxu0
    %2373 = vdwg.mxu0
    %v2375 = vsel %vm713, %v2164, 0
    %v2378 = vsel %vm857, %v2166, 0
    %2380 = vmatprep.subr.bf16.mxu0 0
    %2381 = vmatpush1.bf16.msra.mxu0 %v2378
    %2382 = vmatprep.subr.bf16.mxu0 0
    %2383 = vmatpush1.bf16.msra.mxu0 0
    %2384 = vmatprep.subr.bf16.mxu0 0
    %2385 = vmatpush1.bf16.msra.mxu0 0
    %2386 = vmatprep.subr.bf16.mxu0 0
    %2387 = vmatpush1.bf16.msra.mxu0 0
    %2388 = vmatprep.subr.bf16.mxu0 0
    %2389 = vmatpush1.bf16.msra.mxu0 0
    %2390 = vmatprep.subr.bf16.mxu0 0
    %2391 = vmatpush1.bf16.msra.mxu0 0
    %2392 = vmatprep.subr.bf16.mxu0 0
    %2393 = vmatpush1.bf16.msra.mxu0 0
    %2394 = vmatprep.subr.bf16.mxu0 0
    %2395 = vmatpush1.bf16.msra.mxu0 0
    %2396 = vmatprep.subr.bf16.mxu0 0
    %2397 = vmatpush1.bf16.msra.mxu0 0
    %2398 = vmatprep.subr.bf16.mxu0 0
    %2399 = vmatpush1.bf16.msra.mxu0 0
    %2400 = vmatprep.subr.bf16.mxu0 0
    %2401 = vmatpush1.bf16.msra.mxu0 0
    %2402 = vmatprep.subr.bf16.mxu0 0
    %2403 = vmatpush1.bf16.msra.mxu0 0
    %2404 = vmatprep.subr.bf16.mxu0 0
    %2405 = vmatpush1.bf16.msra.mxu0 0
    %2406 = vmatprep.subr.bf16.mxu0 0
    %2407 = vmatpush1.bf16.msra.mxu0 0
    %2408 = vmatprep.subr.bf16.mxu0 0
    %2409 = vmatpush1.bf16.msra.mxu0 0
    %2410 = vmatprep.subr.bf16.mxu0 0
    %2411 = vmatpush1.bf16.msra.mxu0 0
    %2412 = vmatprep.mubr.bf16.mxu0 0
    %2413 = vmatmul.mubr.bf16.gmra.mrb[0].mxu0 %v2375
    %v2414 = vpop.f32.mrb[0].mxu0
    %v2415 = vadd.f32 %v2323, %v2414
    %v2416 = vpop.f32.mrb[0].mxu0
    %v2417 = vpop.f32.mrb[0].mxu0
    %v2418 = vpop.f32.mrb[0].mxu0
    %2419 = vdwg.mxu0
    %v2421 = vsel %vm713, %v2165, 0
    %v2424 = vsel %vm857, %v2167, 0
    %2426 = vmatprep.subr.bf16.mxu0 0
    %2427 = vmatpush1.bf16.msra.mxu0 %v2424
    %2428 = vmatprep.subr.bf16.mxu0 0
    %2429 = vmatpush1.bf16.msra.mxu0 0
    %2430 = vmatprep.subr.bf16.mxu0 0
    %2431 = vmatpush1.bf16.msra.mxu0 0
    %2432 = vmatprep.subr.bf16.mxu0 0
    %2433 = vmatpush1.bf16.msra.mxu0 0
    %2434 = vmatprep.subr.bf16.mxu0 0
    %2435 = vmatpush1.bf16.msra.mxu0 0
    %2436 = vmatprep.subr.bf16.mxu0 0
    %2437 = vmatpush1.bf16.msra.mxu0 0
    %2438 = vmatprep.subr.bf16.mxu0 0
    %2439 = vmatpush1.bf16.msra.mxu0 0
    %2440 = vmatprep.subr.bf16.mxu0 0
    %2441 = vmatpush1.bf16.msra.mxu0 0
    %2442 = vmatprep.subr.bf16.mxu0 0
    %2443 = vmatpush1.bf16.msra.mxu0 0
    %2444 = vmatprep.subr.bf16.mxu0 0
    %2445 = vmatpush1.bf16.msra.mxu0 0
    %2446 = vmatprep.subr.bf16.mxu0 0
    %2447 = vmatpush1.bf16.msra.mxu0 0
    %2448 = vmatprep.subr.bf16.mxu0 0
    %2449 = vmatpush1.bf16.msra.mxu0 0
    %2450 = vmatprep.subr.bf16.mxu0 0
    %2451 = vmatpush1.bf16.msra.mxu0 0
    %2452 = vmatprep.subr.bf16.mxu0 0
    %2453 = vmatpush1.bf16.msra.mxu0 0
    %2454 = vmatprep.subr.bf16.mxu0 0
    %2455 = vmatpush1.bf16.msra.mxu0 0
    %2456 = vmatprep.subr.bf16.mxu0 0
    %2457 = vmatpush1.bf16.msra.mxu0 0
    %2458 = vmatprep.mubr.bf16.mxu0 0
    %2459 = vmatmul.mubr.bf16.gmra.mrb[0].mxu0 %v2421
    %v2460 = vpop.f32.mrb[0].mxu0
    %v2461 = vadd.f32 %v2369, %v2460
    %v2462 = vpop.f32.mrb[0].mxu0
    %v2463 = vpop.f32.mrb[0].mxu0
    %v2464 = vpop.f32.mrb[0].mxu0
    %2465 = vdwg.mxu0
    %v2466 = vpack.c.bf16 %v2461, %v2415
    %s2467 = scalar_lea.vmem [#allocation7], 64
    %v2468 = vld [vmem:[%s2467] sm:$0xf]
    %v2469 = vld [vmem:[%s2467 + $0x4] sm:$0xf]
    %v2470 = vld [vmem:[%s2467 + $0x8] sm:$0xf]
    %v2471 = vld [vmem:[%s2467 + $0xc] sm:$0xf]
    %v2472 = vld [vmem:[%s2467 + $0x10] sm:$0xf]
    %v2473 = vld [vmem:[%s2467 + $0x14] sm:$0xf]
    %v2474 = vld [vmem:[%s2467 + $0x18] sm:$0xf]
    %v2475 = vld [vmem:[%s2467 + $0x1c] sm:$0xf]
    %v2476 = vld [vmem:[%s2467 + $0x20] sm:$0xf]
    %v2477 = vld [vmem:[%s2467 + $0x24] sm:$0xf]
    %v2478 = vld [vmem:[%s2467 + $0x28] sm:$0xf]
    %v2479 = vld [vmem:[%s2467 + $0x2c] sm:$0xf]
    %v2480 = vld [vmem:[%s2467 + $0x30] sm:$0xf]
    %v2481 = vld [vmem:[%s2467 + $0x34] sm:$0xf]
    %v2482 = vld [vmem:[%s2467 + $0x38] sm:$0xf]
    %v2483 = vld [vmem:[%s2467 + $0x3c] sm:$0xf]
    %s2484 = scalar_lea.vmem %s7, 1
    %v2485 = vld [vmem:[%s2484] sm:$0x1]
    %v2487 = vlaneseq
    %v2488 = vshrl.u32 %v2487, 7
    %v2489 = vsub.s32 0, %v2488
    %v2490 = vrot.slane %v2485, %v2489
    %v2508 = vunpack.c.l.b16 %v2468
    %v2509 = vunpack.c.l.b16 %v2469
    %v2510 = vunpack.c.l.b16 %v2470
    %v2511 = vunpack.c.l.b16 %v2471
    %v2512 = vunpack.c.l.b16 %v2472
    %v2513 = vunpack.c.l.b16 %v2473
    %v2514 = vunpack.c.l.b16 %v2474
    %v2515 = vunpack.c.l.b16 %v2475
    %v2516 = vunpack.c.l.b16 %v2476
    %v2517 = vunpack.c.l.b16 %v2477
    %v2518 = vunpack.c.l.b16 %v2478
    %v2519 = vunpack.c.l.b16 %v2479
    %v2520 = vunpack.c.l.b16 %v2480
    %v2521 = vunpack.c.l.b16 %v2481
    %v2522 = vunpack.c.l.b16 %v2482
    %v2523 = vunpack.c.l.b16 %v2483
    %v2524 = vpack.c.b16 %v2509, %v2508
    %v2525 = vpack.c.b16 %v2511, %v2510
    %v2526 = vpack.c.b16 %v2513, %v2512
    %v2527 = vpack.c.b16 %v2515, %v2514
    %v2528 = vpack.c.b16 %v2517, %v2516
    %v2529 = vpack.c.b16 %v2519, %v2518
    %v2530 = vpack.c.b16 %v2521, %v2520
    %v2531 = vpack.c.b16 %v2523, %v2522
    %2540 = vmatprep.subr.bf16.mxu0 0
    %2541 = vmatpush1.bf16.msra.mxu0 %v2524
    %2542 = vmatprep.subr.bf16.mxu0 0
    %2543 = vmatpush1.bf16.msra.mxu0 %v2525
    %2544 = vmatprep.subr.bf16.mxu0 0
    %2545 = vmatpush1.bf16.msra.mxu0 %v2526
    %2546 = vmatprep.subr.bf16.mxu0 0
    %2547 = vmatpush1.bf16.msra.mxu0 %v2527
    %2548 = vmatprep.subr.bf16.mxu0 0
    %2549 = vmatpush1.bf16.msra.mxu0 %v2528
    %2550 = vmatprep.subr.bf16.mxu0 0
    %2551 = vmatpush1.bf16.msra.mxu0 %v2529
    %2552 = vmatprep.subr.bf16.mxu0 0
    %2553 = vmatpush1.bf16.msra.mxu0 %v2530
    %2554 = vmatprep.subr.bf16.mxu0 0
    %2555 = vmatpush1.bf16.msra.mxu0 %v2531
    %2556 = vmatprep.subr.bf16.mxu0 0
    %2557 = vmatpush1.bf16.msra.mxu0 0
    %2558 = vmatprep.subr.bf16.mxu0 0
    %2559 = vmatpush1.bf16.msra.mxu0 0
    %2560 = vmatprep.subr.bf16.mxu0 0
    %2561 = vmatpush1.bf16.msra.mxu0 0
    %2562 = vmatprep.subr.bf16.mxu0 0
    %2563 = vmatpush1.bf16.msra.mxu0 0
    %2564 = vmatprep.subr.bf16.mxu0 0
    %2565 = vmatpush1.bf16.msra.mxu0 0
    %2566 = vmatprep.subr.bf16.mxu0 0
    %2567 = vmatpush1.bf16.msra.mxu0 0
    %2568 = vmatprep.subr.bf16.mxu0 0
    %2569 = vmatpush1.bf16.msra.mxu0 0
    %2570 = vmatprep.subr.bf16.mxu0 0
    %2571 = vmatpush1.bf16.msra.mxu0 0
    %2572 = vmatprep.mubr.bf16.mxu0 0
    %2573 = vmatmul.mubr.bf16.gmra.mrb[0].mxu0 %v2466
    %v2574 = vpop.f32.mrb[0].mxu0
    %v2575 = vadd.f32 %v2490, %v2574
    %v2576 = vpop.f32.mrb[0].mxu0
    %v2577 = vpop.f32.mrb[0].mxu0
    %v2578 = vadd.f32 %v2490, %v2577
    %v2579 = vpop.f32.mrb[0].mxu0
    %2580 = vdwg.mxu0
    %v2581 = vadd.f32 %v2575, %v1600
    %v2582 = vadd.f32 %v2578, %v1601
    %s2583 = scalar_lea.vmem %s8, 1
    %v2584 = vld [vmem:[%s2583] sm:$0x1]
    %s2585 = scalar_lea.vmem %s9, 1
    %v2586 = vld [vmem:[%s2585] sm:$0x1]
    %2587 = vadd.xlane.f32.xlu0 %v2581
    %v2588 = vpop.xlane.xlu0 %2587
    %2589 = vadd.xlane.f32.xlu0 %v2582
    %v2590 = vpop.xlane.xlu0 %2589
    %v2591 = vmul.f32 %v2588, %v128
    %v2592 = vmul.f32 %v2590, %v128
    %v2593 = vsub.f32 %v2581, %v2591
    %v2594 = vsub.f32 %v2582, %v2592
    %v2595 = vmul.f32 %v2593, %v2593
    %v2596 = vmul.f32 %v2594, %v2594
    %2597 = vadd.xlane.f32.xlu0 %v2595
    %v2598 = vpop.xlane.xlu0 %2597
    %2599 = vadd.xlane.f32.xlu0 %v2596
    %v2600 = vpop.xlane.xlu0 %2599
    %v2601 = vmul.f32 %v2598, %v128
    %v2602 = vmul.f32 %v2600, %v128
    %v2603 = vadd.f32 %v2601, 1e-12
    %v2604 = vadd.f32 %v2602, 1e-12
    %v2605 = vrsqrt.pop %v2603
    %v2606 = vrsqrt.pop %v2604
    %v2607 = vmul.f32 %v2593, %v2605
    %v2608 = vmul.f32 %v2594, %v2606
    %v2610 = vlaneseq
    %v2611 = vshrl.u32 %v2610, 7
    %v2612 = vsub.s32 0, %v2611
    %v2613 = vrot.slane %v2584, %v2612
    %v2615 = vmul.f32 %v2607, %v2613
    %v2616 = vmul.f32 %v2608, %v2613
    %v2618 = vlaneseq
    %v2619 = vshrl.u32 %v2618, 7
    %v2620 = vsub.s32 0, %v2619
    %v2621 = vrot.slane %v2586, %v2620
    %v2623 = vadd.f32 %v2615, %v2621
    %v2624 = vadd.f32 %v2616, %v2621
    %v2625 = vpack.c.bf16 %v2624, %v2623
    %s2626 = scalar_lea.vmem %s10, 128
    %v2627 = vld [vmem:[%s2626] sm:$0xff]
    %v2628 = vld [vmem:[%s2626 + $0x8] sm:$0xff]
    %v2629 = vld [vmem:[%s2626 + $0x10] sm:$0xff]
    %v2630 = vld [vmem:[%s2626 + $0x18] sm:$0xff]
    %v2631 = vld [vmem:[%s2626 + $0x20] sm:$0xff]
    %v2632 = vld [vmem:[%s2626 + $0x28] sm:$0xff]
    %v2633 = vld [vmem:[%s2626 + $0x30] sm:$0xff]
    %v2634 = vld [vmem:[%s2626 + $0x38] sm:$0xff]
    %v2635 = vld [vmem:[%s2626 + $0x40] sm:$0xff]
    %v2636 = vld [vmem:[%s2626 + $0x48] sm:$0xff]
    %v2637 = vld [vmem:[%s2626 + $0x50] sm:$0xff]
    %v2638 = vld [vmem:[%s2626 + $0x58] sm:$0xff]
    %v2639 = vld [vmem:[%s2626 + $0x60] sm:$0xff]
    %v2640 = vld [vmem:[%s2626 + $0x68] sm:$0xff]
    %v2641 = vld [vmem:[%s2626 + $0x70] sm:$0xff]
    %v2642 = vld [vmem:[%s2626 + $0x78] sm:$0xff]
    %s2643 = scalar_lea.vmem %s11, 2
    %v2644 = vld [vmem:[%s2643] sm:$0x3]
    %v2646 = vlaneseq
    %v2647 = vshrl.u32 %v2646, 7
    %v2648 = vsub.s32 0, %v2647
    %v2649 = vrot.slane %v2644, %v2648
    %v2650 = vlaneseq
    %v2651 = vshrl.u32 %v2650, 7
    %v2652 = vsub.s32 1, %v2651
    %v2653 = vrot.slane %v2644, %v2652
    %v2672 = vunpack.c.l.b16 %v2627
    %v2673 = vunpack.c.h.b16 %v2627
    %v2674 = vunpack.c.l.b16 %v2628
    %v2675 = vunpack.c.h.b16 %v2628
    %v2676 = vunpack.c.l.b16 %v2629
    %v2677 = vunpack.c.h.b16 %v2629
    %v2678 = vunpack.c.l.b16 %v2630
    %v2679 = vunpack.c.h.b16 %v2630
    %v2680 = vunpack.c.l.b16 %v2631
    %v2681 = vunpack.c.h.b16 %v2631
    %v2682 = vunpack.c.l.b16 %v2632
    %v2683 = vunpack.c.h.b16 %v2632
    %v2684 = vunpack.c.l.b16 %v2633
    %v2685 = vunpack.c.h.b16 %v2633
    %v2686 = vunpack.c.l.b16 %v2634
    %v2687 = vunpack.c.h.b16 %v2634
    %v2688 = vunpack.c.l.b16 %v2635
    %v2689 = vunpack.c.h.b16 %v2635
    %v2690 = vunpack.c.l.b16 %v2636
    %v2691 = vunpack.c.h.b16 %v2636
    %v2692 = vunpack.c.l.b16 %v2637
    %v2693 = vunpack.c.h.b16 %v2637
    %v2694 = vunpack.c.l.b16 %v2638
    %v2695 = vunpack.c.h.b16 %v2638
    %v2696 = vunpack.c.l.b16 %v2639
    %v2697 = vunpack.c.h.b16 %v2639
    %v2698 = vunpack.c.l.b16 %v2640
    %v2699 = vunpack.c.h.b16 %v2640
    %v2700 = vunpack.c.l.b16 %v2641
    %v2701 = vunpack.c.h.b16 %v2641
    %v2702 = vunpack.c.l.b16 %v2642
    %v2703 = vunpack.c.h.b16 %v2642
    %v2704 = vpack.c.b16 %v2674, %v2672
    %v2705 = vpack.c.b16 %v2675, %v2673
    %v2706 = vpack.c.b16 %v2678, %v2676
    %v2707 = vpack.c.b16 %v2679, %v2677
    %v2708 = vpack.c.b16 %v2682, %v2680
    %v2709 = vpack.c.b16 %v2683, %v2681
    %v2710 = vpack.c.b16 %v2686, %v2684
    %v2711 = vpack.c.b16 %v2687, %v2685
    %v2712 = vpack.c.b16 %v2690, %v2688
    %v2713 = vpack.c.b16 %v2691, %v2689
    %v2714 = vpack.c.b16 %v2694, %v2692
    %v2715 = vpack.c.b16 %v2695, %v2693
    %v2716 = vpack.c.b16 %v2698, %v2696
    %v2717 = vpack.c.b16 %v2699, %v2697
    %v2718 = vpack.c.b16 %v2702, %v2700
    %v2719 = vpack.c.b16 %v2703, %v2701
    %2736 = vmatprep.subr.bf16.mxu0 %v2705
    %2737 = vmatpush1.bf16.msra.mxu0 %v2704
    %2738 = vmatprep.subr.bf16.mxu0 %v2707
    %2739 = vmatpush1.bf16.msra.mxu0 %v2706
    %2740 = vmatprep.subr.bf16.mxu0 %v2709
    %2741 = vmatpush1.bf16.msra.mxu0 %v2708
    %2742 = vmatprep.subr.bf16.mxu0 %v2711
    %2743 = vmatpush1.bf16.msra.mxu0 %v2710
    %2744 = vmatprep.subr.bf16.mxu0 %v2713
    %2745 = vmatpush1.bf16.msra.mxu0 %v2712
    %2746 = vmatprep.subr.bf16.mxu0 %v2715
    %2747 = vmatpush1.bf16.msra.mxu0 %v2714
    %2748 = vmatprep.subr.bf16.mxu0 %v2717
    %2749 = vmatpush1.bf16.msra.mxu0 %v2716
    %2750 = vmatprep.subr.bf16.mxu0 %v2719
    %2751 = vmatpush1.bf16.msra.mxu0 %v2718
    %2752 = vmatprep.subr.bf16.mxu0 0
    %2753 = vmatpush1.bf16.msra.mxu0 0
    %2754 = vmatprep.subr.bf16.mxu0 0
    %2755 = vmatpush1.bf16.msra.mxu0 0
    %2756 = vmatprep.subr.bf16.mxu0 0
    %2757 = vmatpush1.bf16.msra.mxu0 0
    %2758 = vmatprep.subr.bf16.mxu0 0
    %2759 = vmatpush1.bf16.msra.mxu0 0
    %2760 = vmatprep.subr.bf16.mxu0 0
    %2761 = vmatpush1.bf16.msra.mxu0 0
    %2762 = vmatprep.subr.bf16.mxu0 0
    %2763 = vmatpush1.bf16.msra.mxu0 0
    %2764 = vmatprep.subr.bf16.mxu0 0
    %2765 = vmatpush1.bf16.msra.mxu0 0
    %2766 = vmatprep.subr.bf16.mxu0 0
    %2767 = vmatpush1.bf16.msra.mxu0 0
    %2768 = vmatprep.mubr.bf16.mxu0 0
    %2769 = vmatmul.mubr.bf16.gmra.mrb[0].mxu0 %v2625
    %v2770 = vpop.f32.mrb[0].mxu0
    %v2771 = vadd.f32 %v2649, %v2770
    %v2772 = vpop.f32.mrb[0].mxu0
    %v2773 = vadd.f32 %v2653, %v2772
    %v2774 = vpop.f32.mrb[0].mxu0
    %v2775 = vadd.f32 %v2649, %v2774
    %v2776 = vpop.f32.mrb[0].mxu0
    %v2777 = vadd.f32 %v2653, %v2776
    %2778 = vdwg.mxu0
    %v2779 = vmul.f32 %v2771, 0.5
    %v2780 = vmul.f32 %v2773, 0.5
    %v2781 = vmul.f32 %v2775, 0.5
    %v2782 = vmul.f32 %v2777, 0.5
    %v2783 = vmul.f32 %v2771, 0.044715
    %v2784 = vmul.f32 %v2773, 0.044715
    %v2785 = vmul.f32 %v2775, 0.044715
    %v2786 = vmul.f32 %v2777, 0.044715
    %v2787 = vmul.f32 %v2783, %v2771
    %v2788 = vmul.f32 %v2784, %v2773
    %v2789 = vmul.f32 %v2785, %v2775
    %v2790 = vmul.f32 %v2786, %v2777
    %v2791 = vmul.f32 %v2787, %v2771
    %v2792 = vmul.f32 %v2788, %v2773
    %v2793 = vmul.f32 %v2789, %v2775
    %v2794 = vmul.f32 %v2790, %v2777
    %v2795 = vadd.f32 %v2771, %v2791
    %v2796 = vadd.f32 %v2773, %v2792
    %v2797 = vadd.f32 %v2775, %v2793
    %v2798 = vadd.f32 %v2777, %v2794
    %v2799 = vmul.f32 %v2795, 0.7978846
    %v2800 = vmul.f32 %v2796, 0.7978846
    %v2801 = vmul.f32 %v2797, 0.7978846
    %v2802 = vmul.f32 %v2798, 0.7978846
    %v2803 = vtanh.pop %v2799
    %v2804 = vtanh.pop %v2800
    %v2805 = vtanh.pop %v2801
    %v2806 = vtanh.pop %v2802
    %v2807 = vadd.f32 %v2803, 1.0
    %v2808 = vadd.f32 %v2804, 1.0
    %v2809 = vadd.f32 %v2805, 1.0
    %v2810 = vadd.f32 %v2806, 1.0
    %v2811 = vmul.f32 %v2779, %v2807
    %v2812 = vmul.f32 %v2780, %v2808
    %v2813 = vmul.f32 %v2781, %v2809
    %v2814 = vmul.f32 %v2782, %v2810
    %v2815 = vpack.c.bf16 %v2813, %v2811
    %v2816 = vpack.c.bf16 %v2814, %v2812
    %s2817 = scalar_lea.vmem [#allocation9], 128
    %v2818 = vld [vmem:[%s2817] sm:$0xf]
    %v2819 = vld [vmem:[%s2817 + $0x4] sm:$0xf]
    %v2820 = vld [vmem:[%s2817 + $0x8] sm:$0xf]
    %v2821 = vld [vmem:[%s2817 + $0xc] sm:$0xf]
    %v2822 = vld [vmem:[%s2817 + $0x10] sm:$0xf]
    %v2823 = vld [vmem:[%s2817 + $0x14] sm:$0xf]
    %v2824 = vld [vmem:[%s2817 + $0x18] sm:$0xf]
    %v2825 = vld [vmem:[%s2817 + $0x1c] sm:$0xf]
    %v2826 = vld [vmem:[%s2817 + $0x20] sm:$0xf]
    %v2827 = vld [vmem:[%s2817 + $0x24] sm:$0xf]
    %v2828 = vld [vmem:[%s2817 + $0x28] sm:$0xf]
    %v2829 = vld [vmem:[%s2817 + $0x2c] sm:$0xf]
    %v2830 = vld [vmem:[%s2817 + $0x30] sm:$0xf]
    %v2831 = vld [vmem:[%s2817 + $0x34] sm:$0xf]
    %v2832 = vld [vmem:[%s2817 + $0x38] sm:$0xf]
    %v2833 = vld [vmem:[%s2817 + $0x3c] sm:$0xf]
    %v2834 = vld [vmem:[%s2817 + $0x40] sm:$0xf]
    %v2835 = vld [vmem:[%s2817 + $0x44] sm:$0xf]
    %v2836 = vld [vmem:[%s2817 + $0x48] sm:$0xf]
    %v2837 = vld [vmem:[%s2817 + $0x4c] sm:$0xf]
    %v2838 = vld [vmem:[%s2817 + $0x50] sm:$0xf]
    %v2839 = vld [vmem:[%s2817 + $0x54] sm:$0xf]
    %v2840 = vld [vmem:[%s2817 + $0x58] sm:$0xf]
    %v2841 = vld [vmem:[%s2817 + $0x5c] sm:$0xf]
    %v2842 = vld [vmem:[%s2817 + $0x60] sm:$0xf]
    %v2843 = vld [vmem:[%s2817 + $0x64] sm:$0xf]
    %v2844 = vld [vmem:[%s2817 + $0x68] sm:$0xf]
    %v2845 = vld [vmem:[%s2817 + $0x6c] sm:$0xf]
    %v2846 = vld [vmem:[%s2817 + $0x70] sm:$0xf]
    %v2847 = vld [vmem:[%s2817 + $0x74] sm:$0xf]
    %v2848 = vld [vmem:[%s2817 + $0x78] sm:$0xf]
    %v2849 = vld [vmem:[%s2817 + $0x7c] sm:$0xf]
    %s2850 = scalar_lea.vmem %s13, 1
    %v2851 = vld [vmem:[%s2850] sm:$0x1]
    %v2853 = vlaneseq
    %v2854 = vshrl.u32 %v2853, 7
    %v2855 = vsub.s32 0, %v2854
    %v2856 = vrot.slane %v2851, %v2855
    %v2890 = vunpack.c.l.b16 %v2818
    %v2891 = vunpack.c.l.b16 %v2819
    %v2892 = vunpack.c.l.b16 %v2820
    %v2893 = vunpack.c.l.b16 %v2821
    %v2894 = vunpack.c.l.b16 %v2822
    %v2895 = vunpack.c.l.b16 %v2823
    %v2896 = vunpack.c.l.b16 %v2824
    %v2897 = vunpack.c.l.b16 %v2825
    %v2898 = vunpack.c.l.b16 %v2826
    %v2899 = vunpack.c.l.b16 %v2827
    %v2900 = vunpack.c.l.b16 %v2828
    %v2901 = vunpack.c.l.b16 %v2829
    %v2902 = vunpack.c.l.b16 %v2830
    %v2903 = vunpack.c.l.b16 %v2831
    %v2904 = vunpack.c.l.b16 %v2832
    %v2905 = vunpack.c.l.b16 %v2833
    %v2906 = vunpack.c.l.b16 %v2834
    %v2907 = vunpack.c.l.b16 %v2835
    %v2908 = vunpack.c.l.b16 %v2836
    %v2909 = vunpack.c.l.b16 %v2837
    %v2910 = vunpack.c.l.b16 %v2838
    %v2911 = vunpack.c.l.b16 %v2839
    %v2912 = vunpack.c.l.b16 %v2840
    %v2913 = vunpack.c.l.b16 %v2841
    %v2914 = vunpack.c.l.b16 %v2842
    %v2915 = vunpack.c.l.b16 %v2843
    %v2916 = vunpack.c.l.b16 %v2844
    %v2917 = vunpack.c.l.b16 %v2845
    %v2918 = vunpack.c.l.b16 %v2846
    %v2919 = vunpack.c.l.b16 %v2847
    %v2920 = vunpack.c.l.b16 %v2848
    %v2921 = vunpack.c.l.b16 %v2849
    %v2922 = vpack.c.b16 %v2891, %v2890
    %v2923 = vpack.c.b16 %v2893, %v2892
    %v2924 = vpack.c.b16 %v2895, %v2894
    %v2925 = vpack.c.b16 %v2897, %v2896
    %v2926 = vpack.c.b16 %v2899, %v2898
    %v2927 = vpack.c.b16 %v2901, %v2900
    %v2928 = vpack.c.b16 %v2903, %v2902
    %v2929 = vpack.c.b16 %v2905, %v2904
    %v2930 = vpack.c.b16 %v2907, %v2906
    %v2931 = vpack.c.b16 %v2909, %v2908
    %v2932 = vpack.c.b16 %v2911, %v2910
    %v2933 = vpack.c.b16 %v2913, %v2912
    %v2934 = vpack.c.b16 %v2915, %v2914
    %v2935 = vpack.c.b16 %v2917, %v2916
    %v2936 = vpack.c.b16 %v2919, %v2918
    %v2937 = vpack.c.b16 %v2921, %v2920
    %2954 = vmatprep.subr.bf16.mxu0 0
    %2955 = vmatpush1.bf16.msra.mxu0 %v2922
    %2956 = vmatprep.subr.bf16.mxu0 0
    %2957 = vmatpush1.bf16.msra.mxu0 %v2923
    %2958 = vmatprep.subr.bf16.mxu0 0
    %2959 = vmatpush1.bf16.msra.mxu0 %v2924
    %2960 = vmatprep.subr.bf16.mxu0 0
    %2961 = vmatpush1.bf16.msra.mxu0 %v2925
    %2962 = vmatprep.subr.bf16.mxu0 0
    %2963 = vmatpush1.bf16.msra.mxu0 %v2926
    %2964 = vmatprep.subr.bf16.mxu0 0
    %2965 = vmatpush1.bf16.msra.mxu0 %v2927
    %2966 = vmatprep.subr.bf16.mxu0 0
    %2967 = vmatpush1.bf16.msra.mxu0 %v2928
    %2968 = vmatprep.subr.bf16.mxu0 0
    %2969 = vmatpush1.bf16.msra.mxu0 %v2929
    %2970 = vmatprep.subr.bf16.mxu0 0
    %2971 = vmatpush1.bf16.msra.mxu0 %v2930
    %2972 = vmatprep.subr.bf16.mxu0 0
    %2973 = vmatpush1.bf16.msra.mxu0 %v2931
    %2974 = vmatprep.subr.bf16.mxu0 0
    %2975 = vmatpush1.bf16.msra.mxu0 %v2932
    %2976 = vmatprep.subr.bf16.mxu0 0
    %2977 = vmatpush1.bf16.msra.mxu0 %v2933
    %2978 = vmatprep.subr.bf16.mxu0 0
    %2979 = vmatpush1.bf16.msra.mxu0 %v2934
    %2980 = vmatprep.subr.bf16.mxu0 0
    %2981 = vmatpush1.bf16.msra.mxu0 %v2935
    %2982 = vmatprep.subr.bf16.mxu0 0
    %2983 = vmatpush1.bf16.msra.mxu0 %v2936
    %2984 = vmatprep.subr.bf16.mxu0 0
    %2985 = vmatpush1.bf16.msra.mxu0 %v2937
    %2986 = vmatprep.mubr.bf16.mxu0 %v2816
    %2987 = vmatmul.mubr.bf16.gmra.mrb[0].mxu0 %v2815
    %v2988 = vpop.f32.mrb[0].mxu0
    %v2989 = vadd.f32 %v2856, %v2988
    %v2990 = vpop.f32.mrb[0].mxu0
    %v2991 = vpop.f32.mrb[0].mxu0
    %v2992 = vadd.f32 %v2856, %v2991
    %v2993 = vpop.f32.mrb[0].mxu0
    %2994 = vdwg.mxu0
    %v2995 = vadd.f32 %v2989, %v2623
    %v2996 = vadd.f32 %v2992, %v2624
    %s2997 = scalar_lea.vmem %s14, 1
    %v2998 = vld [vmem:[%s2997] sm:$0x1]
    %s2999 = scalar_lea.vmem %s15, 1
    %v3000 = vld [vmem:[%s2999] sm:$0x1]
    %3001 = vadd.xlane.f32.xlu0 %v2995
    %v3002 = vpop.xlane.xlu0 %3001
    %3003 = vadd.xlane.f32.xlu0 %v2996
    %v3004 = vpop.xlane.xlu0 %3003
    %v3005 = vmul.f32 %v3002, %v128
    %v3006 = vmul.f32 %v3004, %v128
    %v3007 = vsub.f32 %v2995, %v3005
    %v3008 = vsub.f32 %v2996, %v3006
    %v3009 = vmul.f32 %v3007, %v3007
    %v3010 = vmul.f32 %v3008, %v3008
    %3011 = vadd.xlane.f32.xlu0 %v3009
    %v3012 = vpop.xlane.xlu0 %3011
    %3013 = vadd.xlane.f32.xlu0 %v3010
    %v3014 = vpop.xlane.xlu0 %3013
    %v3015 = vmul.f32 %v3012, %v128
    %v3016 = vmul.f32 %v3014, %v128
    %v3017 = vadd.f32 %v3015, 1e-12
    %v3018 = vadd.f32 %v3016, 1e-12
    %v3019 = vrsqrt.pop %v3017
    %v3020 = vrsqrt.pop %v3018
    %v3021 = vmul.f32 %v3007, %v3019
    %v3022 = vmul.f32 %v3008, %v3020
    %v3024 = vlaneseq
    %v3025 = vshrl.u32 %v3024, 7
    %v3026 = vsub.s32 0, %v3025
    %v3027 = vrot.slane %v2998, %v3026
    %v3029 = vmul.f32 %v3021, %v3027
    %v3030 = vmul.f32 %v3022, %v3027
    %v3032 = vlaneseq
    %v3033 = vshrl.u32 %v3032, 7
    %v3034 = vsub.s32 0, %v3033
    %v3035 = vrot.slane %v3000, %v3034
    %v3037 = vadd.f32 %v3029, %v3035
    %v3038 = vadd.f32 %v3030, %v3035
    %3039 = vst [vmem:[%s16] sm:$0xff] %v3037
    %3040 = vst [vmem:[%s16 + $0x8] sm:$0xff] %v3038
    // Predicated region
    $region86: #{legal_retrieval_forward.1} parent=1 // pred_check
      _
    $region87: #{legal_retrieval_forward.1} parent=1 // pred_check_branch
      %3042 = sbr.rel (0) target = $region89
    $region88: #{legal_retrieval_forward.1} parent=1 // pred_region
      _
    $region89: #{legal_retrieval_forward.1} parent=1 // pred_fallthru
      _
    // Predicated region
    $region90: #{legal_retrieval_forward.1} parent=1 // pred_check
      _
    $region91: #{legal_retrieval_forward.1} parent=1 // pred_check_branch
      %3044 = sbr.rel (0) target = $region93
    $region92: #{legal_retrieval_forward.1} parent=1 // pred_region
      _
    $region93: #{legal_retrieval_forward.1} parent=1 // pred_fallthru
      _
    %3045 = vsyncpa [#allocation3], 1
    %3046 = vsyncpa [#allocation5], 1
    %3047 = vsyncpa [#allocation8], 1

</llo_original>
